<compile_context>
chip_gen: v5e
topology: v5e:2x2
jax: 0.10.0
libtpu: 0.0.40
codegen_flags: <defaults>
</compile_context>

<pallas_src>
import numpy as np

import jax
import jax.numpy as jnp
from jax import lax
from jax.experimental import pallas as pl
from jax.experimental.pallas import tpu as pltpu

TAPS3 = [(ky - 1, kx - 1) for ky in range(3) for kx in range(3)]


def _round_up(x, m):
    return (x + m - 1) // m * m


def _gelu(x):
    # tanh-approx GELU (same as jax.nn.gelu approximate=True); |err| vs the
    # exact erf GELU is ~1e-3 worst case, well inside the accepted tolerance.
    c = 0.7978845608028654  # sqrt(2/pi)
    return 0.5 * x * (1.0 + jnp.tanh(c * (x + 0.044715 * x * x * x)))


# --------------------------------- the kernel --------------------------------

def _make_kernel(meta):
    Cp, Dp, E = meta["Cp"], meta["Dp"], meta["E"]
    EDp = E * Dp
    H, W, HW, NB = meta["H"], meta["W"], meta["HW"], meta["NB"]
    L = NB * HW
    NBS = meta["NBS"]
    RRI = meta["rr_interp_row"]
    topk = meta["topk"]
    recursive = meta["recursive"]
    s_last = meta["s_last"]
    W_OFF, B_OFF = meta["w_off"], meta["b_off"]

    def kernel(x_ref, wslab, bslab, masks, rcol, rrow, o_ref):
        f32 = jnp.float32

        def wblk(name):
            r, h, w = W_OFF[name]
            return wslab[r:r + h, :w]

        def bblk(name):
            r, h, _ = B_OFF[name]
            return bslab[r:r + h, :]

        def shifted(v, delta):
            if delta == 0:
                return v
            return pltpu.roll(v, shift=(-delta) % L, axis=1)

        def tap_full(t, v):
            # full-resolution 3x3 tap t of v, zero outside each sample's image
            dy, dx = TAPS3[t]
            return masks[t:t + 1, :] * shifted(v, dy * W + dx)

        x = x_ref[...]                                            # (Cp, L)

        # ---- conv_1: 3x3 conv as ONE matmul over 9 rolled taps + GELU + 1x1 ----
        stack = jnp.concatenate([tap_full(t, x) for t in range(9)], axis=0)
        y = _gelu(jnp.dot(wblk("w1a"), stack, preferred_element_type=f32)
                  + bblk("b1a"))
        qk = jnp.dot(wblk("wqv"), y, preferred_element_type=f32) + bblk("bqv")
        xh, kh = qk[:Cp, :], qk[Cp:, :]                           # aligned chunk

        # ---- conv_2: StripedConv2d (depthwise (1,3) then (3,1)) + GELU ----
        wsa = wblk("wsa")
        xh = (wsa[:, 0:1] * tap_full(3, xh) + wsa[:, 1:2] * xh
              + wsa[:, 2:3] * tap_full(5, xh)) + bblk("bsa")
        wsb = wblk("wsb")
        xh = (wsb[:, 0:1] * tap_full(1, xh) + wsb[:, 1:2] * xh
              + wsb[:, 2:3] * tap_full(7, xh)) + bblk("bsb")
        x2 = _gelu(xh)

        # ---- calibrate(k): recursive stride-4 depthwise 4x4 + GELU, computed
        # on an embedded coarse grid (stride 4**lvl on the original lanes) ----
        wagg, bagg = wblk("wagg"), bblk("bagg")
        cur = kh
        for lvl in range(recursive):
            s = 4 ** lvl
            acc = None
            for t in range(16):
                i, j = divmod(t, 4)
                term = wagg[:, t:t + 1] * shifted(cur, s * (i * W + j))
                acc = term if acc is None else acc + term
            # keep only this level's output-grid lanes (rows 18+lvl of the slab)
            cur = _gelu(acc + bagg) * masks[18 + lvl:19 + lvl, :]
        # depthwise 3x3 (pad 1) on the coarse grid, then 1x1 conv
        w3d = wblk("w3d")
        acc = None
        for t in range(9):
            dy, dx = TAPS3[t]
            term = w3d[:, t:t + 1] * (masks[9 + t:10 + t, :]
                                      * shifted(cur, s_last * (dy * W + dx)))
            acc = term if acc is None else acc + term
        cur = acc + bblk("b3d")
        cur = jnp.dot(wblk("w3p"), cur, preferred_element_type=f32) + bblk("b3p")
        # bilinear upsample: compact the coarse grid, then one interp matmul
        compact = jnp.dot(cur, rcol[:, NB:NB + NBS], preferred_element_type=f32)
        interp = jnp.dot(compact, rrow[RRI:RRI + NBS, :],
                         preferred_element_type=f32)
        k_cal = kh + interp                                       # residual add

        # ---- router: per-sample avg pool via block-diag matmul, softmax, top-k ----
        pooled = jnp.dot(x2, rcol[:, 0:NB], preferred_element_type=f32)  # (Cp,NB)
        logits = jnp.dot(wblk("wg"), pooled, preferred_element_type=f32)  # (E,NB)
        lmax = jnp.max(logits, axis=0, keepdims=True)
        exl = jnp.exp(logits - lmax)
        wsm = exl / jnp.sum(exl, axis=0, keepdims=True)
        selmask = jnp.zeros_like(wsm, dtype=jnp.bool_)
        rem = wsm
        for _ in range(topk):   # NOTE: exact ties over-select vs torch.topk
            cm = jnp.max(rem, axis=0, keepdims=True)
            s_ = rem >= cm
            selmask = jnp.logical_or(selmask, s_)
            rem = jnp.where(s_, -1.0, rem)
        gates = jnp.where(selmask, wsm, 0.0)                      # (E, NB)

        # ---- experts (fully fused, per-sample gating on the lane axis) ----
        # gate value for every (expert-row, lane): (EDp+8, NB) -> (EDp+8, L)
        grows = jnp.dot(wblk("onehot"), gates, preferred_element_type=f32)
        grl = jnp.dot(grows, rrow[0:NB, :], preferred_element_type=f32)
        # a/b branches of all experts in one block-diagonal matmul
        stack2 = jnp.concatenate([x2, k_cal], axis=0)             # (2Cp, L)
        ab = jnp.dot(wblk("wab"), stack2, preferred_element_type=f32) + bblk("bab")
        hp = ab[:EDp, :] * ab[EDp:, :]                            # (EDp, L)
        # gated hidden + gated-bias rows, one matmul for all conv_3 outputs
        hga = jnp.concatenate([hp * grl[:EDp, :], grl[EDp:, :]], axis=0)
        moe = x2 + jnp.dot(wblk("wc3aug"), hga, preferred_element_type=f32)

        # ---- proj ----
        out = jnp.dot(wblk("wp"), moe, preferred_element_type=f32) + bblk("bp")
        o_ref[...] = out.astype(o_ref.dtype)

    return kernel


# ----------------------- constants / parameter preparation -------------------

def _bilinear_matrix(out_size, in_size):
    """(out_size, in_size) 1-D weights matching F.interpolate(bilinear,
    align_corners=False)."""
    u = np.zeros((out_size, in_size), np.float32)
    scale = in_size / out_size
    for o in range(out_size):
        center = max((o + 0.5) * scale - 0.5, 0.0)
        i0 = min(int(np.floor(center)), in_size - 1)
        i1 = min(i0 + 1, in_size - 1)
        lam = center - i0
        u[o, i0] += 1.0 - lam
        u[o, i1] += lam
    return u


def _pack_rows(named):
    """Pack named 2-D arrays into one slab along sublanes; each block's height
    is padded to a multiple of 8 so all static row slices are aligned."""
    width = max(a.shape[1] for _, a in named)
    offs, chunks, r = {}, [], 0
    for name, a in named:
        a = np.asarray(a, np.float32)
        h, w = a.shape
        hp = _round_up(h, 8)
        blk = np.zeros((hp, width), np.float32)
        blk[:h, :w] = a
        offs[name] = (r, h, w)
        chunks.append(blk)
        r += hp
    return np.concatenate(chunks, axis=0), offs


def _build_kernel_inputs(pt, cfg, NB):
    C, H, W = cfg["C"], cfg["H"], cfg["W"]
    E, topk, recursive = cfg["num_experts"], cfg["topk"], cfg["recursive"]
    dims = cfg["dims"]
    Cp, Dp = _round_up(C, 8), _round_up(max(dims), 8)
    EDp = E * Dp
    HW = H * W
    L = NB * HW

    # spatial geometry through the recursive stride-4 depthwise agg convs
    levels, h, w = [], H, W
    for _ in range(recursive):
        ho, wo = (h - 4) // 4 + 1, (w - 4) // 4 + 1
        levels.append((h, w, ho, wo))
        h, w = ho, wo
    h_last, w_last = h, w
    s_last = 4 ** recursive
    hw_last = h_last * w_last
    NBS = NB * hw_last

    def padmat(a, rows, cols):
        out = np.zeros((rows, cols), np.float32)
        a = np.asarray(a, np.float32)
        out[:a.shape[0], :a.shape[1]] = a
        return out

    # conv_1 3x3 as (Cp, 9*Cp) — taps outer, (padded) channels inner
    w1a_t = np.transpose(np.asarray(pt["conv1a_w"]), (0, 2, 3, 1))  # (C,3,3,C)
    w1a = np.zeros((Cp, 9 * Cp), np.float32)
    for t in range(9):
        ky, kx = divmod(t, 3)
        w1a[:C, t * Cp:t * Cp + C] = w1a_t[:, ky, kx, :]
    b1a = padmat(np.asarray(pt["conv1a_b"]).reshape(C, 1), Cp, 1)

    wqv_raw = np.asarray(pt["conv1b_w"])
    bqv_raw = np.asarray(pt["conv1b_b"])
    if cfg["use_shuffle"]:
        # channel_shuffle(groups=2) is a static permutation -> fold into weights
        perm = np.array([(j % 2) * C + (j // 2) for j in range(2 * C)])
        wqv_raw, bqv_raw = wqv_raw[perm], bqv_raw[perm]
    wqv = np.zeros((2 * Cp, Cp), np.float32)
    bqv = np.zeros((2 * Cp, 1), np.float32)
    wqv[:C, :C] = wqv_raw[:C]
    wqv[Cp:Cp + C, :C] = wqv_raw[C:]
    bqv[:C, 0] = bqv_raw[:C]
    bqv[Cp:Cp + C, 0] = bqv_raw[C:]

    wsa = padmat(pt["stripeA_w"], Cp, 3)
    bsa = padmat(np.asarray(pt["stripeA_b"]).reshape(C, 1), Cp, 1)
    wsb = padmat(pt["stripeB_w"], Cp, 3)
    bsb = padmat(np.asarray(pt["stripeB_b"]).reshape(C, 1), Cp, 1)
    wagg = padmat(np.asarray(pt["agg_w"]).reshape(C, 16), Cp, 16)
    bagg = padmat(np.asarray(pt["agg_b"]).reshape(C, 1), Cp, 1)
    w3d = padmat(np.asarray(pt["cal_dw_w"]).reshape(C, 9), Cp, 9)
    b3d = padmat(np.asarray(pt["cal_dw_b"]).reshape(C, 1), Cp, 1)
    w3p = padmat(pt["cal_pw_w"], Cp, Cp)
    b3p = padmat(np.asarray(pt["cal_pw_b"]).reshape(C, 1), Cp, 1)
    wg = padmat(pt["gate_w"], E, Cp)
    wp = padmat(pt["proj_w"], Cp, Cp)
    bp = padmat(np.asarray(pt["proj_b"]).reshape(C, 1), Cp, 1)

    # experts: block-diag conv_1/conv_2 weights, fused conv_3 (+bias cols),
    # gate-row expansion one-hot
    wab = np.zeros((2 * EDp, 2 * Cp), np.float32)
    bab = np.zeros((2 * EDp, 1), np.float32)
    wc3aug = np.zeros((Cp, EDp + 8), np.float32)
    onehot = np.zeros((EDp + 8, E), np.float32)
    for e, d in enumerate(dims):
        wab[e * Dp:e * Dp + d, :C] = np.asarray(pt["expert_w1"][e])
        bab[e * Dp:e * Dp + d, 0] = np.asarray(pt["expert_b1"][e])
        wab[EDp + e * Dp:EDp + e * Dp + d, Cp:Cp + C] = np.asarray(pt["expert_w2"][e])
        bab[EDp + e * Dp:EDp + e * Dp + d, 0] = np.asarray(pt["expert_b2"][e])
        wc3aug[:C, e * Dp:e * Dp + d] = np.asarray(pt["expert_w3"][e])
        wc3aug[:C, EDp + e] = np.asarray(pt["expert_b3"][e])
        onehot[e * Dp:(e + 1) * Dp, e] = 1.0
        onehot[EDp + e, e] = 1.0

    wslab, w_off = _pack_rows([
        ("w1a", w1a), ("wqv", wqv), ("wsa", wsa), ("wsb", wsb),
        ("wagg", wagg), ("w3d", w3d), ("w3p", w3p), ("wg", wg),
        ("wab", wab), ("wc3aug", wc3aug), ("onehot", onehot), ("wp", wp)])
    bslab, b_off = _pack_rows([
        ("b1a", b1a), ("bqv", bqv), ("bsa", bsa), ("bsb", bsb),
        ("bagg", bagg), ("b3d", b3d), ("b3p", b3p), ("bab", bab), ("bp", bp)])

    # ---- mask slab: rows 0-8 full-res 3x3 taps, 9-17 coarse-grid 3x3 taps,
    #      18.. per-level agg output-grid masks (all tiled over the NB samples)
    mf = np.zeros((9, HW), np.float32)
    for t, (dy, dx) in enumerate(TAPS3):
        for p in range(HW):
            hh, ww = divmod(p, W)
            if 0 <= hh + dy < H and 0 <= ww + dx < W:
                mf[t, p] = 1.0
    ms = np.zeros((9, HW), np.float32)
    for t, (dy, dx) in enumerate(TAPS3):
        for gi in range(h_last):
            for gj in range(w_last):
                if 0 <= gi + dy < h_last and 0 <= gj + dx < w_last:
                    ms[t, (s_last * gi) * W + s_last * gj] = 1.0
    ml = np.zeros((recursive, HW), np.float32)
    for lvl in range(recursive):
        s_out = 4 ** (lvl + 1)
        h_out, w_out = levels[lvl][2], levels[lvl][3]
        for gi in range(h_out):
            for gj in range(w_out):
                ml[lvl, (s_out * gi) * W + s_out * gj] = 1.0
    masks = np.tile(np.concatenate([mf, ms, ml], axis=0), (1, NB))

    # ---- rcol: [pool (L,NB) | coarse-grid gather (L,NBS)]
    rcol = np.zeros((L, NB + NBS), np.float32)
    for b in range(NB):
        rcol[b * HW:(b + 1) * HW, b] = 1.0 / HW
        for gi in range(h_last):
            for gj in range(w_last):
                src = b * HW + (s_last * gi) * W + s_last * gj
                rcol[src, NB + b * hw_last + gi * w_last + gj] = 1.0

    # ---- rrow: rows [0:NB] sample->lane expansion; rows [RRI:RRI+NBS] bilinear
    uh = _bilinear_matrix(H, h_last)
    uw = _bilinear_matrix(W, w_last)
    interp_s = np.einsum("Hh,Ww->hwHW", uh, uw).reshape(hw_last, HW)
    RRI = _round_up(NB, 8)
    rrow = np.zeros((RRI + _round_up(NBS, 8), L), np.float32)
    for b in range(NB):
        rrow[b, b * HW:(b + 1) * HW] = 1.0
        rrow[RRI + b * hw_last:RRI + (b + 1) * hw_last,
             b * HW:(b + 1) * HW] = interp_s

    consts = [wslab, bslab, masks, rcol, rrow]
    meta = dict(Cp=Cp, Dp=Dp, E=E, H=H, W=W, HW=HW, NB=NB, NBS=NBS,
                recursive=recursive, s_last=s_last, topk=topk,
                w_off=w_off, b_off=b_off, rr_interp_row=RRI)
    return consts, meta


# --------------------------------- wrapper -----------------------------------

def moe_block_forward(x_nchw, pt, cfg, batch_tile=None):
    """x_nchw: (N, C, H, W) float32 -> (N, C, H, W)."""
    N, C, H, W = x_nchw.shape
    HW = H * W
    Cp = _round_up(C, 8)

    # Fold several samples onto the lane axis per grid step (perf item #1).
    # For large batches this still leaves >=2 grid steps so both v7x TCs engage.
    if batch_tile is None:
        batch_tile = max(1, min(N, max(1, 4096 // HW)))
    NB = batch_tile
    Ng = -(-N // NB)
    Npad = Ng * NB
    L = NB * HW

    consts_np, meta = _build_kernel_inputs(pt, cfg, NB)
    consts = [jnp.asarray(a) for a in consts_np]

    # NCHW -> (Cp, Npad*HW): channels on sublanes (padded to 8), batch folded
    # into the lane axis.  Pure layout plumbing done once outside the kernel.
    xf = x_nchw.reshape(N, C, HW)
    xf = jnp.pad(xf, ((0, Npad - N), (0, Cp - C), (0, 0)))
    xf = jnp.transpose(xf, (1, 0, 2)).reshape(Cp, Npad * HW)

    def const_spec(a):
        return pl.BlockSpec(a.shape, lambda g: (0, 0))

    in_specs = [pl.BlockSpec((Cp, L), lambda g: (0, g))]
    in_specs += [const_spec(a) for a in consts]

    # per-step VMEM budget from the actual working set (perf item #12)
    def tile_bytes(shape):
        return _round_up(shape[-2], 8) * _round_up(shape[-1], 128) * 4
    step_bytes = 2 * tile_bytes((Cp, L)) + sum(tile_bytes(a.shape) for a in consts)
    vmem_limit = int(min(max(2 * step_bytes * 3 + (4 << 20), 8 << 20), 64 << 20))

    out = pl.pallas_call(
        _make_kernel(meta),
        out_shape=jax.ShapeDtypeStruct((Cp, Npad * HW), jnp.float32),
        grid=(Ng,),
        in_specs=in_specs,
        out_specs=pl.BlockSpec((Cp, L), lambda g: (0, g)),
        compiler_params=pltpu.CompilerParams(
            dimension_semantics=("parallel",),
            vmem_limit_bytes=vmem_limit),
    )(xf, *consts)

    out = out.reshape(Cp, Npad, HW).transpose(1, 0, 2)[:N, :C, :]
    return out.reshape(N, C, H, W)


# ------------------------------ parameter init --------------------------------

def init_params(key, C, H, W, num_experts, topk, recursive, use_shuffle=False):
    """Deterministic synthetic params in PyTorch form + shape config."""
    dims = [i + 2 for i in range(num_experts)]          # lr_space='linear'
    keys = iter(jax.random.split(key, 32 + 8 * num_experts))

    def rnd(shape, scale=0.1):
        return scale * jax.random.normal(next(keys), shape, jnp.float32)

    pt = dict(
        conv1a_w=rnd((C, C, 3, 3)), conv1a_b=rnd((C,)),
        conv1b_w=rnd((2 * C, C)),   conv1b_b=rnd((2 * C,)),
        stripeA_w=rnd((C, 3)),      stripeA_b=rnd((C,), 0.5),
        stripeB_w=rnd((C, 3)),      stripeB_b=rnd((C,), 0.5),
        agg_w=rnd((C, 4, 4)),       agg_b=rnd((C,)),
        cal_dw_w=rnd((C, 3, 3)),    cal_dw_b=rnd((C,)),
        cal_pw_w=rnd((C, C)),       cal_pw_b=rnd((C,)),
        gate_w=rnd((num_experts, C), 1.0),
        proj_w=rnd((C, C)),         proj_b=rnd((C,)),
        expert_w1=[], expert_b1=[], expert_w2=[], expert_b2=[],
        expert_w3=[], expert_b3=[],
    )
    for d in dims:
        pt["expert_w1"].append(rnd((d, C)))
        pt["expert_b1"].append(rnd((d,)))
        pt["expert_w2"].append(rnd((d, C)))
        pt["expert_b2"].append(rnd((d,)))
        pt["expert_w3"].append(rnd((C, d)))
        pt["expert_b3"].append(rnd((C,)))

    cfg = dict(C=C, H=H, W=W, num_experts=num_experts, topk=topk,
               recursive=recursive, dims=dims, use_shuffle=use_shuffle)
    return pt, cfg


# ------------------------------ pure-JAX reference ----------------------------

def ref_forward(x, pt, cfg):
    """Pure-JAX NCHW reference matching the PyTorch MoEBlock forward
    (per-sample / training-branch MoE routing) at HIGHEST precision."""
    hi = lax.Precision.HIGHEST
    N, C, H, W = x.shape
    E, topk = cfg["num_experts"], cfg["topk"]
    recursive = cfg["recursive"]
    dn = ("NCHW", "OIHW", "NCHW")
    gelu = lambda v: jax.nn.gelu(v, approximate=False)

    # conv_1
    y = lax.conv_general_dilated(x, pt["conv1a_w"], (1, 1), [(1, 1), (1, 1)],
                                 dimension_numbers=dn, precision=hi)
    y = gelu(y + pt["conv1a_b"][None, :, None, None])
    qk = jnp.einsum("oc,nchw->nohw", pt["conv1b_w"], y, precision=hi) \
        + pt["conv1b_b"][None, :, None, None]
    if cfg["use_shuffle"]:
        qk = jnp.transpose(qk.reshape(N, 2, C, H, W),
                           (0, 2, 1, 3, 4)).reshape(N, 2 * C, H, W)
    xh, kh = qk[:, :C], qk[:, C:]

    # conv_2 (StripedConv2d depthwise + GELU)
    xh = lax.conv_general_dilated(xh, pt["stripeA_w"].reshape(C, 1, 1, 3), (1, 1),
                                  [(0, 0), (1, 1)], dimension_numbers=dn,
                                  feature_group_count=C, precision=hi) \
        + pt["stripeA_b"][None, :, None, None]
    xh = lax.conv_general_dilated(xh, pt["stripeB_w"].reshape(C, 1, 3, 1), (1, 1),
                                  [(1, 1), (0, 0)], dimension_numbers=dn,
                                  feature_group_count=C, precision=hi) \
        + pt["stripeB_b"][None, :, None, None]
    x2 = gelu(xh)

    # calibrate(k)
    cur = kh
    wagg = pt["agg_w"].reshape(C, 1, 4, 4)
    for _ in range(recursive):
        cur = lax.conv_general_dilated(cur, wagg, (4, 4), [(0, 0), (0, 0)],
                                       dimension_numbers=dn,
                                       feature_group_count=C, precision=hi)
        cur = gelu(cur + pt["agg_b"][None, :, None, None])
    cur = lax.conv_general_dilated(cur, pt["cal_dw_w"].reshape(C, 1, 3, 3), (1, 1),
                                   [(1, 1), (1, 1)], dimension_numbers=dn,
                                   feature_group_count=C, precision=hi) \
        + pt["cal_dw_b"][None, :, None, None]
    cur = jnp.einsum("oc,nchw->nohw", pt["cal_pw_w"], cur, precision=hi) \
        + pt["cal_pw_b"][None, :, None, None]
    uh = jnp.asarray(_bilinear_matrix(H, cur.shape[2]))
    uw = jnp.asarray(_bilinear_matrix(W, cur.shape[3]))
    k_cal = kh + jnp.einsum("Hh,nchw,Ww->ncHW", uh, cur, uw, precision=hi)

    # MoE layer (per-sample top-k gating; equals the training branch exactly)
    pooled = jnp.mean(x2, axis=(2, 3))
    logits = jnp.einsum("nc,ec->ne", pooled, pt["gate_w"], precision=hi)
    wsm = jax.nn.softmax(logits, axis=1)
    _, idx = lax.top_k(wsm, topk)
    mask = jnp.zeros_like(wsm).at[jnp.arange(N)[:, None], idx].set(1.0)
    gates = wsm * mask
    out = x2
    for e in range(E):
        a = jnp.einsum("dc,nchw->ndhw", pt["expert_w1"][e], x2, precision=hi) \
            + pt["expert_b1"][e][None, :, None, None]
        b = jnp.einsum("dc,nchw->ndhw", pt["expert_w2"][e], k_cal, precision=hi) \
            + pt["expert_b2"][e][None, :, None, None]
        o = jnp.einsum("cd,ndhw->nchw", pt["expert_w3"][e], a * b, precision=hi) \
            + pt["expert_b3"][e][None, :, None, None]
        out = out + o * gates[:, e][:, None, None, None]

    # proj
    out = jnp.einsum("oc,nchw->nohw", pt["proj_w"], out, precision=hi) \
        + pt["proj_b"][None, :, None, None]
    return out


# ------------------------------------ main ------------------------------------

if __name__ == "__main__":
    N, C, H, W = 2, 4, 16, 16
    NUM_EXPERTS, TOPK, RECURSIVE = 3, 1, 2

    key = jax.random.PRNGKey(0)
    kx, kparam = jax.random.split(key)
    x = jax.random.normal(kx, (N, C, H, W), jnp.float32)
    pt, cfg = init_params(kparam, C, H, W, NUM_EXPERTS, TOPK, RECURSIVE)

    out = moe_block_forward(x, pt, cfg)
    out = jax.block_until_ready(out)

    ref = ref_forward(x, pt, cfg)
    assert out.shape == (N, C, H, W), out.shape
    err = float(jnp.max(jnp.abs(out - ref)))
    # kernel matmuls run at default (single-pass bf16) MXU precision and GELU
    # is the tanh approximation, vs an erf/HIGHEST-precision reference
    assert err < 1e-2, f"max abs err {err}"
    print("KERNEL_OK")
</pallas_src>

<mosaic_0001>
module attributes {stable_mosaic.version = 11 : i64} {
  func.func @kernel(%arg0: i32, %arg1: memref<8x512xf32, #tpu.memory_space<vmem>>, %arg2: memref<168x72xf32, #tpu.memory_space<vmem>>, %arg3: memref<120x1xf32, #tpu.memory_space<vmem>>, %arg4: memref<20x512xf32, #tpu.memory_space<vmem>>, %arg5: memref<512x4xf32, #tpu.memory_space<vmem>>, %arg6: memref<16x512xf32, #tpu.memory_space<vmem>>, %arg7: memref<8x512xf32, #tpu.memory_space<vmem>>) attributes {dimension_semantics = [#tpu.dimension_semantics<parallel>], iteration_bounds = array<i64: 1>, scalar_prefetch = 0 : i64, scratch_operands = 0 : i64, tpu.core_type = #tpu.core_type<tc>, window_params = [{transform_indices = @transform_0, window_bounds = array<i64: 8, 512>}, {pipeline_mode = #tpu.pipeline_mode<synchronous>, transform_indices = @transform_1, window_bounds = array<i64: 168, 72>}, {pipeline_mode = #tpu.pipeline_mode<synchronous>, transform_indices = @transform_2, window_bounds = array<i64: 120, 1>}, {pipeline_mode = #tpu.pipeline_mode<synchronous>, transform_indices = @transform_3, window_bounds = array<i64: 20, 512>}, {pipeline_mode = #tpu.pipeline_mode<synchronous>, transform_indices = @transform_4, window_bounds = array<i64: 512, 4>}, {pipeline_mode = #tpu.pipeline_mode<synchronous>, transform_indices = @transform_5, window_bounds = array<i64: 16, 512>}, {transform_indices = @transform_6, window_bounds = array<i64: 8, 512>}]} {
    %c0 = arith.constant 0 : index
    %c0_0 = arith.constant 0 : index
    %0 = vector.load %arg1[%c0, %c0_0] : memref<8x512xf32, #tpu.memory_space<vmem>>, vector<8x512xf32>
    %c0_1 = arith.constant 0 : index
    %c0_2 = arith.constant 0 : index
    %1 = vector.load %arg4[%c0_1, %c0_2] : memref<20x512xf32, #tpu.memory_space<vmem>>, vector<1x512xf32>
    %c17_i32 = arith.constant 17 : i32
    %2 = tpu.dynamic_rotate %0 by %c17_i32 dim 1 : vector<8x512xf32>, i32 -> vector<8x512xf32>
    %3 = vector.broadcast %1 : vector<1x512xf32> to vector<8x512xf32>
    %4 = arith.mulf %3, %2 : vector<8x512xf32>
    %c1 = arith.constant 1 : index
    %c0_3 = arith.constant 0 : index
    %5 = vector.load %arg4[%c1, %c0_3] : memref<20x512xf32, #tpu.memory_space<vmem>>, vector<1x512xf32>
    %c16_i32 = arith.constant 16 : i32
    %6 = tpu.dynamic_rotate %0 by %c16_i32 dim 1 : vector<8x512xf32>, i32 -> vector<8x512xf32>
    %7 = vector.broadcast %5 : vector<1x512xf32> to vector<8x512xf32>
    %8 = arith.mulf %7, %6 : vector<8x512xf32>
    %c2 = arith.constant 2 : index
    %c0_4 = arith.constant 0 : index
    %9 = vector.load %arg4[%c2, %c0_4] : memref<20x512xf32, #tpu.memory_space<vmem>>, vector<1x512xf32>
    %c15_i32 = arith.constant 15 : i32
    %10 = tpu.dynamic_rotate %0 by %c15_i32 dim 1 : vector<8x512xf32>, i32 -> vector<8x512xf32>
    %11 = vector.broadcast %9 : vector<1x512xf32> to vector<8x512xf32>
    %12 = arith.mulf %11, %10 : vector<8x512xf32>
    %c3 = arith.constant 3 : index
    %c0_5 = arith.constant 0 : index
    %13 = vector.load %arg4[%c3, %c0_5] : memref<20x512xf32, #tpu.memory_space<vmem>>, vector<1x512xf32>
    %c1_i32 = arith.constant 1 : i32
    %14 = tpu.dynamic_rotate %0 by %c1_i32 dim 1 : vector<8x512xf32>, i32 -> vector<8x512xf32>
    %15 = vector.broadcast %13 : vector<1x512xf32> to vector<8x512xf32>
    %16 = arith.mulf %15, %14 : vector<8x512xf32>
    %c4 = arith.constant 4 : index
    %c0_6 = arith.constant 0 : index
    %17 = vector.load %arg4[%c4, %c0_6] : memref<20x512xf32, #tpu.memory_space<vmem>>, vector<1x512xf32>
    %18 = vector.broadcast %17 : vector<1x512xf32> to vector<8x512xf32>
    %19 = arith.mulf %18, %0 : vector<8x512xf32>
    %c5 = arith.constant 5 : index
    %c0_7 = arith.constant 0 : index
    %20 = vector.load %arg4[%c5, %c0_7] : memref<20x512xf32, #tpu.memory_space<vmem>>, vector<1x512xf32>
    %c511_i32 = arith.constant 511 : i32
    %21 = tpu.dynamic_rotate %0 by %c511_i32 dim 1 : vector<8x512xf32>, i32 -> vector<8x512xf32>
    %22 = vector.broadcast %20 : vector<1x512xf32> to vector<8x512xf32>
    %23 = arith.mulf %22, %21 : vector<8x512xf32>
    %c6 = arith.constant 6 : index
    %c0_8 = arith.constant 0 : index
    %24 = vector.load %arg4[%c6, %c0_8] : memref<20x512xf32, #tpu.memory_space<vmem>>, vector<1x512xf32>
    %c497_i32 = arith.constant 497 : i32
    %25 = tpu.dynamic_rotate %0 by %c497_i32 dim 1 : vector<8x512xf32>, i32 -> vector<8x512xf32>
    %26 = vector.broadcast %24 : vector<1x512xf32> to vector<8x512xf32>
    %27 = arith.mulf %26, %25 : vector<8x512xf32>
    %c7 = arith.constant 7 : index
    %c0_9 = arith.constant 0 : index
    %28 = vector.load %arg4[%c7, %c0_9] : memref<20x512xf32, #tpu.memory_space<vmem>>, vector<1x512xf32>
    %c496_i32 = arith.constant 496 : i32
    %29 = tpu.dynamic_rotate %0 by %c496_i32 dim 1 : vector<8x512xf32>, i32 -> vector<8x512xf32>
    %30 = vector.broadcast %28 : vector<1x512xf32> to vector<8x512xf32>
    %31 = arith.mulf %30, %29 : vector<8x512xf32>
    %c8 = arith.constant 8 : index
    %c0_10 = arith.constant 0 : index
    %32 = vector.load %arg4[%c8, %c0_10] : memref<20x512xf32, #tpu.memory_space<vmem>>, vector<1x512xf32>
    %c495_i32 = arith.constant 495 : i32
    %33 = tpu.dynamic_rotate %0 by %c495_i32 dim 1 : vector<8x512xf32>, i32 -> vector<8x512xf32>
    %34 = vector.broadcast %32 : vector<1x512xf32> to vector<8x512xf32>
    %35 = arith.mulf %34, %33 : vector<8x512xf32>
    %36 = tpu.concatenate %4, %8, %12, %16, %19, %23, %27, %31, %35 in 0 : vector<8x512xf32>, vector<8x512xf32>, vector<8x512xf32>, vector<8x512xf32>, vector<8x512xf32>, vector<8x512xf32>, vector<8x512xf32>, vector<8x512xf32>, vector<8x512xf32> -> vector<72x512xf32>
    %c0_11 = arith.constant 0 : index
    %c0_12 = arith.constant 0 : index
    %37 = vector.load %arg2[%c0_11, %c0_12] : memref<168x72xf32, #tpu.memory_space<vmem>>, vector<8x72xf32>
    %cst = arith.constant dense<0.000000e+00> : vector<8x512xf32>
    %38 = tpu.matmul %37, %36, %cst {dimension_numbers = #tpu.dot_dimension_numbers<[1], [0], [0], [1], [0, 0, 1, 1], [], []>} : vector<8x72xf32>, vector<72x512xf32>, vector<8x512xf32> -> vector<8x512xf32>
    %c0_13 = arith.constant 0 : index
    %c0_14 = arith.constant 0 : index
    %39 = vector.load %arg3[%c0_13, %c0_14] : memref<120x1xf32, #tpu.memory_space<vmem>>, vector<8x1xf32>
    %40 = vector.broadcast %39 : vector<8x1xf32> to vector<8x512xf32>
    %41 = arith.addf %38, %40 : vector<8x512xf32>
    %cst_15 = arith.constant 5.000000e-01 : f32
    %42 = vector.broadcast %cst_15 : f32 to vector<8x512xf32>
    %43 = arith.mulf %42, %41 : vector<8x512xf32>
    %cst_16 = arith.constant 4.471500e-02 : f32
    %44 = vector.broadcast %cst_16 : f32 to vector<8x512xf32>
    %45 = arith.mulf %44, %41 : vector<8x512xf32>
    %46 = arith.mulf %45, %41 : vector<8x512xf32>
    %47 = arith.mulf %46, %41 : vector<8x512xf32>
    %48 = arith.addf %41, %47 : vector<8x512xf32>
    %cst_17 = arith.constant 0.797884583 : f32
    %49 = vector.broadcast %cst_17 : f32 to vector<8x512xf32>
    %50 = arith.mulf %49, %48 : vector<8x512xf32>
    %51 = math.tanh %50 : vector<8x512xf32>
    %cst_18 = arith.constant 1.000000e+00 : f32
    %52 = vector.broadcast %cst_18 : f32 to vector<8x512xf32>
    %53 = arith.addf %52, %51 : vector<8x512xf32>
    %54 = arith.mulf %43, %53 : vector<8x512xf32>
    %c8_19 = arith.constant 8 : index
    %c0_20 = arith.constant 0 : index
    %55 = vector.load %arg2[%c8_19, %c0_20] : memref<168x72xf32, #tpu.memory_space<vmem>>, vector<16x8xf32>
    %cst_21 = arith.constant dense<0.000000e+00> : vector<16x512xf32>
    %56 = tpu.matmul %55, %54, %cst_21 {dimension_numbers = #tpu.dot_dimension_numbers<[1], [0], [0], [1], [0, 0, 1, 1], [], []>} : vector<16x8xf32>, vector<8x512xf32>, vector<16x512xf32> -> vector<16x512xf32>
    %c8_22 = arith.constant 8 : index
    %c0_23 = arith.constant 0 : index
    %57 = vector.load %arg3[%c8_22, %c0_23] : memref<120x1xf32, #tpu.memory_space<vmem>>, vector<16x1xf32>
    %58 = vector.broadcast %57 : vector<16x1xf32> to vector<16x512xf32>
    %59 = arith.addf %56, %58 : vector<16x512xf32>
    %60 = vector.extract_strided_slice %59 {offsets = [0, 0], sizes = [8, 512], strides = [1, 1]} : vector<16x512xf32> to vector<8x512xf32>
    %61 = vector.extract_strided_slice %59 {offsets = [8, 0], sizes = [8, 512], strides = [1, 1]} : vector<16x512xf32> to vector<8x512xf32>
    %c24 = arith.constant 24 : index
    %c0_24 = arith.constant 0 : index
    %62 = vector.load %arg2[%c24, %c0_24] : memref<168x72xf32, #tpu.memory_space<vmem>>, vector<8x3xf32>
    %63 = vector.extract_strided_slice %62 {offsets = [0, 0], sizes = [8, 1], strides = [1, 1]} : vector<8x3xf32> to vector<8x1xf32>
    %c3_25 = arith.constant 3 : index
    %c0_26 = arith.constant 0 : index
    %64 = vector.load %arg4[%c3_25, %c0_26] : memref<20x512xf32, #tpu.memory_space<vmem>>, vector<1x512xf32>
    %c1_i32_27 = arith.constant 1 : i32
    %65 = tpu.dynamic_rotate %60 by %c1_i32_27 dim 1 : vector<8x512xf32>, i32 -> vector<8x512xf32>
    %66 = vector.broadcast %64 : vector<1x512xf32> to vector<8x512xf32>
    %67 = arith.mulf %66, %65 : vector<8x512xf32>
    %68 = vector.broadcast %63 : vector<8x1xf32> to vector<8x512xf32>
    %69 = arith.mulf %68, %67 : vector<8x512xf32>
    %70 = vector.extract_strided_slice %62 {offsets = [0, 1], sizes = [8, 1], strides = [1, 1]} : vector<8x3xf32> to vector<8x1xf32>
    %71 = vector.broadcast %70 : vector<8x1xf32> to vector<8x512xf32>
    %72 = arith.mulf %71, %60 : vector<8x512xf32>
    %73 = arith.addf %69, %72 : vector<8x512xf32>
    %74 = vector.extract_strided_slice %62 {offsets = [0, 2], sizes = [8, 1], strides = [1, 1]} : vector<8x3xf32> to vector<8x1xf32>
    %c5_28 = arith.constant 5 : index
    %c0_29 = arith.constant 0 : index
    %75 = vector.load %arg4[%c5_28, %c0_29] : memref<20x512xf32, #tpu.memory_space<vmem>>, vector<1x512xf32>
    %c511_i32_30 = arith.constant 511 : i32
    %76 = tpu.dynamic_rotate %60 by %c511_i32_30 dim 1 : vector<8x512xf32>, i32 -> vector<8x512xf32>
    %77 = vector.broadcast %75 : vector<1x512xf32> to vector<8x512xf32>
    %78 = arith.mulf %77, %76 : vector<8x512xf32>
    %79 = vector.broadcast %74 : vector<8x1xf32> to vector<8x512xf32>
    %80 = arith.mulf %79, %78 : vector<8x512xf32>
    %81 = arith.addf %73, %80 : vector<8x512xf32>
    %c24_31 = arith.constant 24 : index
    %c0_32 = arith.constant 0 : index
    %82 = vector.load %arg3[%c24_31, %c0_32] : memref<120x1xf32, #tpu.memory_space<vmem>>, vector<8x1xf32>
    %83 = vector.broadcast %82 : vector<8x1xf32> to vector<8x512xf32>
    %84 = arith.addf %81, %83 : vector<8x512xf32>
    %c32 = arith.constant 32 : index
    %c0_33 = arith.constant 0 : index
    %85 = vector.load %arg2[%c32, %c0_33] : memref<168x72xf32, #tpu.memory_space<vmem>>, vector<8x3xf32>
    %86 = vector.extract_strided_slice %85 {offsets = [0, 0], sizes = [8, 1], strides = [1, 1]} : vector<8x3xf32> to vector<8x1xf32>
    %c1_34 = arith.constant 1 : index
    %c0_35 = arith.constant 0 : index
    %87 = vector.load %arg4[%c1_34, %c0_35] : memref<20x512xf32, #tpu.memory_space<vmem>>, vector<1x512xf32>
    %c16_i32_36 = arith.constant 16 : i32
    %88 = tpu.dynamic_rotate %84 by %c16_i32_36 dim 1 : vector<8x512xf32>, i32 -> vector<8x512xf32>
    %89 = vector.broadcast %87 : vector<1x512xf32> to vector<8x512xf32>
    %90 = arith.mulf %89, %88 : vector<8x512xf32>
    %91 = vector.broadcast %86 : vector<8x1xf32> to vector<8x512xf32>
    %92 = arith.mulf %91, %90 : vector<8x512xf32>
    %93 = vector.extract_strided_slice %85 {offsets = [0, 1], sizes = [8, 1], strides = [1, 1]} : vector<8x3xf32> to vector<8x1xf32>
    %94 = vector.broadcast %93 : vector<8x1xf32> to vector<8x512xf32>
    %95 = arith.mulf %94, %84 : vector<8x512xf32>
    %96 = arith.addf %92, %95 : vector<8x512xf32>
    %97 = vector.extract_strided_slice %85 {offsets = [0, 2], sizes = [8, 1], strides = [1, 1]} : vector<8x3xf32> to vector<8x1xf32>
    %c7_37 = arith.constant 7 : index
    %c0_38 = arith.constant 0 : index
    %98 = vector.load %arg4[%c7_37, %c0_38] : memref<20x512xf32, #tpu.memory_space<vmem>>, vector<1x512xf32>
    %c496_i32_39 = arith.constant 496 : i32
    %99 = tpu.dynamic_rotate %84 by %c496_i32_39 dim 1 : vector<8x512xf32>, i32 -> vector<8x512xf32>
    %100 = vector.broadcast %98 : vector<1x512xf32> to vector<8x512xf32>
    %101 = arith.mulf %100, %99 : vector<8x512xf32>
    %102 = vector.broadcast %97 : vector<8x1xf32> to vector<8x512xf32>
    %103 = arith.mulf %102, %101 : vector<8x512xf32>
    %104 = arith.addf %96, %103 : vector<8x512xf32>
    %c32_40 = arith.constant 32 : index
    %c0_41 = arith.constant 0 : index
    %105 = vector.load %arg3[%c32_40, %c0_41] : memref<120x1xf32, #tpu.memory_space<vmem>>, vector<8x1xf32>
    %106 = vector.broadcast %105 : vector<8x1xf32> to vector<8x512xf32>
    %107 = arith.addf %104, %106 : vector<8x512xf32>
    %cst_42 = arith.constant 5.000000e-01 : f32
    %108 = vector.broadcast %cst_42 : f32 to vector<8x512xf32>
    %109 = arith.mulf %108, %107 : vector<8x512xf32>
    %cst_43 = arith.constant 4.471500e-02 : f32
    %110 = vector.broadcast %cst_43 : f32 to vector<8x512xf32>
    %111 = arith.mulf %110, %107 : vector<8x512xf32>
    %112 = arith.mulf %111, %107 : vector<8x512xf32>
    %113 = arith.mulf %112, %107 : vector<8x512xf32>
    %114 = arith.addf %107, %113 : vector<8x512xf32>
    %cst_44 = arith.constant 0.797884583 : f32
    %115 = vector.broadcast %cst_44 : f32 to vector<8x512xf32>
    %116 = arith.mulf %115, %114 : vector<8x512xf32>
    %117 = math.tanh %116 : vector<8x512xf32>
    %cst_45 = arith.constant 1.000000e+00 : f32
    %118 = vector.broadcast %cst_45 : f32 to vector<8x512xf32>
    %119 = arith.addf %118, %117 : vector<8x512xf32>
    %120 = arith.mulf %109, %119 : vector<8x512xf32>
    %c40 = arith.constant 40 : index
    %c0_46 = arith.constant 0 : index
    %121 = vector.load %arg2[%c40, %c0_46] : memref<168x72xf32, #tpu.memory_space<vmem>>, vector<8x16xf32>
    %c40_47 = arith.constant 40 : index
    %c0_48 = arith.constant 0 : index
    %122 = vector.load %arg3[%c40_47, %c0_48] : memref<120x1xf32, #tpu.memory_space<vmem>>, vector<8x1xf32>
    %123 = vector.extract_strided_slice %121 {offsets = [0, 0], sizes = [8, 1], strides = [1, 1]} : vector<8x16xf32> to vector<8x1xf32>
    %124 = vector.broadcast %123 : vector<8x1xf32> to vector<8x512xf32>
    %125 = arith.mulf %124, %61 : vector<8x512xf32>
    %126 = vector.extract_strided_slice %121 {offsets = [0, 1], sizes = [8, 1], strides = [1, 1]} : vector<8x16xf32> to vector<8x1xf32>
    %c511_i32_49 = arith.constant 511 : i32
    %127 = tpu.dynamic_rotate %61 by %c511_i32_49 dim 1 : vector<8x512xf32>, i32 -> vector<8x512xf32>
    %128 = vector.broadcast %126 : vector<8x1xf32> to vector<8x512xf32>
    %129 = arith.mulf %128, %127 : vector<8x512xf32>
    %130 = arith.addf %125, %129 : vector<8x512xf32>
    %131 = vector.extract_strided_slice %121 {offsets = [0, 2], sizes = [8, 1], strides = [1, 1]} : vector<8x16xf32> to vector<8x1xf32>
    %c510_i32 = arith.constant 510 : i32
    %132 = tpu.dynamic_rotate %61 by %c510_i32 dim 1 : vector<8x512xf32>, i32 -> vector<8x512xf32>
    %133 = vector.broadcast %131 : vector<8x1xf32> to vector<8x512xf32>
    %134 = arith.mulf %133, %132 : vector<8x512xf32>
    %135 = arith.addf %130, %134 : vector<8x512xf32>
    %136 = vector.extract_strided_slice %121 {offsets = [0, 3], sizes = [8, 1], strides = [1, 1]} : vector<8x16xf32> to vector<8x1xf32>
    %c509_i32 = arith.constant 509 : i32
    %137 = tpu.dynamic_rotate %61 by %c509_i32 dim 1 : vector<8x512xf32>, i32 -> vector<8x512xf32>
    %138 = vector.broadcast %136 : vector<8x1xf32> to vector<8x512xf32>
    %139 = arith.mulf %138, %137 : vector<8x512xf32>
    %140 = arith.addf %135, %139 : vector<8x512xf32>
    %141 = vector.extract_strided_slice %121 {offsets = [0, 4], sizes = [8, 1], strides = [1, 1]} : vector<8x16xf32> to vector<8x1xf32>
    %c496_i32_50 = arith.constant 496 : i32
    %142 = tpu.dynamic_rotate %61 by %c496_i32_50 dim 1 : vector<8x512xf32>, i32 -> vector<8x512xf32>
    %143 = vector.broadcast %141 : vector<8x1xf32> to vector<8x512xf32>
    %144 = arith.mulf %143, %142 : vector<8x512xf32>
    %145 = arith.addf %140, %144 : vector<8x512xf32>
    %146 = vector.extract_strided_slice %121 {offsets = [0, 5], sizes = [8, 1], strides = [1, 1]} : vector<8x16xf32> to vector<8x1xf32>
    %c495_i32_51 = arith.constant 495 : i32
    %147 = tpu.dynamic_rotate %61 by %c495_i32_51 dim 1 : vector<8x512xf32>, i32 -> vector<8x512xf32>
    %148 = vector.broadcast %146 : vector<8x1xf32> to vector<8x512xf32>
    %149 = arith.mulf %148, %147 : vector<8x512xf32>
    %150 = arith.addf %145, %149 : vector<8x512xf32>
    %151 = vector.extract_strided_slice %121 {offsets = [0, 6], sizes = [8, 1], strides = [1, 1]} : vector<8x16xf32> to vector<8x1xf32>
    %c494_i32 = arith.constant 494 : i32
    %152 = tpu.dynamic_rotate %61 by %c494_i32 dim 1 : vector<8x512xf32>, i32 -> vector<8x512xf32>
    %153 = vector.broadcast %151 : vector<8x1xf32> to vector<8x512xf32>
    %154 = arith.mulf %153, %152 : vector<8x512xf32>
    %155 = arith.addf %150, %154 : vector<8x512xf32>
    %156 = vector.extract_strided_slice %121 {offsets = [0, 7], sizes = [8, 1], strides = [1, 1]} : vector<8x16xf32> to vector<8x1xf32>
    %c493_i32 = arith.constant 493 : i32
    %157 = tpu.dynamic_rotate %61 by %c493_i32 dim 1 : vector<8x512xf32>, i32 -> vector<8x512xf32>
    %158 = vector.broadcast %156 : vector<8x1xf32> to vector<8x512xf32>
    %159 = arith.mulf %158, %157 : vector<8x512xf32>
    %160 = arith.addf %155, %159 : vector<8x512xf32>
    %161 = vector.extract_strided_slice %121 {offsets = [0, 8], sizes = [8, 1], strides = [1, 1]} : vector<8x16xf32> to vector<8x1xf32>
    %c480_i32 = arith.constant 480 : i32
    %162 = tpu.dynamic_rotate %61 by %c480_i32 dim 1 : vector<8x512xf32>, i32 -> vector<8x512xf32>
    %163 = vector.broadcast %161 : vector<8x1xf32> to vector<8x512xf32>
    %164 = arith.mulf %163, %162 : vector<8x512xf32>
    %165 = arith.addf %160, %164 : vector<8x512xf32>
    %166 = vector.extract_strided_slice %121 {offsets = [0, 9], sizes = [8, 1], strides = [1, 1]} : vector<8x16xf32> to vector<8x1xf32>
    %c479_i32 = arith.constant 479 : i32
    %167 = tpu.dynamic_rotate %61 by %c479_i32 dim 1 : vector<8x512xf32>, i32 -> vector<8x512xf32>
    %168 = vector.broadcast %166 : vector<8x1xf32> to vector<8x512xf32>
    %169 = arith.mulf %168, %167 : vector<8x512xf32>
    %170 = arith.addf %165, %169 : vector<8x512xf32>
    %171 = vector.extract_strided_slice %121 {offsets = [0, 10], sizes = [8, 1], strides = [1, 1]} : vector<8x16xf32> to vector<8x1xf32>
    %c478_i32 = arith.constant 478 : i32
    %172 = tpu.dynamic_rotate %61 by %c478_i32 dim 1 : vector<8x512xf32>, i32 -> vector<8x512xf32>
    %173 = vector.broadcast %171 : vector<8x1xf32> to vector<8x512xf32>
    %174 = arith.mulf %173, %172 : vector<8x512xf32>
    %175 = arith.addf %170, %174 : vector<8x512xf32>
    %176 = vector.extract_strided_slice %121 {offsets = [0, 11], sizes = [8, 1], strides = [1, 1]} : vector<8x16xf32> to vector<8x1xf32>
    %c477_i32 = arith.constant 477 : i32
    %177 = tpu.dynamic_rotate %61 by %c477_i32 dim 1 : vector<8x512xf32>, i32 -> vector<8x512xf32>
    %178 = vector.broadcast %176 : vector<8x1xf32> to vector<8x512xf32>
    %179 = arith.mulf %178, %177 : vector<8x512xf32>
    %180 = arith.addf %175, %179 : vector<8x512xf32>
    %181 = vector.extract_strided_slice %121 {offsets = [0, 12], sizes = [8, 1], strides = [1, 1]} : vector<8x16xf32> to vector<8x1xf32>
    %c464_i32 = arith.constant 464 : i32
    %182 = tpu.dynamic_rotate %61 by %c464_i32 dim 1 : vector<8x512xf32>, i32 -> vector<8x512xf32>
    %183 = vector.broadcast %181 : vector<8x1xf32> to vector<8x512xf32>
    %184 = arith.mulf %183, %182 : vector<8x512xf32>
    %185 = arith.addf %180, %184 : vector<8x512xf32>
    %186 = vector.extract_strided_slice %121 {offsets = [0, 13], sizes = [8, 1], strides = [1, 1]} : vector<8x16xf32> to vector<8x1xf32>
    %c463_i32 = arith.constant 463 : i32
    %187 = tpu.dynamic_rotate %61 by %c463_i32 dim 1 : vector<8x512xf32>, i32 -> vector<8x512xf32>
    %188 = vector.broadcast %186 : vector<8x1xf32> to vector<8x512xf32>
    %189 = arith.mulf %188, %187 : vector<8x512xf32>
    %190 = arith.addf %185, %189 : vector<8x512xf32>
    %191 = vector.extract_strided_slice %121 {offsets = [0, 14], sizes = [8, 1], strides = [1, 1]} : vector<8x16xf32> to vector<8x1xf32>
    %c462_i32 = arith.constant 462 : i32
    %192 = tpu.dynamic_rotate %61 by %c462_i32 dim 1 : vector<8x512xf32>, i32 -> vector<8x512xf32>
    %193 = vector.broadcast %191 : vector<8x1xf32> to vector<8x512xf32>
    %194 = arith.mulf %193, %192 : vector<8x512xf32>
    %195 = arith.addf %190, %194 : vector<8x512xf32>
    %196 = vector.extract_strided_slice %121 {offsets = [0, 15], sizes = [8, 1], strides = [1, 1]} : vector<8x16xf32> to vector<8x1xf32>
    %c461_i32 = arith.constant 461 : i32
    %197 = tpu.dynamic_rotate %61 by %c461_i32 dim 1 : vector<8x512xf32>, i32 -> vector<8x512xf32>
    %198 = vector.broadcast %196 : vector<8x1xf32> to vector<8x512xf32>
    %199 = arith.mulf %198, %197 : vector<8x512xf32>
    %200 = arith.addf %195, %199 : vector<8x512xf32>
    %201 = vector.broadcast %122 : vector<8x1xf32> to vector<8x512xf32>
    %202 = arith.addf %200, %201 : vector<8x512xf32>
    %cst_52 = arith.constant 5.000000e-01 : f32
    %203 = vector.broadcast %cst_52 : f32 to vector<8x512xf32>
    %204 = arith.mulf %203, %202 : vector<8x512xf32>
    %cst_53 = arith.constant 4.471500e-02 : f32
    %205 = vector.broadcast %cst_53 : f32 to vector<8x512xf32>
    %206 = arith.mulf %205, %202 : vector<8x512xf32>
    %207 = arith.mulf %206, %202 : vector<8x512xf32>
    %208 = arith.mulf %207, %202 : vector<8x512xf32>
    %209 = arith.addf %202, %208 : vector<8x512xf32>
    %cst_54 = arith.constant 0.797884583 : f32
    %210 = vector.broadcast %cst_54 : f32 to vector<8x512xf32>
    %211 = arith.mulf %210, %209 : vector<8x512xf32>
    %212 = math.tanh %211 : vector<8x512xf32>
    %cst_55 = arith.constant 1.000000e+00 : f32
    %213 = vector.broadcast %cst_55 : f32 to vector<8x512xf32>
    %214 = arith.addf %213, %212 : vector<8x512xf32>
    %215 = arith.mulf %204, %214 : vector<8x512xf32>
    %c18 = arith.constant 18 : index
    %c0_56 = arith.constant 0 : index
    %216 = vector.load %arg4[%c18, %c0_56] : memref<20x512xf32, #tpu.memory_space<vmem>>, vector<1x512xf32>
    %217 = vector.broadcast %216 : vector<1x512xf32> to vector<8x512xf32>
    %218 = arith.mulf %215, %217 : vector<8x512xf32>
    %219 = vector.extract_strided_slice %121 {offsets = [0, 0], sizes = [8, 1], strides = [1, 1]} : vector<8x16xf32> to vector<8x1xf32>
    %220 = vector.broadcast %219 : vector<8x1xf32> to vector<8x512xf32>
    %221 = arith.mulf %220, %218 : vector<8x512xf32>
    %222 = vector.extract_strided_slice %121 {offsets = [0, 1], sizes = [8, 1], strides = [1, 1]} : vector<8x16xf32> to vector<8x1xf32>
    %c508_i32 = arith.constant 508 : i32
    %223 = tpu.dynamic_rotate %218 by %c508_i32 dim 1 : vector<8x512xf32>, i32 -> vector<8x512xf32>
    %224 = vector.broadcast %222 : vector<8x1xf32> to vector<8x512xf32>
    %225 = arith.mulf %224, %223 : vector<8x512xf32>
    %226 = arith.addf %221, %225 : vector<8x512xf32>
    %227 = vector.extract_strided_slice %121 {offsets = [0, 2], sizes = [8, 1], strides = [1, 1]} : vector<8x16xf32> to vector<8x1xf32>
    %c504_i32 = arith.constant 504 : i32
    %228 = tpu.dynamic_rotate %218 by %c504_i32 dim 1 : vector<8x512xf32>, i32 -> vector<8x512xf32>
    %229 = vector.broadcast %227 : vector<8x1xf32> to vector<8x512xf32>
    %230 = arith.mulf %229, %228 : vector<8x512xf32>
    %231 = arith.addf %226, %230 : vector<8x512xf32>
    %232 = vector.extract_strided_slice %121 {offsets = [0, 3], sizes = [8, 1], strides = [1, 1]} : vector<8x16xf32> to vector<8x1xf32>
    %c500_i32 = arith.constant 500 : i32
    %233 = tpu.dynamic_rotate %218 by %c500_i32 dim 1 : vector<8x512xf32>, i32 -> vector<8x512xf32>
    %234 = vector.broadcast %232 : vector<8x1xf32> to vector<8x512xf32>
    %235 = arith.mulf %234, %233 : vector<8x512xf32>
    %236 = arith.addf %231, %235 : vector<8x512xf32>
    %237 = vector.extract_strided_slice %121 {offsets = [0, 4], sizes = [8, 1], strides = [1, 1]} : vector<8x16xf32> to vector<8x1xf32>
    %c448_i32 = arith.constant 448 : i32
    %238 = tpu.dynamic_rotate %218 by %c448_i32 dim 1 : vector<8x512xf32>, i32 -> vector<8x512xf32>
    %239 = vector.broadcast %237 : vector<8x1xf32> to vector<8x512xf32>
    %240 = arith.mulf %239, %238 : vector<8x512xf32>
    %241 = arith.addf %236, %240 : vector<8x512xf32>
    %242 = vector.extract_strided_slice %121 {offsets = [0, 5], sizes = [8, 1], strides = [1, 1]} : vector<8x16xf32> to vector<8x1xf32>
    %c444_i32 = arith.constant 444 : i32
    %243 = tpu.dynamic_rotate %218 by %c444_i32 dim 1 : vector<8x512xf32>, i32 -> vector<8x512xf32>
    %244 = vector.broadcast %242 : vector<8x1xf32> to vector<8x512xf32>
    %245 = arith.mulf %244, %243 : vector<8x512xf32>
    %246 = arith.addf %241, %245 : vector<8x512xf32>
    %247 = vector.extract_strided_slice %121 {offsets = [0, 6], sizes = [8, 1], strides = [1, 1]} : vector<8x16xf32> to vector<8x1xf32>
    %c440_i32 = arith.constant 440 : i32
    %248 = tpu.dynamic_rotate %218 by %c440_i32 dim 1 : vector<8x512xf32>, i32 -> vector<8x512xf32>
    %249 = vector.broadcast %247 : vector<8x1xf32> to vector<8x512xf32>
    %250 = arith.mulf %249, %248 : vector<8x512xf32>
    %251 = arith.addf %246, %250 : vector<8x512xf32>
    %252 = vector.extract_strided_slice %121 {offsets = [0, 7], sizes = [8, 1], strides = [1, 1]} : vector<8x16xf32> to vector<8x1xf32>
    %c436_i32 = arith.constant 436 : i32
    %253 = tpu.dynamic_rotate %218 by %c436_i32 dim 1 : vector<8x512xf32>, i32 -> vector<8x512xf32>
    %254 = vector.broadcast %252 : vector<8x1xf32> to vector<8x512xf32>
    %255 = arith.mulf %254, %253 : vector<8x512xf32>
    %256 = arith.addf %251, %255 : vector<8x512xf32>
    %257 = vector.extract_strided_slice %121 {offsets = [0, 8], sizes = [8, 1], strides = [1, 1]} : vector<8x16xf32> to vector<8x1xf32>
    %c384_i32 = arith.constant 384 : i32
    %258 = tpu.dynamic_rotate %218 by %c384_i32 dim 1 : vector<8x512xf32>, i32 -> vector<8x512xf32>
    %259 = vector.broadcast %257 : vector<8x1xf32> to vector<8x512xf32>
    %260 = arith.mulf %259, %258 : vector<8x512xf32>
    %261 = arith.addf %256, %260 : vector<8x512xf32>
    %262 = vector.extract_strided_slice %121 {offsets = [0, 9], sizes = [8, 1], strides = [1, 1]} : vector<8x16xf32> to vector<8x1xf32>
    %c380_i32 = arith.constant 380 : i32
    %263 = tpu.dynamic_rotate %218 by %c380_i32 dim 1 : vector<8x512xf32>, i32 -> vector<8x512xf32>
    %264 = vector.broadcast %262 : vector<8x1xf32> to vector<8x512xf32>
    %265 = arith.mulf %264, %263 : vector<8x512xf32>
    %266 = arith.addf %261, %265 : vector<8x512xf32>
    %267 = vector.extract_strided_slice %121 {offsets = [0, 10], sizes = [8, 1], strides = [1, 1]} : vector<8x16xf32> to vector<8x1xf32>
    %c376_i32 = arith.constant 376 : i32
    %268 = tpu.dynamic_rotate %218 by %c376_i32 dim 1 : vector<8x512xf32>, i32 -> vector<8x512xf32>
    %269 = vector.broadcast %267 : vector<8x1xf32> to vector<8x512xf32>
    %270 = arith.mulf %269, %268 : vector<8x512xf32>
    %271 = arith.addf %266, %270 : vector<8x512xf32>
    %272 = vector.extract_strided_slice %121 {offsets = [0, 11], sizes = [8, 1], strides = [1, 1]} : vector<8x16xf32> to vector<8x1xf32>
    %c372_i32 = arith.constant 372 : i32
    %273 = tpu.dynamic_rotate %218 by %c372_i32 dim 1 : vector<8x512xf32>, i32 -> vector<8x512xf32>
    %274 = vector.broadcast %272 : vector<8x1xf32> to vector<8x512xf32>
    %275 = arith.mulf %274, %273 : vector<8x512xf32>
    %276 = arith.addf %271, %275 : vector<8x512xf32>
    %277 = vector.extract_strided_slice %121 {offsets = [0, 12], sizes = [8, 1], strides = [1, 1]} : vector<8x16xf32> to vector<8x1xf32>
    %c320_i32 = arith.constant 320 : i32
    %278 = tpu.dynamic_rotate %218 by %c320_i32 dim 1 : vector<8x512xf32>, i32 -> vector<8x512xf32>
    %279 = vector.broadcast %277 : vector<8x1xf32> to vector<8x512xf32>
    %280 = arith.mulf %279, %278 : vector<8x512xf32>
    %281 = arith.addf %276, %280 : vector<8x512xf32>
    %282 = vector.extract_strided_slice %121 {offsets = [0, 13], sizes = [8, 1], strides = [1, 1]} : vector<8x16xf32> to vector<8x1xf32>
    %c316_i32 = arith.constant 316 : i32
    %283 = tpu.dynamic_rotate %218 by %c316_i32 dim 1 : vector<8x512xf32>, i32 -> vector<8x512xf32>
    %284 = vector.broadcast %282 : vector<8x1xf32> to vector<8x512xf32>
    %285 = arith.mulf %284, %283 : vector<8x512xf32>
    %286 = arith.addf %281, %285 : vector<8x512xf32>
    %287 = vector.extract_strided_slice %121 {offsets = [0, 14], sizes = [8, 1], strides = [1, 1]} : vector<8x16xf32> to vector<8x1xf32>
    %c312_i32 = arith.constant 312 : i32
    %288 = tpu.dynamic_rotate %218 by %c312_i32 dim 1 : vector<8x512xf32>, i32 -> vector<8x512xf32>
    %289 = vector.broadcast %287 : vector<8x1xf32> to vector<8x512xf32>
    %290 = arith.mulf %289, %288 : vector<8x512xf32>
    %291 = arith.addf %286, %290 : vector<8x512xf32>
    %292 = vector.extract_strided_slice %121 {offsets = [0, 15], sizes = [8, 1], strides = [1, 1]} : vector<8x16xf32> to vector<8x1xf32>
    %c308_i32 = arith.constant 308 : i32
    %293 = tpu.dynamic_rotate %218 by %c308_i32 dim 1 : vector<8x512xf32>, i32 -> vector<8x512xf32>
    %294 = vector.broadcast %292 : vector<8x1xf32> to vector<8x512xf32>
    %295 = arith.mulf %294, %293 : vector<8x512xf32>
    %296 = arith.addf %291, %295 : vector<8x512xf32>
    %297 = vector.broadcast %122 : vector<8x1xf32> to vector<8x512xf32>
    %298 = arith.addf %296, %297 : vector<8x512xf32>
    %cst_57 = arith.constant 5.000000e-01 : f32
    %299 = vector.broadcast %cst_57 : f32 to vector<8x512xf32>
    %300 = arith.mulf %299, %298 : vector<8x512xf32>
    %cst_58 = arith.constant 4.471500e-02 : f32
    %301 = vector.broadcast %cst_58 : f32 to vector<8x512xf32>
    %302 = arith.mulf %301, %298 : vector<8x512xf32>
    %303 = arith.mulf %302, %298 : vector<8x512xf32>
    %304 = arith.mulf %303, %298 : vector<8x512xf32>
    %305 = arith.addf %298, %304 : vector<8x512xf32>
    %cst_59 = arith.constant 0.797884583 : f32
    %306 = vector.broadcast %cst_59 : f32 to vector<8x512xf32>
    %307 = arith.mulf %306, %305 : vector<8x512xf32>
    %308 = math.tanh %307 : vector<8x512xf32>
    %cst_60 = arith.constant 1.000000e+00 : f32
    %309 = vector.broadcast %cst_60 : f32 to vector<8x512xf32>
    %310 = arith.addf %309, %308 : vector<8x512xf32>
    %311 = arith.mulf %300, %310 : vector<8x512xf32>
    %c19 = arith.constant 19 : index
    %c0_61 = arith.constant 0 : index
    %312 = vector.load %arg4[%c19, %c0_61] : memref<20x512xf32, #tpu.memory_space<vmem>>, vector<1x512xf32>
    %313 = vector.broadcast %312 : vector<1x512xf32> to vector<8x512xf32>
    %314 = arith.mulf %311, %313 : vector<8x512xf32>
    %c48 = arith.constant 48 : index
    %c0_62 = arith.constant 0 : index
    %315 = vector.load %arg2[%c48, %c0_62] : memref<168x72xf32, #tpu.memory_space<vmem>>, vector<8x9xf32>
    %316 = vector.extract_strided_slice %315 {offsets = [0, 0], sizes = [8, 1], strides = [1, 1]} : vector<8x9xf32> to vector<8x1xf32>
    %c9 = arith.constant 9 : index
    %c0_63 = arith.constant 0 : index
    %317 = vector.load %arg4[%c9, %c0_63] : memref<20x512xf32, #tpu.memory_space<vmem>>, vector<1x512xf32>
    %c272_i32 = arith.constant 272 : i32
    %318 = tpu.dynamic_rotate %314 by %c272_i32 dim 1 : vector<8x512xf32>, i32 -> vector<8x512xf32>
    %319 = vector.broadcast %317 : vector<1x512xf32> to vector<8x512xf32>
    %320 = arith.mulf %319, %318 : vector<8x512xf32>
    %321 = vector.broadcast %316 : vector<8x1xf32> to vector<8x512xf32>
    %322 = arith.mulf %321, %320 : vector<8x512xf32>
    %323 = vector.extract_strided_slice %315 {offsets = [0, 1], sizes = [8, 1], strides = [1, 1]} : vector<8x9xf32> to vector<8x1xf32>
    %c10 = arith.constant 10 : index
    %c0_64 = arith.constant 0 : index
    %324 = vector.load %arg4[%c10, %c0_64] : memref<20x512xf32, #tpu.memory_space<vmem>>, vector<1x512xf32>
    %c256_i32 = arith.constant 256 : i32
    %325 = tpu.dynamic_rotate %314 by %c256_i32 dim 1 : vector<8x512xf32>, i32 -> vector<8x512xf32>
    %326 = vector.broadcast %324 : vector<1x512xf32> to vector<8x512xf32>
    %327 = arith.mulf %326, %325 : vector<8x512xf32>
    %328 = vector.broadcast %323 : vector<8x1xf32> to vector<8x512xf32>
    %329 = arith.mulf %328, %327 : vector<8x512xf32>
    %330 = arith.addf %322, %329 : vector<8x512xf32>
    %331 = vector.extract_strided_slice %315 {offsets = [0, 2], sizes = [8, 1], strides = [1, 1]} : vector<8x9xf32> to vector<8x1xf32>
    %c11 = arith.constant 11 : index
    %c0_65 = arith.constant 0 : index
    %332 = vector.load %arg4[%c11, %c0_65] : memref<20x512xf32, #tpu.memory_space<vmem>>, vector<1x512xf32>
    %c240_i32 = arith.constant 240 : i32
    %333 = tpu.dynamic_rotate %314 by %c240_i32 dim 1 : vector<8x512xf32>, i32 -> vector<8x512xf32>
    %334 = vector.broadcast %332 : vector<1x512xf32> to vector<8x512xf32>
    %335 = arith.mulf %334, %333 : vector<8x512xf32>
    %336 = vector.broadcast %331 : vector<8x1xf32> to vector<8x512xf32>
    %337 = arith.mulf %336, %335 : vector<8x512xf32>
    %338 = arith.addf %330, %337 : vector<8x512xf32>
    %339 = vector.extract_strided_slice %315 {offsets = [0, 3], sizes = [8, 1], strides = [1, 1]} : vector<8x9xf32> to vector<8x1xf32>
    %c12 = arith.constant 12 : index
    %c0_66 = arith.constant 0 : index
    %340 = vector.load %arg4[%c12, %c0_66] : memref<20x512xf32, #tpu.memory_space<vmem>>, vector<1x512xf32>
    %c16_i32_67 = arith.constant 16 : i32
    %341 = tpu.dynamic_rotate %314 by %c16_i32_67 dim 1 : vector<8x512xf32>, i32 -> vector<8x512xf32>
    %342 = vector.broadcast %340 : vector<1x512xf32> to vector<8x512xf32>
    %343 = arith.mulf %342, %341 : vector<8x512xf32>
    %344 = vector.broadcast %339 : vector<8x1xf32> to vector<8x512xf32>
    %345 = arith.mulf %344, %343 : vector<8x512xf32>
    %346 = arith.addf %338, %345 : vector<8x512xf32>
    %347 = vector.extract_strided_slice %315 {offsets = [0, 4], sizes = [8, 1], strides = [1, 1]} : vector<8x9xf32> to vector<8x1xf32>
    %c13 = arith.constant 13 : index
    %c0_68 = arith.constant 0 : index
    %348 = vector.load %arg4[%c13, %c0_68] : memref<20x512xf32, #tpu.memory_space<vmem>>, vector<1x512xf32>
    %349 = vector.broadcast %348 : vector<1x512xf32> to vector<8x512xf32>
    %350 = arith.mulf %349, %314 : vector<8x512xf32>
    %351 = vector.broadcast %347 : vector<8x1xf32> to vector<8x512xf32>
    %352 = arith.mulf %351, %350 : vector<8x512xf32>
    %353 = arith.addf %346, %352 : vector<8x512xf32>
    %354 = vector.extract_strided_slice %315 {offsets = [0, 5], sizes = [8, 1], strides = [1, 1]} : vector<8x9xf32> to vector<8x1xf32>
    %c14 = arith.constant 14 : index
    %c0_69 = arith.constant 0 : index
    %355 = vector.load %arg4[%c14, %c0_69] : memref<20x512xf32, #tpu.memory_space<vmem>>, vector<1x512xf32>
    %c496_i32_70 = arith.constant 496 : i32
    %356 = tpu.dynamic_rotate %314 by %c496_i32_70 dim 1 : vector<8x512xf32>, i32 -> vector<8x512xf32>
    %357 = vector.broadcast %355 : vector<1x512xf32> to vector<8x512xf32>
    %358 = arith.mulf %357, %356 : vector<8x512xf32>
    %359 = vector.broadcast %354 : vector<8x1xf32> to vector<8x512xf32>
    %360 = arith.mulf %359, %358 : vector<8x512xf32>
    %361 = arith.addf %353, %360 : vector<8x512xf32>
    %362 = vector.extract_strided_slice %315 {offsets = [0, 6], sizes = [8, 1], strides = [1, 1]} : vector<8x9xf32> to vector<8x1xf32>
    %c15 = arith.constant 15 : index
    %c0_71 = arith.constant 0 : index
    %363 = vector.load %arg4[%c15, %c0_71] : memref<20x512xf32, #tpu.memory_space<vmem>>, vector<1x512xf32>
    %c272_i32_72 = arith.constant 272 : i32
    %364 = tpu.dynamic_rotate %314 by %c272_i32_72 dim 1 : vector<8x512xf32>, i32 -> vector<8x512xf32>
    %365 = vector.broadcast %363 : vector<1x512xf32> to vector<8x512xf32>
    %366 = arith.mulf %365, %364 : vector<8x512xf32>
    %367 = vector.broadcast %362 : vector<8x1xf32> to vector<8x512xf32>
    %368 = arith.mulf %367, %366 : vector<8x512xf32>
    %369 = arith.addf %361, %368 : vector<8x512xf32>
    %370 = vector.extract_strided_slice %315 {offsets = [0, 7], sizes = [8, 1], strides = [1, 1]} : vector<8x9xf32> to vector<8x1xf32>
    %c16 = arith.constant 16 : index
    %c0_73 = arith.constant 0 : index
    %371 = vector.load %arg4[%c16, %c0_73] : memref<20x512xf32, #tpu.memory_space<vmem>>, vector<1x512xf32>
    %c256_i32_74 = arith.constant 256 : i32
    %372 = tpu.dynamic_rotate %314 by %c256_i32_74 dim 1 : vector<8x512xf32>, i32 -> vector<8x512xf32>
    %373 = vector.broadcast %371 : vector<1x512xf32> to vector<8x512xf32>
    %374 = arith.mulf %373, %372 : vector<8x512xf32>
    %375 = vector.broadcast %370 : vector<8x1xf32> to vector<8x512xf32>
    %376 = arith.mulf %375, %374 : vector<8x512xf32>
    %377 = arith.addf %369, %376 : vector<8x512xf32>
    %378 = vector.extract_strided_slice %315 {offsets = [0, 8], sizes = [8, 1], strides = [1, 1]} : vector<8x9xf32> to vector<8x1xf32>
    %c17 = arith.constant 17 : index
    %c0_75 = arith.constant 0 : index
    %379 = vector.load %arg4[%c17, %c0_75] : memref<20x512xf32, #tpu.memory_space<vmem>>, vector<1x512xf32>
    %c240_i32_76 = arith.constant 240 : i32
    %380 = tpu.dynamic_rotate %314 by %c240_i32_76 dim 1 : vector<8x512xf32>, i32 -> vector<8x512xf32>
    %381 = vector.broadcast %379 : vector<1x512xf32> to vector<8x512xf32>
    %382 = arith.mulf %381, %380 : vector<8x512xf32>
    %383 = vector.broadcast %378 : vector<8x1xf32> to vector<8x512xf32>
    %384 = arith.mulf %383, %382 : vector<8x512xf32>
    %385 = arith.addf %377, %384 : vector<8x512xf32>
    %c48_77 = arith.constant 48 : index
    %c0_78 = arith.constant 0 : index
    %386 = vector.load %arg3[%c48_77, %c0_78] : memref<120x1xf32, #tpu.memory_space<vmem>>, vector<8x1xf32>
    %387 = vector.broadcast %386 : vector<8x1xf32> to vector<8x512xf32>
    %388 = arith.addf %385, %387 : vector<8x512xf32>
    %c56 = arith.constant 56 : index
    %c0_79 = arith.constant 0 : index
    %389 = vector.load %arg2[%c56, %c0_79] : memref<168x72xf32, #tpu.memory_space<vmem>>, vector<8x8xf32>
    %cst_80 = arith.constant dense<0.000000e+00> : vector<8x512xf32>
    %390 = tpu.matmul %389, %388, %cst_80 {dimension_numbers = #tpu.dot_dimension_numbers<[1], [0], [0], [1], [0, 0, 1, 1], [], []>} : vector<8x8xf32>, vector<8x512xf32>, vector<8x512xf32> -> vector<8x512xf32>
    %c56_81 = arith.constant 56 : index
    %c0_82 = arith.constant 0 : index
    %391 = vector.load %arg3[%c56_81, %c0_82] : memref<120x1xf32, #tpu.memory_space<vmem>>, vector<8x1xf32>
    %392 = vector.broadcast %391 : vector<8x1xf32> to vector<8x512xf32>
    %393 = arith.addf %390, %392 : vector<8x512xf32>
    %c0_83 = arith.constant 0 : index
    %c2_84 = arith.constant 2 : index
    %394 = vector.load %arg5[%c0_83, %c2_84] : memref<512x4xf32, #tpu.memory_space<vmem>>, vector<512x2xf32>
    %cst_85 = arith.constant dense<0.000000e+00> : vector<8x2xf32>
    %395 = tpu.matmul %393, %394, %cst_85 {dimension_numbers = #tpu.dot_dimension_numbers<[1], [0], [0], [1], [0, 0, 1, 1], [], []>} : vector<8x512xf32>, vector<512x2xf32>, vector<8x2xf32> -> vector<8x2xf32>
    %c8_86 = arith.constant 8 : index
    %c0_87 = arith.constant 0 : index
    %396 = vector.load %arg6[%c8_86, %c0_87] : memref<16x512xf32, #tpu.memory_space<vmem>>, vector<2x512xf32>
    %cst_88 = arith.constant dense<0.000000e+00> : vector<8x512xf32>
    %397 = tpu.matmul %395, %396, %cst_88 {dimension_numbers = #tpu.dot_dimension_numbers<[1], [0], [0], [1], [0, 0, 1, 1], [], []>} : vector<8x2xf32>, vector<2x512xf32>, vector<8x512xf32> -> vector<8x512xf32>
    %398 = arith.addf %61, %397 : vector<8x512xf32>
    %c0_89 = arith.constant 0 : index
    %c0_90 = arith.constant 0 : index
    %399 = vector.load %arg5[%c0_89, %c0_90] : memref<512x4xf32, #tpu.memory_space<vmem>>, vector<512x2xf32>
    %cst_91 = arith.constant dense<0.000000e+00> : vector<8x2xf32>
    %400 = tpu.matmul %120, %399, %cst_91 {dimension_numbers = #tpu.dot_dimension_numbers<[1], [0], [0], [1], [0, 0, 1, 1], [], []>} : vector<8x512xf32>, vector<512x2xf32>, vector<8x2xf32> -> vector<8x2xf32>
    %c64 = arith.constant 64 : index
    %c0_92 = arith.constant 0 : index
    %401 = vector.load %arg2[%c64, %c0_92] : memref<168x72xf32, #tpu.memory_space<vmem>>, vector<3x8xf32>
    %cst_93 = arith.constant dense<0.000000e+00> : vector<3x2xf32>
    %402 = tpu.matmul %401, %400, %cst_93 {dimension_numbers = #tpu.dot_dimension_numbers<[1], [0], [0], [1], [0, 0, 1, 1], [], []>} : vector<3x8xf32>, vector<8x2xf32>, vector<3x2xf32> -> vector<3x2xf32>
    %cst_94 = arith.constant dense<0xFF800000> : vector<2xf32>
    %403 = vector.multi_reduction <maximumf>, %402, %cst_94 [0] : vector<3x2xf32> to vector<2xf32>
    %404 = vector.shape_cast %403 : vector<2xf32> to vector<1x2xf32>
    %405 = vector.broadcast %404 : vector<1x2xf32> to vector<3x2xf32>
    %406 = arith.subf %402, %405 : vector<3x2xf32>
    %407 = math.exp %406 : vector<3x2xf32>
    %cst_95 = arith.constant dense<0.000000e+00> : vector<2xf32>
    %408 = vector.multi_reduction <add>, %407, %cst_95 [0] : vector<3x2xf32> to vector<2xf32>
    %409 = vector.shape_cast %408 : vector<2xf32> to vector<1x2xf32>
    %410 = vector.broadcast %409 : vector<1x2xf32> to vector<3x2xf32>
    %411 = arith.divf %407, %410 : vector<3x2xf32>
    %false = arith.constant false
    %412 = vector.broadcast %false : i1 to vector<3x2xi1>
    %cst_96 = arith.constant dense<0xFF800000> : vector<2xf32>
    %413 = vector.multi_reduction <maximumf>, %411, %cst_96 [0] : vector<3x2xf32> to vector<2xf32>
    %414 = vector.shape_cast %413 : vector<2xf32> to vector<1x2xf32>
    %415 = vector.broadcast %414 : vector<1x2xf32> to vector<3x2xf32>
    %416 = arith.cmpf oge, %411, %415 : vector<3x2xf32>
    %417 = arith.ori %412, %416 : vector<3x2xi1>
    %cst_97 = arith.constant 0.000000e+00 : f32
    %418 = vector.broadcast %cst_97 : f32 to vector<3x2xf32>
    %419 = arith.select %417, %411, %418 : vector<3x2xi1>, vector<3x2xf32>
    %c128 = arith.constant 128 : index
    %c0_98 = arith.constant 0 : index
    %420 = vector.load %arg2[%c128, %c0_98] : memref<168x72xf32, #tpu.memory_space<vmem>>, vector<32x3xf32>
    %cst_99 = arith.constant dense<0.000000e+00> : vector<32x2xf32>
    %421 = tpu.matmul %420, %419, %cst_99 {dimension_numbers = #tpu.dot_dimension_numbers<[1], [0], [0], [1], [0, 0, 1, 1], [], []>} : vector<32x3xf32>, vector<3x2xf32>, vector<32x2xf32> -> vector<32x2xf32>
    %c0_100 = arith.constant 0 : index
    %c0_101 = arith.constant 0 : index
    %422 = vector.load %arg6[%c0_100, %c0_101] : memref<16x512xf32, #tpu.memory_space<vmem>>, vector<2x512xf32>
    %cst_102 = arith.constant dense<0.000000e+00> : vector<32x512xf32>
    %423 = tpu.matmul %421, %422, %cst_102 {dimension_numbers = #tpu.dot_dimension_numbers<[1], [0], [0], [1], [0, 0, 1, 1], [], []>} : vector<32x2xf32>, vector<2x512xf32>, vector<32x512xf32> -> vector<32x512xf32>
    %424 = tpu.concatenate %120, %398 in 0 : vector<8x512xf32>, vector<8x512xf32> -> vector<16x512xf32>
    %c72 = arith.constant 72 : index
    %c0_103 = arith.constant 0 : index
    %425 = vector.load %arg2[%c72, %c0_103] : memref<168x72xf32, #tpu.memory_space<vmem>>, vector<48x16xf32>
    %cst_104 = arith.constant dense<0.000000e+00> : vector<48x512xf32>
    %426 = tpu.matmul %425, %424, %cst_104 {dimension_numbers = #tpu.dot_dimension_numbers<[1], [0], [0], [1], [0, 0, 1, 1], [], []>} : vector<48x16xf32>, vector<16x512xf32>, vector<48x512xf32> -> vector<48x512xf32>
    %c64_105 = arith.constant 64 : index
    %c0_106 = arith.constant 0 : index
    %427 = vector.load %arg3[%c64_105, %c0_106] : memref<120x1xf32, #tpu.memory_space<vmem>>, vector<48x1xf32>
    %428 = vector.broadcast %427 : vector<48x1xf32> to vector<48x512xf32>
    %429 = arith.addf %426, %428 : vector<48x512xf32>
    %430 = vector.extract_strided_slice %429 {offsets = [0, 0], sizes = [24, 512], strides = [1, 1]} : vector<48x512xf32> to vector<24x512xf32>
    %431 = vector.extract_strided_slice %429 {offsets = [24, 0], sizes = [24, 512], strides = [1, 1]} : vector<48x512xf32> to vector<24x512xf32>
    %432 = arith.mulf %430, %431 : vector<24x512xf32>
    %433 = vector.extract_strided_slice %423 {offsets = [0, 0], sizes = [24, 512], strides = [1, 1]} : vector<32x512xf32> to vector<24x512xf32>
    %434 = arith.mulf %432, %433 : vector<24x512xf32>
    %435 = vector.extract_strided_slice %423 {offsets = [24, 0], sizes = [8, 512], strides = [1, 1]} : vector<32x512xf32> to vector<8x512xf32>
    %436 = tpu.concatenate %434, %435 in 0 : vector<24x512xf32>, vector<8x512xf32> -> vector<32x512xf32>
    %c120 = arith.constant 120 : index
    %c0_107 = arith.constant 0 : index
    %437 = vector.load %arg2[%c120, %c0_107] : memref<168x72xf32, #tpu.memory_space<vmem>>, vector<8x32xf32>
    %cst_108 = arith.constant dense<0.000000e+00> : vector<8x512xf32>
    %438 = tpu.matmul %437, %436, %cst_108 {dimension_numbers = #tpu.dot_dimension_numbers<[1], [0], [0], [1], [0, 0, 1, 1], [], []>} : vector<8x32xf32>, vector<32x512xf32>, vector<8x512xf32> -> vector<8x512xf32>
    %439 = arith.addf %120, %438 : vector<8x512xf32>
    %c160 = arith.constant 160 : index
    %c0_109 = arith.constant 0 : index
    %440 = vector.load %arg2[%c160, %c0_109] : memref<168x72xf32, #tpu.memory_space<vmem>>, vector<8x8xf32>
    %cst_110 = arith.constant dense<0.000000e+00> : vector<8x512xf32>
    %441 = tpu.matmul %440, %439, %cst_110 {dimension_numbers = #tpu.dot_dimension_numbers<[1], [0], [0], [1], [0, 0, 1, 1], [], []>} : vector<8x8xf32>, vector<8x512xf32>, vector<8x512xf32> -> vector<8x512xf32>
    %c112 = arith.constant 112 : index
    %c0_111 = arith.constant 0 : index
    %442 = vector.load %arg3[%c112, %c0_111] : memref<120x1xf32, #tpu.memory_space<vmem>>, vector<8x1xf32>
    %443 = vector.broadcast %442 : vector<8x1xf32> to vector<8x512xf32>
    %444 = arith.addf %441, %443 : vector<8x512xf32>
    %c0_112 = arith.constant 0 : index
    %c0_113 = arith.constant 0 : index
    %445 = vector.load %arg7[%c0_112, %c0_113] : memref<8x512xf32, #tpu.memory_space<vmem>>, vector<8x512xf32>
    tpu.vector_store %arg7[%c0_112, %c0_113], %444 {strides = array<i32>} : memref<8x512xf32, #tpu.memory_space<vmem>>, vector<8x512xf32>,
    return
  }
  func.func @transform_0(%arg0: i32) -> (i32, i32) {
    %c0_i32 = arith.constant 0 : i32
    %c0_i32_0 = arith.constant 0 : i32
    return %c0_i32, %arg0 : i32, i32
  }
  func.func @transform_1(%arg0: i32) -> (i32, i32) {
    %c0_i32 = arith.constant 0 : i32
    %c0_i32_0 = arith.constant 0 : i32
    %c0_i32_1 = arith.constant 0 : i32
    return %c0_i32, %c0_i32_0 : i32, i32
  }
  func.func @transform_2(%arg0: i32) -> (i32, i32) {
    %c0_i32 = arith.constant 0 : i32
    %c0_i32_0 = arith.constant 0 : i32
    %c0_i32_1 = arith.constant 0 : i32
    return %c0_i32, %c0_i32_0 : i32, i32
  }
  func.func @transform_3(%arg0: i32) -> (i32, i32) {
    %c0_i32 = arith.constant 0 : i32
    %c0_i32_0 = arith.constant 0 : i32
    %c0_i32_1 = arith.constant 0 : i32
    return %c0_i32, %c0_i32_0 : i32, i32
  }
  func.func @transform_4(%arg0: i32) -> (i32, i32) {
    %c0_i32 = arith.constant 0 : i32
    %c0_i32_0 = arith.constant 0 : i32
    %c0_i32_1 = arith.constant 0 : i32
    return %c0_i32, %c0_i32_0 : i32, i32
  }
  func.func @transform_5(%arg0: i32) -> (i32, i32) {
    %c0_i32 = arith.constant 0 : i32
    %c0_i32_0 = arith.constant 0 : i32
    %c0_i32_1 = arith.constant 0 : i32
    return %c0_i32, %c0_i32_0 : i32, i32
  }
  func.func @transform_6(%arg0: i32) -> (i32, i32) {
    %c0_i32 = arith.constant 0 : i32
    %c0_i32_0 = arith.constant 0 : i32
    return %c0_i32, %arg0 : i32, i32
  }
}

</mosaic_0001>

<llo_original>
// kernel: tpu_custom_call.1
$region0: #{tpu_custom_call.1}
  #allocation0 [shape = 'u32[]', space=smem, size = 0x4, offset = 0x4, fixed_abs, tag = 'smem constant byte address 0x4 - core index']
  #allocation1 [shape = 'u32[72,128]{1,0:T(1,128)}', space=vmem, size = 0x9000, scoped, tag = 'internal scratch']
  %s0 = inlined_call_operand.vmem [shape: f32[8,512], index: 0, kind: input, shape index: {}]
  %s1 = inlined_call_operand.vmem [shape: f32[168,72], index: 1, kind: input, shape index: {}]
  %s2 = inlined_call_operand.vmem [shape: f32[120,1], index: 2, kind: input, shape index: {}]
  %s3 = inlined_call_operand.vmem [shape: f32[20,512], index: 3, kind: input, shape index: {}]
  %s4 = inlined_call_operand.vmem [shape: f32[512,4], index: 4, kind: input, shape index: {}]
  %s5 = inlined_call_operand.vmem [shape: f32[16,512], index: 5, kind: input, shape index: {}]
  %s6 = inlined_call_operand.hbm [shape: f32[8,512], index: 6, kind: output, shape index: {}]
  %s7 = sld [smem:[#allocation0]]
  $region34: #{tpu_custom_call.1} parent=0
    _
  %s9 = ssub.s32 1, %s7
  %s10 = scalar_select 0, %s9, %s7
  $region1: #{tpu_custom_call.1} parent=0
    #allocation2 [shape = 'u8[16384]{0}', space=vmem, size = 0x4000, scoped, tag = 'output window, operand 0, single buffered']
    #allocation3 [shape = 's32[1]{0}', space=sflag, size = 0x4, scoped, tag = 'scoped memory for tpu_custom_call.1']
    %11 = vsyncpa [#allocation3], 0
    // Predicated region
    $region2: #{tpu_custom_call.1} parent=1 // pred_check
      _
    $region3: #{tpu_custom_call.1} parent=1 // pred_check_branch
      %13 = sbr.rel (0) target = $region5
    $region4: #{tpu_custom_call.1} parent=1 // pred_region
      _
    $region5: #{tpu_custom_call.1} parent=1 // pred_fallthru
      _
    // Predicated region
    $region6: #{tpu_custom_call.1} parent=1 // pred_check
      _
    $region7: #{tpu_custom_call.1} parent=1 // pred_check_branch
      %15 = sbr.rel (0) target = $region9
    $region8: #{tpu_custom_call.1} parent=1 // pred_region
      _
    $region9: #{tpu_custom_call.1} parent=1 // pred_fallthru
      _
    // Predicated region
    $region10: #{tpu_custom_call.1} parent=1 // pred_check
      _
    $region11: #{tpu_custom_call.1} parent=1 // pred_check_branch
      %17 = sbr.rel (0) target = $region13
    $region12: #{tpu_custom_call.1} parent=1 // pred_region
      _
    $region13: #{tpu_custom_call.1} parent=1 // pred_fallthru
      _
    // Predicated region
    $region14: #{tpu_custom_call.1} parent=1 // pred_check
      _
    $region15: #{tpu_custom_call.1} parent=1 // pred_check_branch
      %19 = sbr.rel (0) target = $region17
    $region16: #{tpu_custom_call.1} parent=1 // pred_region
      _
    $region17: #{tpu_custom_call.1} parent=1 // pred_fallthru
      _
    // Predicated region
    $region18: #{tpu_custom_call.1} parent=1 // pred_check
      _
    $region19: #{tpu_custom_call.1} parent=1 // pred_check_branch
      %21 = sbr.rel (0) target = $region21
    $region20: #{tpu_custom_call.1} parent=1 // pred_region
      _
    $region21: #{tpu_custom_call.1} parent=1 // pred_fallthru
      _
    // Predicated region
    $region22: #{tpu_custom_call.1} parent=1 // pred_check
      _
    $region23: #{tpu_custom_call.1} parent=1 // pred_check_branch
      %23 = sbr.rel (0) target = $region25
    $region24: #{tpu_custom_call.1} parent=1 // pred_region
      _
    $region25: #{tpu_custom_call.1} parent=1 // pred_fallthru
      _
    %v24 = vld [vmem:[%s0] sm:$0xff]
    %v25 = vld [vmem:[%s0 + $0x8] sm:$0xff]
    %v26 = vld [vmem:[%s0 + $0x10] sm:$0xff]
    %v27 = vld [vmem:[%s0 + $0x18] sm:$0xff]
    %v28 = vld [vmem:[%s3] ss:$8 sm:$0xf]
    %29 = vrot.lane.b32.xlu0 %v24, 17
    %v30 = vpop.permute.xlu0 %29
    %31 = vrot.lane.b32.xlu0 %v25, 17
    %v32 = vpop.permute.xlu0 %31
    %33 = vrot.lane.b32.xlu0 %v26, 17
    %v34 = vpop.permute.xlu0 %33
    %35 = vrot.lane.b32.xlu0 %v27, 17
    %v36 = vpop.permute.xlu0 %35
    %v37 = vlaneseq
    %v38 = vand.u32 %v37, 127
    %vm39 = vcmp.lt.s32.totalorder %v38, 17
    %v40 = vsel %vm39, %v34, %v36
    %v41 = vsel %vm39, %v32, %v34
    %v42 = vsel %vm39, %v30, %v32
    %v43 = vsel %vm39, %v36, %v30
    %v45 = vperm.slane %v28, 0
    %v46 = vperm.slane %v28, 1
    %v47 = vperm.slane %v28, 2
    %v48 = vperm.slane %v28, 3
    %v53 = vmul.f32 %v45, %v43
    %v54 = vmul.f32 %v46, %v42
    %v55 = vmul.f32 %v47, %v41
    %v56 = vmul.f32 %v48, %v40
    %s57 = scalar_lea.vmem %s3, 1
    %v58 = vld [vmem:[%s57] ss:$8 sm:$0xf]
    %59 = vrot.lane.b32.xlu0 %v24, 16
    %v60 = vpop.permute.xlu0 %59
    %61 = vrot.lane.b32.xlu0 %v25, 16
    %v62 = vpop.permute.xlu0 %61
    %63 = vrot.lane.b32.xlu0 %v26, 16
    %v64 = vpop.permute.xlu0 %63
    %65 = vrot.lane.b32.xlu0 %v27, 16
    %v66 = vpop.permute.xlu0 %65
    %vm67 = vcmp.lt.s32.totalorder %v38, 16
    %v68 = vsel %vm67, %v64, %v66
    %v69 = vsel %vm67, %v62, %v64
    %v70 = vsel %vm67, %v60, %v62
    %v71 = vsel %vm67, %v66, %v60
    %v73 = vperm.slane %v58, 0
    %v74 = vperm.slane %v58, 1
    %v75 = vperm.slane %v58, 2
    %v76 = vperm.slane %v58, 3
    %v81 = vmul.f32 %v73, %v71
    %v82 = vmul.f32 %v74, %v70
    %v83 = vmul.f32 %v75, %v69
    %v84 = vmul.f32 %v76, %v68
    %s85 = scalar_lea.vmem %s3, 2
    %v86 = vld [vmem:[%s85] ss:$8 sm:$0xf]
    %87 = vrot.lane.b32.xlu0 %v24, 15
    %v88 = vpop.permute.xlu0 %87
    %89 = vrot.lane.b32.xlu0 %v25, 15
    %v90 = vpop.permute.xlu0 %89
    %91 = vrot.lane.b32.xlu0 %v26, 15
    %v92 = vpop.permute.xlu0 %91
    %93 = vrot.lane.b32.xlu0 %v27, 15
    %v94 = vpop.permute.xlu0 %93
    %vm95 = vcmp.lt.s32.totalorder %v38, 15
    %v96 = vsel %vm95, %v92, %v94
    %v97 = vsel %vm95, %v90, %v92
    %v98 = vsel %vm95, %v88, %v90
    %v99 = vsel %vm95, %v94, %v88
    %v101 = vperm.slane %v86, 0
    %v102 = vperm.slane %v86, 1
    %v103 = vperm.slane %v86, 2
    %v104 = vperm.slane %v86, 3
    %v109 = vmul.f32 %v101, %v99
    %v110 = vmul.f32 %v102, %v98
    %v111 = vmul.f32 %v103, %v97
    %v112 = vmul.f32 %v104, %v96
    %s113 = scalar_lea.vmem %s3, 3
    %v114 = vld [vmem:[%s113] ss:$8 sm:$0xf]
    %115 = vrot.lane.b32.xlu0 %v24, 1
    %v116 = vpop.permute.xlu0 %115
    %117 = vrot.lane.b32.xlu0 %v25, 1
    %v118 = vpop.permute.xlu0 %117
    %119 = vrot.lane.b32.xlu0 %v26, 1
    %v120 = vpop.permute.xlu0 %119
    %121 = vrot.lane.b32.xlu0 %v27, 1
    %v122 = vpop.permute.xlu0 %121
    %vm123 = vcmp.lt.s32.totalorder %v38, 1
    %v124 = vsel %vm123, %v120, %v122
    %v125 = vsel %vm123, %v118, %v120
    %v126 = vsel %vm123, %v116, %v118
    %v127 = vsel %vm123, %v122, %v116
    %v129 = vperm.slane %v114, 0
    %v130 = vperm.slane %v114, 1
    %v131 = vperm.slane %v114, 2
    %v132 = vperm.slane %v114, 3
    %v137 = vmul.f32 %v129, %v127
    %v138 = vmul.f32 %v130, %v126
    %v139 = vmul.f32 %v131, %v125
    %v140 = vmul.f32 %v132, %v124
    %s141 = scalar_lea.vmem %s3, 4
    %v142 = vld [vmem:[%s141] ss:$8 sm:$0xf]
    %v144 = vperm.slane %v142, 0
    %v145 = vperm.slane %v142, 1
    %v146 = vperm.slane %v142, 2
    %v147 = vperm.slane %v142, 3
    %v152 = vmul.f32 %v144, %v24
    %v153 = vmul.f32 %v145, %v25
    %v154 = vmul.f32 %v146, %v26
    %v155 = vmul.f32 %v147, %v27
    %s156 = scalar_lea.vmem %s3, 5
    %v157 = vld [vmem:[%s156] ss:$8 sm:$0xf]
    %158 = vrot.lane.b32.xlu0 %v24, 127
    %v159 = vpop.permute.xlu0 %158
    %160 = vrot.lane.b32.xlu0 %v25, 127
    %v161 = vpop.permute.xlu0 %160
    %162 = vrot.lane.b32.xlu0 %v26, 127
    %v163 = vpop.permute.xlu0 %162
    %164 = vrot.lane.b32.xlu0 %v27, 127
    %v165 = vpop.permute.xlu0 %164
    %vm166 = vcmp.lt.s32.totalorder %v38, 127
    %v167 = vsel %vm166, %v163, %v165
    %v168 = vsel %vm166, %v161, %v163
    %v169 = vsel %vm166, %v159, %v161
    %v170 = vsel %vm166, %v165, %v159
    %v172 = vperm.slane %v157, 0
    %v173 = vperm.slane %v157, 1
    %v174 = vperm.slane %v157, 2
    %v175 = vperm.slane %v157, 3
    %v180 = vmul.f32 %v172, %v169
    %v181 = vmul.f32 %v173, %v168
    %v182 = vmul.f32 %v174, %v167
    %v183 = vmul.f32 %v175, %v170
    %s184 = scalar_lea.vmem %s3, 6
    %v185 = vld [vmem:[%s184] ss:$8 sm:$0xf]
    %186 = vrot.lane.b32.xlu0 %v24, 113
    %v187 = vpop.permute.xlu0 %186
    %188 = vrot.lane.b32.xlu0 %v25, 113
    %v189 = vpop.permute.xlu0 %188
    %190 = vrot.lane.b32.xlu0 %v26, 113
    %v191 = vpop.permute.xlu0 %190
    %192 = vrot.lane.b32.xlu0 %v27, 113
    %v193 = vpop.permute.xlu0 %192
    %vm194 = vcmp.lt.s32.totalorder %v38, 113
    %v195 = vsel %vm194, %v191, %v193
    %v196 = vsel %vm194, %v189, %v191
    %v197 = vsel %vm194, %v187, %v189
    %v198 = vsel %vm194, %v193, %v187
    %v200 = vperm.slane %v185, 0
    %v201 = vperm.slane %v185, 1
    %v202 = vperm.slane %v185, 2
    %v203 = vperm.slane %v185, 3
    %v208 = vmul.f32 %v200, %v197
    %v209 = vmul.f32 %v201, %v196
    %v210 = vmul.f32 %v202, %v195
    %v211 = vmul.f32 %v203, %v198
    %s212 = scalar_lea.vmem %s3, 7
    %v213 = vld [vmem:[%s212] ss:$8 sm:$0xf]
    %214 = vrot.lane.b32.xlu0 %v24, 112
    %v215 = vpop.permute.xlu0 %214
    %216 = vrot.lane.b32.xlu0 %v25, 112
    %v217 = vpop.permute.xlu0 %216
    %218 = vrot.lane.b32.xlu0 %v26, 112
    %v219 = vpop.permute.xlu0 %218
    %220 = vrot.lane.b32.xlu0 %v27, 112
    %v221 = vpop.permute.xlu0 %220
    %vm222 = vcmp.lt.s32.totalorder %v38, 112
    %v223 = vsel %vm222, %v219, %v221
    %v224 = vsel %vm222, %v217, %v219
    %v225 = vsel %vm222, %v215, %v217
    %v226 = vsel %vm222, %v221, %v215
    %v228 = vperm.slane %v213, 0
    %v229 = vperm.slane %v213, 1
    %v230 = vperm.slane %v213, 2
    %v231 = vperm.slane %v213, 3
    %v236 = vmul.f32 %v228, %v225
    %v237 = vmul.f32 %v229, %v224
    %v238 = vmul.f32 %v230, %v223
    %v239 = vmul.f32 %v231, %v226
    %s240 = scalar_lea.vmem %s3, 32
    %v241 = vld [vmem:[%s240] ss:$8 sm:$0xf]
    %242 = vrot.lane.b32.xlu0 %v24, 111
    %v243 = vpop.permute.xlu0 %242
    %244 = vrot.lane.b32.xlu0 %v25, 111
    %v245 = vpop.permute.xlu0 %244
    %246 = vrot.lane.b32.xlu0 %v26, 111
    %v247 = vpop.permute.xlu0 %246
    %248 = vrot.lane.b32.xlu0 %v27, 111
    %v249 = vpop.permute.xlu0 %248
    %vm250 = vcmp.lt.s32.totalorder %v38, 111
    %v251 = vsel %vm250, %v247, %v249
    %v252 = vsel %vm250, %v245, %v247
    %v253 = vsel %vm250, %v243, %v245
    %v254 = vsel %vm250, %v249, %v243
    %v256 = vperm.slane %v241, 0
    %v257 = vperm.slane %v241, 1
    %v258 = vperm.slane %v241, 2
    %v259 = vperm.slane %v241, 3
    %v264 = vmul.f32 %v256, %v253
    %v265 = vmul.f32 %v257, %v252
    %v266 = vmul.f32 %v258, %v251
    %v267 = vmul.f32 %v259, %v254
    %v268 = vld [vmem:[%s1] sm:$0xff]
    %v269 = vld [vmem:[%s2] sm:$0xff]
    %271 = vset.pattern.permute.xlu0 0
    %272 = vperm.xlu0 %271, %v269
    %v273 = vpop.permute.xlu0 %272
    %vm275 = vcmask 588800
    %v277 = vsel %vm275, %v268, 0
    %279 = vmatpush.msra.mxu0 0.0
    %280 = vmatpush.msra.mxu0 0.0
    %281 = vmatpush.msra.mxu0 0.0
    %282 = vmatpush.msra.mxu0 0.0
    %283 = vmatpush.msra.mxu0 0.0
    %284 = vmatpush.msra.mxu0 0.0
    %285 = vmatpush.msra.mxu0 0.0
    %286 = vmatpush.msra.mxu0 %v264
    %287 = vmatpush.msra.mxu0 %v236
    %288 = vmatpush.msra.mxu0 %v208
    %289 = vmatpush.msra.mxu0 %v180
    %290 = vmatpush.msra.mxu0 %v152
    %291 = vmatpush.msra.mxu0 %v137
    %292 = vmatpush.msra.mxu0 %v109
    %293 = vmatpush.msra.mxu0 %v81
    %294 = vmatpush.msra.mxu0 %v53
    %295 = vmatmul.f32.gmra.mxu0 %v277
    %v296 = vpop.f32.mrf.mxu0
    %v297 = vadd.f32 %v273, %v296
    %298 = vdwg.mxu0
    %299 = vmatpush.msra.mxu0 0.0
    %300 = vmatpush.msra.mxu0 0.0
    %301 = vmatpush.msra.mxu0 0.0
    %302 = vmatpush.msra.mxu0 0.0
    %303 = vmatpush.msra.mxu0 0.0
    %304 = vmatpush.msra.mxu0 0.0
    %305 = vmatpush.msra.mxu0 0.0
    %306 = vmatpush.msra.mxu0 %v265
    %307 = vmatpush.msra.mxu0 %v237
    %308 = vmatpush.msra.mxu0 %v209
    %309 = vmatpush.msra.mxu0 %v181
    %310 = vmatpush.msra.mxu0 %v153
    %311 = vmatpush.msra.mxu0 %v138
    %312 = vmatpush.msra.mxu0 %v110
    %313 = vmatpush.msra.mxu0 %v82
    %314 = vmatpush.msra.mxu0 %v54
    %315 = vmatmul.f32.gmra.mxu0 %v277
    %v316 = vpop.f32.mrf.mxu0
    %v317 = vadd.f32 %v273, %v316
    %318 = vdwg.mxu0
    %319 = vmatpush.msra.mxu0 0.0
    %320 = vmatpush.msra.mxu0 0.0
    %321 = vmatpush.msra.mxu0 0.0
    %322 = vmatpush.msra.mxu0 0.0
    %323 = vmatpush.msra.mxu0 0.0
    %324 = vmatpush.msra.mxu0 0.0
    %325 = vmatpush.msra.mxu0 0.0
    %326 = vmatpush.msra.mxu0 %v266
    %327 = vmatpush.msra.mxu0 %v238
    %328 = vmatpush.msra.mxu0 %v210
    %329 = vmatpush.msra.mxu0 %v182
    %330 = vmatpush.msra.mxu0 %v154
    %331 = vmatpush.msra.mxu0 %v139
    %332 = vmatpush.msra.mxu0 %v111
    %333 = vmatpush.msra.mxu0 %v83
    %334 = vmatpush.msra.mxu0 %v55
    %335 = vmatmul.f32.gmra.mxu0 %v277
    %v336 = vpop.f32.mrf.mxu0
    %v337 = vadd.f32 %v273, %v336
    %338 = vdwg.mxu0
    %339 = vmatpush.msra.mxu0 0.0
    %340 = vmatpush.msra.mxu0 0.0
    %341 = vmatpush.msra.mxu0 0.0
    %342 = vmatpush.msra.mxu0 0.0
    %343 = vmatpush.msra.mxu0 0.0
    %344 = vmatpush.msra.mxu0 0.0
    %345 = vmatpush.msra.mxu0 0.0
    %346 = vmatpush.msra.mxu0 %v267
    %347 = vmatpush.msra.mxu0 %v239
    %348 = vmatpush.msra.mxu0 %v211
    %349 = vmatpush.msra.mxu0 %v183
    %350 = vmatpush.msra.mxu0 %v155
    %351 = vmatpush.msra.mxu0 %v140
    %352 = vmatpush.msra.mxu0 %v112
    %353 = vmatpush.msra.mxu0 %v84
    %354 = vmatpush.msra.mxu0 %v56
    %355 = vmatmul.f32.gmra.mxu0 %v277
    %v356 = vpop.f32.mrf.mxu0
    %v357 = vadd.f32 %v273, %v356
    %358 = vdwg.mxu0
    %v359 = vmul.f32 %v297, 0.5
    %v360 = vmul.f32 %v317, 0.5
    %v361 = vmul.f32 %v337, 0.5
    %v362 = vmul.f32 %v357, 0.5
    %v363 = vmul.f32 %v297, 0.044715
    %v364 = vmul.f32 %v317, 0.044715
    %v365 = vmul.f32 %v337, 0.044715
    %v366 = vmul.f32 %v357, 0.044715
    %v367 = vmul.f32 %v363, %v297
    %v368 = vmul.f32 %v364, %v317
    %v369 = vmul.f32 %v365, %v337
    %v370 = vmul.f32 %v366, %v357
    %v371 = vmul.f32 %v367, %v297
    %v372 = vmul.f32 %v368, %v317
    %v373 = vmul.f32 %v369, %v337
    %v374 = vmul.f32 %v370, %v357
    %v375 = vadd.f32 %v297, %v371
    %v376 = vadd.f32 %v317, %v372
    %v377 = vadd.f32 %v337, %v373
    %v378 = vadd.f32 %v357, %v374
    %v379 = vmul.f32 %v375, 0.7978846
    %v380 = vmul.f32 %v376, 0.7978846
    %v381 = vmul.f32 %v377, 0.7978846
    %v382 = vmul.f32 %v378, 0.7978846
    %v383 = vtanh.pop %v379
    %v384 = vtanh.pop %v380
    %v385 = vtanh.pop %v381
    %v386 = vtanh.pop %v382
    %v387 = vadd.f32 %v383, 1.0
    %v388 = vadd.f32 %v384, 1.0
    %v389 = vadd.f32 %v385, 1.0
    %v390 = vadd.f32 %v386, 1.0
    %v391 = vmul.f32 %v359, %v387
    %v392 = vmul.f32 %v360, %v388
    %v393 = vmul.f32 %v361, %v389
    %v394 = vmul.f32 %v362, %v390
    %v395 = vld [vmem:[%s1 + $0x8] sm:$0xff]
    %v396 = vld [vmem:[%s1 + $0x10] sm:$0xff]
    %v397 = vld [vmem:[%s2 + $0x8] sm:$0xff]
    %v398 = vld [vmem:[%s2 + $0x10] sm:$0xff]
    %400 = vset.pattern.permute.xlu0 0
    %401 = vperm.xlu0 %400, %v397
    %v402 = vpop.permute.xlu0 %401
    %405 = vset.pattern.permute.xlu0 0
    %406 = vperm.xlu0 %405, %v398
    %v407 = vpop.permute.xlu0 %406
    %vm409 = vcmask 64512
    %v411 = vsel %vm409, %v395, 0
    %v414 = vsel %vm409, %v396, 0
    %416 = vmatpush.msra.mxu0 0.0
    %417 = vmatpush.msra.mxu0 0.0
    %418 = vmatpush.msra.mxu0 0.0
    %419 = vmatpush.msra.mxu0 0.0
    %420 = vmatpush.msra.mxu0 0.0
    %421 = vmatpush.msra.mxu0 0.0
    %422 = vmatpush.msra.mxu0 0.0
    %423 = vmatpush.msra.mxu0 0.0
    %424 = vmatpush.msra.mxu0 0.0
    %425 = vmatpush.msra.mxu0 0.0
    %426 = vmatpush.msra.mxu0 0.0
    %427 = vmatpush.msra.mxu0 0.0
    %428 = vmatpush.msra.mxu0 0.0
    %429 = vmatpush.msra.mxu0 0.0
    %430 = vmatpush.msra.mxu0 0.0
    %431 = vmatpush.msra.mxu0 %v391
    %432 = vmatmul.f32.gmra.mxu0 %v411
    %v433 = vpop.f32.mrf.mxu0
    %v434 = vadd.f32 %v402, %v433
    %435 = vmatmul.f32.gmra.mxu0 %v414
    %v436 = vpop.f32.mrf.mxu0
    %v437 = vadd.f32 %v407, %v436
    %438 = vdwg.mxu0
    %439 = vmatpush.msra.mxu0 0.0
    %440 = vmatpush.msra.mxu0 0.0
    %441 = vmatpush.msra.mxu0 0.0
    %442 = vmatpush.msra.mxu0 0.0
    %443 = vmatpush.msra.mxu0 0.0
    %444 = vmatpush.msra.mxu0 0.0
    %445 = vmatpush.msra.mxu0 0.0
    %446 = vmatpush.msra.mxu0 0.0
    %447 = vmatpush.msra.mxu0 0.0
    %448 = vmatpush.msra.mxu0 0.0
    %449 = vmatpush.msra.mxu0 0.0
    %450 = vmatpush.msra.mxu0 0.0
    %451 = vmatpush.msra.mxu0 0.0
    %452 = vmatpush.msra.mxu0 0.0
    %453 = vmatpush.msra.mxu0 0.0
    %454 = vmatpush.msra.mxu0 %v392
    %455 = vmatmul.f32.gmra.mxu0 %v411
    %v456 = vpop.f32.mrf.mxu0
    %v457 = vadd.f32 %v402, %v456
    %458 = vmatmul.f32.gmra.mxu0 %v414
    %v459 = vpop.f32.mrf.mxu0
    %v460 = vadd.f32 %v407, %v459
    %461 = vdwg.mxu0
    %462 = vmatpush.msra.mxu0 0.0
    %463 = vmatpush.msra.mxu0 0.0
    %464 = vmatpush.msra.mxu0 0.0
    %465 = vmatpush.msra.mxu0 0.0
    %466 = vmatpush.msra.mxu0 0.0
    %467 = vmatpush.msra.mxu0 0.0
    %468 = vmatpush.msra.mxu0 0.0
    %469 = vmatpush.msra.mxu0 0.0
    %470 = vmatpush.msra.mxu0 0.0
    %471 = vmatpush.msra.mxu0 0.0
    %472 = vmatpush.msra.mxu0 0.0
    %473 = vmatpush.msra.mxu0 0.0
    %474 = vmatpush.msra.mxu0 0.0
    %475 = vmatpush.msra.mxu0 0.0
    %476 = vmatpush.msra.mxu0 0.0
    %477 = vmatpush.msra.mxu0 %v393
    %478 = vmatmul.f32.gmra.mxu0 %v411
    %v479 = vpop.f32.mrf.mxu0
    %v480 = vadd.f32 %v402, %v479
    %481 = vmatmul.f32.gmra.mxu0 %v414
    %v482 = vpop.f32.mrf.mxu0
    %v483 = vadd.f32 %v407, %v482
    %484 = vdwg.mxu0
    %485 = vmatpush.msra.mxu0 0.0
    %486 = vmatpush.msra.mxu0 0.0
    %487 = vmatpush.msra.mxu0 0.0
    %488 = vmatpush.msra.mxu0 0.0
    %489 = vmatpush.msra.mxu0 0.0
    %490 = vmatpush.msra.mxu0 0.0
    %491 = vmatpush.msra.mxu0 0.0
    %492 = vmatpush.msra.mxu0 0.0
    %493 = vmatpush.msra.mxu0 0.0
    %494 = vmatpush.msra.mxu0 0.0
    %495 = vmatpush.msra.mxu0 0.0
    %496 = vmatpush.msra.mxu0 0.0
    %497 = vmatpush.msra.mxu0 0.0
    %498 = vmatpush.msra.mxu0 0.0
    %499 = vmatpush.msra.mxu0 0.0
    %500 = vmatpush.msra.mxu0 %v394
    %501 = vmatmul.f32.gmra.mxu0 %v411
    %v502 = vpop.f32.mrf.mxu0
    %v503 = vadd.f32 %v402, %v502
    %504 = vmatmul.f32.gmra.mxu0 %v414
    %v505 = vpop.f32.mrf.mxu0
    %v506 = vadd.f32 %v407, %v505
    %507 = vdwg.mxu0
    %v508 = vld [vmem:[%s1 + $0x18] sm:$0xff]
    %509 = vrot.lane.b32.xlu0 %v434, 1
    %v510 = vpop.permute.xlu0 %509
    %511 = vrot.lane.b32.xlu0 %v457, 1
    %v512 = vpop.permute.xlu0 %511
    %513 = vrot.lane.b32.xlu0 %v480, 1
    %v514 = vpop.permute.xlu0 %513
    %515 = vrot.lane.b32.xlu0 %v503, 1
    %v516 = vpop.permute.xlu0 %515
    %v517 = vsel %vm123, %v514, %v516
    %v518 = vsel %vm123, %v512, %v514
    %v519 = vsel %vm123, %v510, %v512
    %v520 = vsel %vm123, %v516, %v510
    %v521 = vmul.f32 %v129, %v520
    %v522 = vmul.f32 %v130, %v519
    %v523 = vmul.f32 %v131, %v518
    %v524 = vmul.f32 %v132, %v517
    %526 = vset.pattern.permute.xlu0 0
    %527 = vperm.xlu0 %526, %v508
    %v528 = vpop.permute.xlu0 %527
    %v530 = vmul.f32 %v528, %v521
    %v531 = vmul.f32 %v528, %v522
    %v532 = vmul.f32 %v528, %v523
    %v533 = vmul.f32 %v528, %v524
    %534 = vset.pattern.permute.xlu0 1
    %535 = vperm.xlu0 %534, %v508
    %v536 = vpop.permute.xlu0 %535
    %v538 = vmul.f32 %v536, %v434
    %v539 = vmul.f32 %v536, %v457
    %v540 = vmul.f32 %v536, %v480
    %v541 = vmul.f32 %v536, %v503
    %v542 = vadd.f32 %v530, %v538
    %v543 = vadd.f32 %v531, %v539
    %v544 = vadd.f32 %v532, %v540
    %v545 = vadd.f32 %v533, %v541
    %546 = vrot.lane.b32.xlu0 %v434, 127
    %v547 = vpop.permute.xlu0 %546
    %548 = vrot.lane.b32.xlu0 %v457, 127
    %v549 = vpop.permute.xlu0 %548
    %550 = vrot.lane.b32.xlu0 %v480, 127
    %v551 = vpop.permute.xlu0 %550
    %552 = vrot.lane.b32.xlu0 %v503, 127
    %v553 = vpop.permute.xlu0 %552
    %v554 = vsel %vm166, %v551, %v553
    %v555 = vsel %vm166, %v549, %v551
    %v556 = vsel %vm166, %v547, %v549
    %v557 = vsel %vm166, %v553, %v547
    %v558 = vmul.f32 %v172, %v556
    %v559 = vmul.f32 %v173, %v555
    %v560 = vmul.f32 %v174, %v554
    %v561 = vmul.f32 %v175, %v557
    %562 = vset.pattern.permute.xlu0 2
    %563 = vperm.xlu0 %562, %v508
    %v564 = vpop.permute.xlu0 %563
    %v566 = vmul.f32 %v564, %v558
    %v567 = vmul.f32 %v564, %v559
    %v568 = vmul.f32 %v564, %v560
    %v569 = vmul.f32 %v564, %v561
    %v570 = vadd.f32 %v542, %v566
    %v571 = vadd.f32 %v543, %v567
    %v572 = vadd.f32 %v544, %v568
    %v573 = vadd.f32 %v545, %v569
    %v574 = vld [vmem:[%s2 + $0x18] sm:$0xff]
    %576 = vset.pattern.permute.xlu0 0
    %577 = vperm.xlu0 %576, %v574
    %v578 = vpop.permute.xlu0 %577
    %v580 = vadd.f32 %v570, %v578
    %v581 = vadd.f32 %v571, %v578
    %v582 = vadd.f32 %v572, %v578
    %v583 = vadd.f32 %v573, %v578
    %v584 = vld [vmem:[%s1 + $0x20] sm:$0xff]
    %585 = vrot.lane.b32.xlu0 %v580, 16
    %v586 = vpop.permute.xlu0 %585
    %587 = vrot.lane.b32.xlu0 %v581, 16
    %v588 = vpop.permute.xlu0 %587
    %589 = vrot.lane.b32.xlu0 %v582, 16
    %v590 = vpop.permute.xlu0 %589
    %591 = vrot.lane.b32.xlu0 %v583, 16
    %v592 = vpop.permute.xlu0 %591
    %v593 = vsel %vm67, %v590, %v592
    %v594 = vsel %vm67, %v588, %v590
    %v595 = vsel %vm67, %v586, %v588
    %v596 = vsel %vm67, %v592, %v586
    %v597 = vmul.f32 %v73, %v596
    %v598 = vmul.f32 %v74, %v595
    %v599 = vmul.f32 %v75, %v594
    %v600 = vmul.f32 %v76, %v593
    %602 = vset.pattern.permute.xlu0 0
    %603 = vperm.xlu0 %602, %v584
    %v604 = vpop.permute.xlu0 %603
    %v606 = vmul.f32 %v604, %v597
    %v607 = vmul.f32 %v604, %v598
    %v608 = vmul.f32 %v604, %v599
    %v609 = vmul.f32 %v604, %v600
    %610 = vset.pattern.permute.xlu0 1
    %611 = vperm.xlu0 %610, %v584
    %v612 = vpop.permute.xlu0 %611
    %v614 = vmul.f32 %v612, %v580
    %v615 = vmul.f32 %v612, %v581
    %v616 = vmul.f32 %v612, %v582
    %v617 = vmul.f32 %v612, %v583
    %v618 = vadd.f32 %v606, %v614
    %v619 = vadd.f32 %v607, %v615
    %v620 = vadd.f32 %v608, %v616
    %v621 = vadd.f32 %v609, %v617
    %622 = vrot.lane.b32.xlu0 %v580, 112
    %v623 = vpop.permute.xlu0 %622
    %624 = vrot.lane.b32.xlu0 %v581, 112
    %v625 = vpop.permute.xlu0 %624
    %626 = vrot.lane.b32.xlu0 %v582, 112
    %v627 = vpop.permute.xlu0 %626
    %628 = vrot.lane.b32.xlu0 %v583, 112
    %v629 = vpop.permute.xlu0 %628
    %v630 = vsel %vm222, %v627, %v629
    %v631 = vsel %vm222, %v625, %v627
    %v632 = vsel %vm222, %v623, %v625
    %v633 = vsel %vm222, %v629, %v623
    %v634 = vmul.f32 %v228, %v632
    %v635 = vmul.f32 %v229, %v631
    %v636 = vmul.f32 %v230, %v630
    %v637 = vmul.f32 %v231, %v633
    %638 = vset.pattern.permute.xlu0 2
    %639 = vperm.xlu0 %638, %v584
    %v640 = vpop.permute.xlu0 %639
    %v642 = vmul.f32 %v640, %v634
    %v643 = vmul.f32 %v640, %v635
    %v644 = vmul.f32 %v640, %v636
    %v645 = vmul.f32 %v640, %v637
    %v646 = vadd.f32 %v618, %v642
    %v647 = vadd.f32 %v619, %v643
    %v648 = vadd.f32 %v620, %v644
    %v649 = vadd.f32 %v621, %v645
    %v650 = vld [vmem:[%s2 + $0x20] sm:$0xff]
    %652 = vset.pattern.permute.xlu0 0
    %653 = vperm.xlu0 %652, %v650
    %v654 = vpop.permute.xlu0 %653
    %v656 = vadd.f32 %v646, %v654
    %v657 = vadd.f32 %v647, %v654
    %v658 = vadd.f32 %v648, %v654
    %v659 = vadd.f32 %v649, %v654
    %v660 = vmul.f32 %v656, 0.5
    %v661 = vmul.f32 %v657, 0.5
    %v662 = vmul.f32 %v658, 0.5
    %v663 = vmul.f32 %v659, 0.5
    %v664 = vmul.f32 %v656, 0.044715
    %v665 = vmul.f32 %v657, 0.044715
    %v666 = vmul.f32 %v658, 0.044715
    %v667 = vmul.f32 %v659, 0.044715
    %v668 = vmul.f32 %v664, %v656
    %v669 = vmul.f32 %v665, %v657
    %v670 = vmul.f32 %v666, %v658
    %v671 = vmul.f32 %v667, %v659
    %v672 = vmul.f32 %v668, %v656
    %v673 = vmul.f32 %v669, %v657
    %v674 = vmul.f32 %v670, %v658
    %v675 = vmul.f32 %v671, %v659
    %v676 = vadd.f32 %v656, %v672
    %v677 = vadd.f32 %v657, %v673
    %v678 = vadd.f32 %v658, %v674
    %v679 = vadd.f32 %v659, %v675
    %v680 = vmul.f32 %v676, 0.7978846
    %v681 = vmul.f32 %v677, 0.7978846
    %v682 = vmul.f32 %v678, 0.7978846
    %v683 = vmul.f32 %v679, 0.7978846
    %v684 = vtanh.pop %v680
    %v685 = vtanh.pop %v681
    %v686 = vtanh.pop %v682
    %v687 = vtanh.pop %v683
    %v688 = vadd.f32 %v684, 1.0
    %v689 = vadd.f32 %v685, 1.0
    %v690 = vadd.f32 %v686, 1.0
    %v691 = vadd.f32 %v687, 1.0
    %v692 = vmul.f32 %v660, %v688
    %v693 = vmul.f32 %v661, %v689
    %v694 = vmul.f32 %v662, %v690
    %v695 = vmul.f32 %v663, %v691
    %v696 = vld [vmem:[%s1 + $0x28] sm:$0xff]
    %v697 = vld [vmem:[%s2 + $0x28] sm:$0xff]
    %699 = vset.pattern.permute.xlu0 0
    %700 = vperm.xlu0 %699, %v696
    %v701 = vpop.permute.xlu0 %700
    %v703 = vmul.f32 %v701, %v437
    %v704 = vmul.f32 %v701, %v460
    %v705 = vmul.f32 %v701, %v483
    %v706 = vmul.f32 %v701, %v506
    %707 = vrot.lane.b32.xlu0 %v437, 127
    %v708 = vpop.permute.xlu0 %707
    %709 = vrot.lane.b32.xlu0 %v460, 127
    %v710 = vpop.permute.xlu0 %709
    %711 = vrot.lane.b32.xlu0 %v483, 127
    %v712 = vpop.permute.xlu0 %711
    %713 = vrot.lane.b32.xlu0 %v506, 127
    %v714 = vpop.permute.xlu0 %713
    %v715 = vsel %vm166, %v712, %v714
    %v716 = vsel %vm166, %v710, %v712
    %v717 = vsel %vm166, %v708, %v710
    %v718 = vsel %vm166, %v714, %v708
    %719 = vset.pattern.permute.xlu0 1
    %720 = vperm.xlu0 %719, %v696
    %v721 = vpop.permute.xlu0 %720
    %v723 = vmul.f32 %v721, %v717
    %v724 = vmul.f32 %v721, %v716
    %v725 = vmul.f32 %v721, %v715
    %v726 = vmul.f32 %v721, %v718
    %v727 = vadd.f32 %v703, %v723
    %v728 = vadd.f32 %v704, %v724
    %v729 = vadd.f32 %v705, %v725
    %v730 = vadd.f32 %v706, %v726
    %731 = vrot.lane.b32.xlu0 %v437, 126
    %v732 = vpop.permute.xlu0 %731
    %733 = vrot.lane.b32.xlu0 %v460, 126
    %v734 = vpop.permute.xlu0 %733
    %735 = vrot.lane.b32.xlu0 %v483, 126
    %v736 = vpop.permute.xlu0 %735
    %737 = vrot.lane.b32.xlu0 %v506, 126
    %v738 = vpop.permute.xlu0 %737
    %vm739 = vcmp.lt.s32.totalorder %v38, 126
    %v740 = vsel %vm739, %v736, %v738
    %v741 = vsel %vm739, %v734, %v736
    %v742 = vsel %vm739, %v732, %v734
    %v743 = vsel %vm739, %v738, %v732
    %744 = vset.pattern.permute.xlu0 2
    %745 = vperm.xlu0 %744, %v696
    %v746 = vpop.permute.xlu0 %745
    %v748 = vmul.f32 %v746, %v742
    %v749 = vmul.f32 %v746, %v741
    %v750 = vmul.f32 %v746, %v740
    %v751 = vmul.f32 %v746, %v743
    %v752 = vadd.f32 %v727, %v748
    %v753 = vadd.f32 %v728, %v749
    %v754 = vadd.f32 %v729, %v750
    %v755 = vadd.f32 %v730, %v751
    %756 = vrot.lane.b32.xlu0 %v437, 125
    %v757 = vpop.permute.xlu0 %756
    %758 = vrot.lane.b32.xlu0 %v460, 125
    %v759 = vpop.permute.xlu0 %758
    %760 = vrot.lane.b32.xlu0 %v483, 125
    %v761 = vpop.permute.xlu0 %760
    %762 = vrot.lane.b32.xlu0 %v506, 125
    %v763 = vpop.permute.xlu0 %762
    %vm764 = vcmp.lt.s32.totalorder %v38, 125
    %v765 = vsel %vm764, %v761, %v763
    %v766 = vsel %vm764, %v759, %v761
    %v767 = vsel %vm764, %v757, %v759
    %v768 = vsel %vm764, %v763, %v757
    %769 = vset.pattern.permute.xlu0 3
    %770 = vperm.xlu0 %769, %v696
    %v771 = vpop.permute.xlu0 %770
    %v773 = vmul.f32 %v771, %v767
    %v774 = vmul.f32 %v771, %v766
    %v775 = vmul.f32 %v771, %v765
    %v776 = vmul.f32 %v771, %v768
    %v777 = vadd.f32 %v752, %v773
    %v778 = vadd.f32 %v753, %v774
    %v779 = vadd.f32 %v754, %v775
    %v780 = vadd.f32 %v755, %v776
    %781 = vrot.lane.b32.xlu0 %v437, 112
    %v782 = vpop.permute.xlu0 %781
    %783 = vrot.lane.b32.xlu0 %v460, 112
    %v784 = vpop.permute.xlu0 %783
    %785 = vrot.lane.b32.xlu0 %v483, 112
    %v786 = vpop.permute.xlu0 %785
    %787 = vrot.lane.b32.xlu0 %v506, 112
    %v788 = vpop.permute.xlu0 %787
    %v789 = vsel %vm222, %v786, %v788
    %v790 = vsel %vm222, %v784, %v786
    %v791 = vsel %vm222, %v782, %v784
    %v792 = vsel %vm222, %v788, %v782
    %793 = vset.pattern.permute.xlu0 4
    %794 = vperm.xlu0 %793, %v696
    %v795 = vpop.permute.xlu0 %794
    %v797 = vmul.f32 %v795, %v791
    %v798 = vmul.f32 %v795, %v790
    %v799 = vmul.f32 %v795, %v789
    %v800 = vmul.f32 %v795, %v792
    %v801 = vadd.f32 %v777, %v797
    %v802 = vadd.f32 %v778, %v798
    %v803 = vadd.f32 %v779, %v799
    %v804 = vadd.f32 %v780, %v800
    %805 = vrot.lane.b32.xlu0 %v437, 111
    %v806 = vpop.permute.xlu0 %805
    %807 = vrot.lane.b32.xlu0 %v460, 111
    %v808 = vpop.permute.xlu0 %807
    %809 = vrot.lane.b32.xlu0 %v483, 111
    %v810 = vpop.permute.xlu0 %809
    %811 = vrot.lane.b32.xlu0 %v506, 111
    %v812 = vpop.permute.xlu0 %811
    %v813 = vsel %vm250, %v810, %v812
    %v814 = vsel %vm250, %v808, %v810
    %v815 = vsel %vm250, %v806, %v808
    %v816 = vsel %vm250, %v812, %v806
    %817 = vset.pattern.permute.xlu0 5
    %818 = vperm.xlu0 %817, %v696
    %v819 = vpop.permute.xlu0 %818
    %v821 = vmul.f32 %v819, %v815
    %v822 = vmul.f32 %v819, %v814
    %v823 = vmul.f32 %v819, %v813
    %v824 = vmul.f32 %v819, %v816
    %v825 = vadd.f32 %v801, %v821
    %v826 = vadd.f32 %v802, %v822
    %v827 = vadd.f32 %v803, %v823
    %v828 = vadd.f32 %v804, %v824
    %829 = vrot.lane.b32.xlu0 %v437, 110
    %v830 = vpop.permute.xlu0 %829
    %831 = vrot.lane.b32.xlu0 %v460, 110
    %v832 = vpop.permute.xlu0 %831
    %833 = vrot.lane.b32.xlu0 %v483, 110
    %v834 = vpop.permute.xlu0 %833
    %835 = vrot.lane.b32.xlu0 %v506, 110
    %v836 = vpop.permute.xlu0 %835
    %vm837 = vcmp.lt.s32.totalorder %v38, 110
    %v838 = vsel %vm837, %v834, %v836
    %v839 = vsel %vm837, %v832, %v834
    %v840 = vsel %vm837, %v830, %v832
    %v841 = vsel %vm837, %v836, %v830
    %842 = vset.pattern.permute.xlu0 6
    %843 = vperm.xlu0 %842, %v696
    %v844 = vpop.permute.xlu0 %843
    %v846 = vmul.f32 %v844, %v840
    %v847 = vmul.f32 %v844, %v839
    %v848 = vmul.f32 %v844, %v838
    %v849 = vmul.f32 %v844, %v841
    %v850 = vadd.f32 %v825, %v846
    %v851 = vadd.f32 %v826, %v847
    %v852 = vadd.f32 %v827, %v848
    %v853 = vadd.f32 %v828, %v849
    %854 = vrot.lane.b32.xlu0 %v437, 109
    %v855 = vpop.permute.xlu0 %854
    %856 = vrot.lane.b32.xlu0 %v460, 109
    %v857 = vpop.permute.xlu0 %856
    %858 = vrot.lane.b32.xlu0 %v483, 109
    %v859 = vpop.permute.xlu0 %858
    %860 = vrot.lane.b32.xlu0 %v506, 109
    %v861 = vpop.permute.xlu0 %860
    %vm862 = vcmp.lt.s32.totalorder %v38, 109
    %v863 = vsel %vm862, %v859, %v861
    %v864 = vsel %vm862, %v857, %v859
    %v865 = vsel %vm862, %v855, %v857
    %v866 = vsel %vm862, %v861, %v855
    %867 = vset.pattern.permute.xlu0 7
    %868 = vperm.xlu0 %867, %v696
    %v869 = vpop.permute.xlu0 %868
    %v871 = vmul.f32 %v869, %v865
    %v872 = vmul.f32 %v869, %v864
    %v873 = vmul.f32 %v869, %v863
    %v874 = vmul.f32 %v869, %v866
    %v875 = vadd.f32 %v850, %v871
    %v876 = vadd.f32 %v851, %v872
    %v877 = vadd.f32 %v852, %v873
    %v878 = vadd.f32 %v853, %v874
    %879 = vrot.lane.b32.xlu0 %v437, 96
    %v880 = vpop.permute.xlu0 %879
    %881 = vrot.lane.b32.xlu0 %v460, 96
    %v882 = vpop.permute.xlu0 %881
    %883 = vrot.lane.b32.xlu0 %v483, 96
    %v884 = vpop.permute.xlu0 %883
    %885 = vrot.lane.b32.xlu0 %v506, 96
    %v886 = vpop.permute.xlu0 %885
    %vm887 = vcmp.lt.s32.totalorder %v38, 96
    %v888 = vsel %vm887, %v884, %v886
    %v889 = vsel %vm887, %v882, %v884
    %v890 = vsel %vm887, %v880, %v882
    %v891 = vsel %vm887, %v886, %v880
    %892 = vset.pattern.permute.xlu0 8
    %893 = vperm.xlu0 %892, %v696
    %v894 = vpop.permute.xlu0 %893
    %v896 = vmul.f32 %v894, %v890
    %v897 = vmul.f32 %v894, %v889
    %v898 = vmul.f32 %v894, %v888
    %v899 = vmul.f32 %v894, %v891
    %v900 = vadd.f32 %v875, %v896
    %v901 = vadd.f32 %v876, %v897
    %v902 = vadd.f32 %v877, %v898
    %v903 = vadd.f32 %v878, %v899
    %904 = vrot.lane.b32.xlu0 %v437, 95
    %v905 = vpop.permute.xlu0 %904
    %906 = vrot.lane.b32.xlu0 %v460, 95
    %v907 = vpop.permute.xlu0 %906
    %908 = vrot.lane.b32.xlu0 %v483, 95
    %v909 = vpop.permute.xlu0 %908
    %910 = vrot.lane.b32.xlu0 %v506, 95
    %v911 = vpop.permute.xlu0 %910
    %vm912 = vcmp.lt.s32.totalorder %v38, 95
    %v913 = vsel %vm912, %v909, %v911
    %v914 = vsel %vm912, %v907, %v909
    %v915 = vsel %vm912, %v905, %v907
    %v916 = vsel %vm912, %v911, %v905
    %917 = vset.pattern.permute.xlu0 9
    %918 = vperm.xlu0 %917, %v696
    %v919 = vpop.permute.xlu0 %918
    %v921 = vmul.f32 %v919, %v915
    %v922 = vmul.f32 %v919, %v914
    %v923 = vmul.f32 %v919, %v913
    %v924 = vmul.f32 %v919, %v916
    %v925 = vadd.f32 %v900, %v921
    %v926 = vadd.f32 %v901, %v922
    %v927 = vadd.f32 %v902, %v923
    %v928 = vadd.f32 %v903, %v924
    %929 = vrot.lane.b32.xlu0 %v437, 94
    %v930 = vpop.permute.xlu0 %929
    %931 = vrot.lane.b32.xlu0 %v460, 94
    %v932 = vpop.permute.xlu0 %931
    %933 = vrot.lane.b32.xlu0 %v483, 94
    %v934 = vpop.permute.xlu0 %933
    %935 = vrot.lane.b32.xlu0 %v506, 94
    %v936 = vpop.permute.xlu0 %935
    %vm937 = vcmp.lt.s32.totalorder %v38, 94
    %v938 = vsel %vm937, %v934, %v936
    %v939 = vsel %vm937, %v932, %v934
    %v940 = vsel %vm937, %v930, %v932
    %v941 = vsel %vm937, %v936, %v930
    %942 = vset.pattern.permute.xlu0 10
    %943 = vperm.xlu0 %942, %v696
    %v944 = vpop.permute.xlu0 %943
    %v946 = vmul.f32 %v944, %v940
    %v947 = vmul.f32 %v944, %v939
    %v948 = vmul.f32 %v944, %v938
    %v949 = vmul.f32 %v944, %v941
    %v950 = vadd.f32 %v925, %v946
    %v951 = vadd.f32 %v926, %v947
    %v952 = vadd.f32 %v927, %v948
    %v953 = vadd.f32 %v928, %v949
    %954 = vrot.lane.b32.xlu0 %v437, 93
    %v955 = vpop.permute.xlu0 %954
    %956 = vrot.lane.b32.xlu0 %v460, 93
    %v957 = vpop.permute.xlu0 %956
    %958 = vrot.lane.b32.xlu0 %v483, 93
    %v959 = vpop.permute.xlu0 %958
    %960 = vrot.lane.b32.xlu0 %v506, 93
    %v961 = vpop.permute.xlu0 %960
    %vm962 = vcmp.lt.s32.totalorder %v38, 93
    %v963 = vsel %vm962, %v959, %v961
    %v964 = vsel %vm962, %v957, %v959
    %v965 = vsel %vm962, %v955, %v957
    %v966 = vsel %vm962, %v961, %v955
    %967 = vset.pattern.permute.xlu0 11
    %968 = vperm.xlu0 %967, %v696
    %v969 = vpop.permute.xlu0 %968
    %v971 = vmul.f32 %v969, %v965
    %v972 = vmul.f32 %v969, %v964
    %v973 = vmul.f32 %v969, %v963
    %v974 = vmul.f32 %v969, %v966
    %v975 = vadd.f32 %v950, %v971
    %v976 = vadd.f32 %v951, %v972
    %v977 = vadd.f32 %v952, %v973
    %v978 = vadd.f32 %v953, %v974
    %979 = vrot.lane.b32.xlu0 %v437, 80
    %v980 = vpop.permute.xlu0 %979
    %981 = vrot.lane.b32.xlu0 %v460, 80
    %v982 = vpop.permute.xlu0 %981
    %983 = vrot.lane.b32.xlu0 %v483, 80
    %v984 = vpop.permute.xlu0 %983
    %985 = vrot.lane.b32.xlu0 %v506, 80
    %v986 = vpop.permute.xlu0 %985
    %vm987 = vcmp.lt.s32.totalorder %v38, 80
    %v988 = vsel %vm987, %v984, %v986
    %v989 = vsel %vm987, %v982, %v984
    %v990 = vsel %vm987, %v980, %v982
    %v991 = vsel %vm987, %v986, %v980
    %992 = vset.pattern.permute.xlu0 12
    %993 = vperm.xlu0 %992, %v696
    %v994 = vpop.permute.xlu0 %993
    %v996 = vmul.f32 %v994, %v990
    %v997 = vmul.f32 %v994, %v989
    %v998 = vmul.f32 %v994, %v988
    %v999 = vmul.f32 %v994, %v991
    %v1000 = vadd.f32 %v975, %v996
    %v1001 = vadd.f32 %v976, %v997
    %v1002 = vadd.f32 %v977, %v998
    %v1003 = vadd.f32 %v978, %v999
    %1004 = vrot.lane.b32.xlu0 %v437, 79
    %v1005 = vpop.permute.xlu0 %1004
    %1006 = vrot.lane.b32.xlu0 %v460, 79
    %v1007 = vpop.permute.xlu0 %1006
    %1008 = vrot.lane.b32.xlu0 %v483, 79
    %v1009 = vpop.permute.xlu0 %1008
    %1010 = vrot.lane.b32.xlu0 %v506, 79
    %v1011 = vpop.permute.xlu0 %1010
    %vm1012 = vcmp.lt.s32.totalorder %v38, 79
    %v1013 = vsel %vm1012, %v1009, %v1011
    %v1014 = vsel %vm1012, %v1007, %v1009
    %v1015 = vsel %vm1012, %v1005, %v1007
    %v1016 = vsel %vm1012, %v1011, %v1005
    %1017 = vset.pattern.permute.xlu0 13
    %1018 = vperm.xlu0 %1017, %v696
    %v1019 = vpop.permute.xlu0 %1018
    %v1021 = vmul.f32 %v1019, %v1015
    %v1022 = vmul.f32 %v1019, %v1014
    %v1023 = vmul.f32 %v1019, %v1013
    %v1024 = vmul.f32 %v1019, %v1016
    %v1025 = vadd.f32 %v1000, %v1021
    %v1026 = vadd.f32 %v1001, %v1022
    %v1027 = vadd.f32 %v1002, %v1023
    %v1028 = vadd.f32 %v1003, %v1024
    %1029 = vrot.lane.b32.xlu0 %v437, 78
    %v1030 = vpop.permute.xlu0 %1029
    %1031 = vrot.lane.b32.xlu0 %v460, 78
    %v1032 = vpop.permute.xlu0 %1031
    %1033 = vrot.lane.b32.xlu0 %v483, 78
    %v1034 = vpop.permute.xlu0 %1033
    %1035 = vrot.lane.b32.xlu0 %v506, 78
    %v1036 = vpop.permute.xlu0 %1035
    %vm1037 = vcmp.lt.s32.totalorder %v38, 78
    %v1038 = vsel %vm1037, %v1034, %v1036
    %v1039 = vsel %vm1037, %v1032, %v1034
    %v1040 = vsel %vm1037, %v1030, %v1032
    %v1041 = vsel %vm1037, %v1036, %v1030
    %1042 = vset.pattern.permute.xlu0 14
    %1043 = vperm.xlu0 %1042, %v696
    %v1044 = vpop.permute.xlu0 %1043
    %v1046 = vmul.f32 %v1044, %v1040
    %v1047 = vmul.f32 %v1044, %v1039
    %v1048 = vmul.f32 %v1044, %v1038
    %v1049 = vmul.f32 %v1044, %v1041
    %v1050 = vadd.f32 %v1025, %v1046
    %v1051 = vadd.f32 %v1026, %v1047
    %v1052 = vadd.f32 %v1027, %v1048
    %v1053 = vadd.f32 %v1028, %v1049
    %1054 = vrot.lane.b32.xlu0 %v437, 77
    %v1055 = vpop.permute.xlu0 %1054
    %1056 = vrot.lane.b32.xlu0 %v460, 77
    %v1057 = vpop.permute.xlu0 %1056
    %1058 = vrot.lane.b32.xlu0 %v483, 77
    %v1059 = vpop.permute.xlu0 %1058
    %1060 = vrot.lane.b32.xlu0 %v506, 77
    %v1061 = vpop.permute.xlu0 %1060
    %vm1062 = vcmp.lt.s32.totalorder %v38, 77
    %v1063 = vsel %vm1062, %v1059, %v1061
    %v1064 = vsel %vm1062, %v1057, %v1059
    %v1065 = vsel %vm1062, %v1055, %v1057
    %v1066 = vsel %vm1062, %v1061, %v1055
    %1067 = vset.pattern.permute.xlu0 15
    %1068 = vperm.xlu0 %1067, %v696
    %v1069 = vpop.permute.xlu0 %1068
    %v1071 = vmul.f32 %v1069, %v1065
    %v1072 = vmul.f32 %v1069, %v1064
    %v1073 = vmul.f32 %v1069, %v1063
    %v1074 = vmul.f32 %v1069, %v1066
    %v1075 = vadd.f32 %v1050, %v1071
    %v1076 = vadd.f32 %v1051, %v1072
    %v1077 = vadd.f32 %v1052, %v1073
    %v1078 = vadd.f32 %v1053, %v1074
    %1080 = vset.pattern.permute.xlu0 0
    %1081 = vperm.xlu0 %1080, %v697
    %v1082 = vpop.permute.xlu0 %1081
    %v1084 = vadd.f32 %v1075, %v1082
    %v1085 = vadd.f32 %v1076, %v1082
    %v1086 = vadd.f32 %v1077, %v1082
    %v1087 = vadd.f32 %v1078, %v1082
    %v1088 = vmul.f32 %v1084, 0.5
    %v1089 = vmul.f32 %v1085, 0.5
    %v1090 = vmul.f32 %v1086, 0.5
    %v1091 = vmul.f32 %v1087, 0.5
    %v1092 = vmul.f32 %v1084, 0.044715
    %v1093 = vmul.f32 %v1085, 0.044715
    %v1094 = vmul.f32 %v1086, 0.044715
    %v1095 = vmul.f32 %v1087, 0.044715
    %v1096 = vmul.f32 %v1092, %v1084
    %v1097 = vmul.f32 %v1093, %v1085
    %v1098 = vmul.f32 %v1094, %v1086
    %v1099 = vmul.f32 %v1095, %v1087
    %v1100 = vmul.f32 %v1096, %v1084
    %v1101 = vmul.f32 %v1097, %v1085
    %v1102 = vmul.f32 %v1098, %v1086
    %v1103 = vmul.f32 %v1099, %v1087
    %v1104 = vadd.f32 %v1084, %v1100
    %v1105 = vadd.f32 %v1085, %v1101
    %v1106 = vadd.f32 %v1086, %v1102
    %v1107 = vadd.f32 %v1087, %v1103
    %v1108 = vmul.f32 %v1104, 0.7978846
    %v1109 = vmul.f32 %v1105, 0.7978846
    %v1110 = vmul.f32 %v1106, 0.7978846
    %v1111 = vmul.f32 %v1107, 0.7978846
    %v1112 = vtanh.pop %v1108
    %v1113 = vtanh.pop %v1109
    %v1114 = vtanh.pop %v1110
    %v1115 = vtanh.pop %v1111
    %v1116 = vadd.f32 %v1112, 1.0
    %v1117 = vadd.f32 %v1113, 1.0
    %v1118 = vadd.f32 %v1114, 1.0
    %v1119 = vadd.f32 %v1115, 1.0
    %v1120 = vmul.f32 %v1088, %v1116
    %v1121 = vmul.f32 %v1089, %v1117
    %v1122 = vmul.f32 %v1090, %v1118
    %v1123 = vmul.f32 %v1091, %v1119
    %s1124 = scalar_lea.vmem %s3, 66
    %v1125 = vld [vmem:[%s1124] ss:$8 sm:$0xf]
    %v1127 = vperm.slane %v1125, 0
    %v1128 = vperm.slane %v1125, 1
    %v1129 = vperm.slane %v1125, 2
    %v1130 = vperm.slane %v1125, 3
    %v1135 = vmul.f32 %v1120, %v1127
    %v1136 = vmul.f32 %v1121, %v1128
    %v1137 = vmul.f32 %v1122, %v1129
    %v1138 = vmul.f32 %v1123, %v1130
    %v1139 = vmul.f32 %v701, %v1135
    %v1140 = vmul.f32 %v701, %v1136
    %v1141 = vmul.f32 %v701, %v1137
    %v1142 = vmul.f32 %v701, %v1138
    %1143 = vrot.lane.b32.xlu0 %v1135, 124
    %v1144 = vpop.permute.xlu0 %1143
    %1145 = vrot.lane.b32.xlu0 %v1136, 124
    %v1146 = vpop.permute.xlu0 %1145
    %1147 = vrot.lane.b32.xlu0 %v1137, 124
    %v1148 = vpop.permute.xlu0 %1147
    %1149 = vrot.lane.b32.xlu0 %v1138, 124
    %v1150 = vpop.permute.xlu0 %1149
    %vm1151 = vcmp.lt.s32.totalorder %v38, 124
    %v1152 = vsel %vm1151, %v1148, %v1150
    %v1153 = vsel %vm1151, %v1146, %v1148
    %v1154 = vsel %vm1151, %v1144, %v1146
    %v1155 = vsel %vm1151, %v1150, %v1144
    %v1156 = vmul.f32 %v721, %v1154
    %v1157 = vmul.f32 %v721, %v1153
    %v1158 = vmul.f32 %v721, %v1152
    %v1159 = vmul.f32 %v721, %v1155
    %v1160 = vadd.f32 %v1139, %v1156
    %v1161 = vadd.f32 %v1140, %v1157
    %v1162 = vadd.f32 %v1141, %v1158
    %v1163 = vadd.f32 %v1142, %v1159
    %1164 = vrot.lane.b32.xlu0 %v1135, 120
    %v1165 = vpop.permute.xlu0 %1164
    %1166 = vrot.lane.b32.xlu0 %v1136, 120
    %v1167 = vpop.permute.xlu0 %1166
    %1168 = vrot.lane.b32.xlu0 %v1137, 120
    %v1169 = vpop.permute.xlu0 %1168
    %1170 = vrot.lane.b32.xlu0 %v1138, 120
    %v1171 = vpop.permute.xlu0 %1170
    %vm1172 = vcmp.lt.s32.totalorder %v38, 120
    %v1173 = vsel %vm1172, %v1169, %v1171
    %v1174 = vsel %vm1172, %v1167, %v1169
    %v1175 = vsel %vm1172, %v1165, %v1167
    %v1176 = vsel %vm1172, %v1171, %v1165
    %v1177 = vmul.f32 %v746, %v1175
    %v1178 = vmul.f32 %v746, %v1174
    %v1179 = vmul.f32 %v746, %v1173
    %v1180 = vmul.f32 %v746, %v1176
    %v1181 = vadd.f32 %v1160, %v1177
    %v1182 = vadd.f32 %v1161, %v1178
    %v1183 = vadd.f32 %v1162, %v1179
    %v1184 = vadd.f32 %v1163, %v1180
    %1185 = vrot.lane.b32.xlu0 %v1135, 116
    %v1186 = vpop.permute.xlu0 %1185
    %1187 = vrot.lane.b32.xlu0 %v1136, 116
    %v1188 = vpop.permute.xlu0 %1187
    %1189 = vrot.lane.b32.xlu0 %v1137, 116
    %v1190 = vpop.permute.xlu0 %1189
    %1191 = vrot.lane.b32.xlu0 %v1138, 116
    %v1192 = vpop.permute.xlu0 %1191
    %vm1193 = vcmp.lt.s32.totalorder %v38, 116
    %v1194 = vsel %vm1193, %v1190, %v1192
    %v1195 = vsel %vm1193, %v1188, %v1190
    %v1196 = vsel %vm1193, %v1186, %v1188
    %v1197 = vsel %vm1193, %v1192, %v1186
    %v1198 = vmul.f32 %v771, %v1196
    %v1199 = vmul.f32 %v771, %v1195
    %v1200 = vmul.f32 %v771, %v1194
    %v1201 = vmul.f32 %v771, %v1197
    %v1202 = vadd.f32 %v1181, %v1198
    %v1203 = vadd.f32 %v1182, %v1199
    %v1204 = vadd.f32 %v1183, %v1200
    %v1205 = vadd.f32 %v1184, %v1201
    %1206 = vrot.lane.b32.xlu0 %v1135, 64
    %v1207 = vpop.permute.xlu0 %1206
    %1208 = vrot.lane.b32.xlu0 %v1136, 64
    %v1209 = vpop.permute.xlu0 %1208
    %1210 = vrot.lane.b32.xlu0 %v1137, 64
    %v1211 = vpop.permute.xlu0 %1210
    %1212 = vrot.lane.b32.xlu0 %v1138, 64
    %v1213 = vpop.permute.xlu0 %1212
    %vm1214 = vcmp.lt.s32.totalorder %v38, 64
    %v1215 = vsel %vm1214, %v1211, %v1213
    %v1216 = vsel %vm1214, %v1209, %v1211
    %v1217 = vsel %vm1214, %v1207, %v1209
    %v1218 = vsel %vm1214, %v1213, %v1207
    %v1219 = vmul.f32 %v795, %v1217
    %v1220 = vmul.f32 %v795, %v1216
    %v1221 = vmul.f32 %v795, %v1215
    %v1222 = vmul.f32 %v795, %v1218
    %v1223 = vadd.f32 %v1202, %v1219
    %v1224 = vadd.f32 %v1203, %v1220
    %v1225 = vadd.f32 %v1204, %v1221
    %v1226 = vadd.f32 %v1205, %v1222
    %1227 = vrot.lane.b32.xlu0 %v1135, 60
    %v1228 = vpop.permute.xlu0 %1227
    %1229 = vrot.lane.b32.xlu0 %v1136, 60
    %v1230 = vpop.permute.xlu0 %1229
    %1231 = vrot.lane.b32.xlu0 %v1137, 60
    %v1232 = vpop.permute.xlu0 %1231
    %1233 = vrot.lane.b32.xlu0 %v1138, 60
    %v1234 = vpop.permute.xlu0 %1233
    %vm1235 = vcmp.lt.s32.totalorder %v38, 60
    %v1236 = vsel %vm1235, %v1232, %v1234
    %v1237 = vsel %vm1235, %v1230, %v1232
    %v1238 = vsel %vm1235, %v1228, %v1230
    %v1239 = vsel %vm1235, %v1234, %v1228
    %v1240 = vmul.f32 %v819, %v1238
    %v1241 = vmul.f32 %v819, %v1237
    %v1242 = vmul.f32 %v819, %v1236
    %v1243 = vmul.f32 %v819, %v1239
    %v1244 = vadd.f32 %v1223, %v1240
    %v1245 = vadd.f32 %v1224, %v1241
    %v1246 = vadd.f32 %v1225, %v1242
    %v1247 = vadd.f32 %v1226, %v1243
    %1248 = vrot.lane.b32.xlu0 %v1135, 56
    %v1249 = vpop.permute.xlu0 %1248
    %1250 = vrot.lane.b32.xlu0 %v1136, 56
    %v1251 = vpop.permute.xlu0 %1250
    %1252 = vrot.lane.b32.xlu0 %v1137, 56
    %v1253 = vpop.permute.xlu0 %1252
    %1254 = vrot.lane.b32.xlu0 %v1138, 56
    %v1255 = vpop.permute.xlu0 %1254
    %vm1256 = vcmp.lt.s32.totalorder %v38, 56
    %v1257 = vsel %vm1256, %v1253, %v1255
    %v1258 = vsel %vm1256, %v1251, %v1253
    %v1259 = vsel %vm1256, %v1249, %v1251
    %v1260 = vsel %vm1256, %v1255, %v1249
    %v1261 = vmul.f32 %v844, %v1259
    %v1262 = vmul.f32 %v844, %v1258
    %v1263 = vmul.f32 %v844, %v1257
    %v1264 = vmul.f32 %v844, %v1260
    %v1265 = vadd.f32 %v1244, %v1261
    %v1266 = vadd.f32 %v1245, %v1262
    %v1267 = vadd.f32 %v1246, %v1263
    %v1268 = vadd.f32 %v1247, %v1264
    %1269 = vrot.lane.b32.xlu0 %v1135, 52
    %v1270 = vpop.permute.xlu0 %1269
    %1271 = vrot.lane.b32.xlu0 %v1136, 52
    %v1272 = vpop.permute.xlu0 %1271
    %1273 = vrot.lane.b32.xlu0 %v1137, 52
    %v1274 = vpop.permute.xlu0 %1273
    %1275 = vrot.lane.b32.xlu0 %v1138, 52
    %v1276 = vpop.permute.xlu0 %1275
    %vm1277 = vcmp.lt.s32.totalorder %v38, 52
    %v1278 = vsel %vm1277, %v1274, %v1276
    %v1279 = vsel %vm1277, %v1272, %v1274
    %v1280 = vsel %vm1277, %v1270, %v1272
    %v1281 = vsel %vm1277, %v1276, %v1270
    %v1282 = vmul.f32 %v869, %v1280
    %v1283 = vmul.f32 %v869, %v1279
    %v1284 = vmul.f32 %v869, %v1278
    %v1285 = vmul.f32 %v869, %v1281
    %v1286 = vadd.f32 %v1265, %v1282
    %v1287 = vadd.f32 %v1266, %v1283
    %v1288 = vadd.f32 %v1267, %v1284
    %v1289 = vadd.f32 %v1268, %v1285
    %v1290 = vmul.f32 %v894, %v1136
    %v1291 = vmul.f32 %v894, %v1137
    %v1292 = vmul.f32 %v894, %v1138
    %v1293 = vmul.f32 %v894, %v1135
    %v1294 = vadd.f32 %v1286, %v1290
    %v1295 = vadd.f32 %v1287, %v1291
    %v1296 = vadd.f32 %v1288, %v1292
    %v1297 = vadd.f32 %v1289, %v1293
    %v1298 = vmul.f32 %v919, %v1153
    %v1299 = vmul.f32 %v919, %v1152
    %v1300 = vmul.f32 %v919, %v1155
    %v1301 = vmul.f32 %v919, %v1154
    %v1302 = vadd.f32 %v1294, %v1298
    %v1303 = vadd.f32 %v1295, %v1299
    %v1304 = vadd.f32 %v1296, %v1300
    %v1305 = vadd.f32 %v1297, %v1301
    %v1306 = vmul.f32 %v944, %v1174
    %v1307 = vmul.f32 %v944, %v1173
    %v1308 = vmul.f32 %v944, %v1176
    %v1309 = vmul.f32 %v944, %v1175
    %v1310 = vadd.f32 %v1302, %v1306
    %v1311 = vadd.f32 %v1303, %v1307
    %v1312 = vadd.f32 %v1304, %v1308
    %v1313 = vadd.f32 %v1305, %v1309
    %v1314 = vmul.f32 %v969, %v1195
    %v1315 = vmul.f32 %v969, %v1194
    %v1316 = vmul.f32 %v969, %v1197
    %v1317 = vmul.f32 %v969, %v1196
    %v1318 = vadd.f32 %v1310, %v1314
    %v1319 = vadd.f32 %v1311, %v1315
    %v1320 = vadd.f32 %v1312, %v1316
    %v1321 = vadd.f32 %v1313, %v1317
    %v1322 = vmul.f32 %v994, %v1216
    %v1323 = vmul.f32 %v994, %v1215
    %v1324 = vmul.f32 %v994, %v1218
    %v1325 = vmul.f32 %v994, %v1217
    %v1326 = vadd.f32 %v1318, %v1322
    %v1327 = vadd.f32 %v1319, %v1323
    %v1328 = vadd.f32 %v1320, %v1324
    %v1329 = vadd.f32 %v1321, %v1325
    %v1330 = vmul.f32 %v1019, %v1237
    %v1331 = vmul.f32 %v1019, %v1236
    %v1332 = vmul.f32 %v1019, %v1239
    %v1333 = vmul.f32 %v1019, %v1238
    %v1334 = vadd.f32 %v1326, %v1330
    %v1335 = vadd.f32 %v1327, %v1331
    %v1336 = vadd.f32 %v1328, %v1332
    %v1337 = vadd.f32 %v1329, %v1333
    %v1338 = vmul.f32 %v1044, %v1258
    %v1339 = vmul.f32 %v1044, %v1257
    %v1340 = vmul.f32 %v1044, %v1260
    %v1341 = vmul.f32 %v1044, %v1259
    %v1342 = vadd.f32 %v1334, %v1338
    %v1343 = vadd.f32 %v1335, %v1339
    %v1344 = vadd.f32 %v1336, %v1340
    %v1345 = vadd.f32 %v1337, %v1341
    %v1346 = vmul.f32 %v1069, %v1279
    %v1347 = vmul.f32 %v1069, %v1278
    %v1348 = vmul.f32 %v1069, %v1281
    %v1349 = vmul.f32 %v1069, %v1280
    %v1350 = vadd.f32 %v1342, %v1346
    %v1351 = vadd.f32 %v1343, %v1347
    %v1352 = vadd.f32 %v1344, %v1348
    %v1353 = vadd.f32 %v1345, %v1349
    %v1354 = vadd.f32 %v1350, %v1082
    %v1355 = vadd.f32 %v1351, %v1082
    %v1356 = vadd.f32 %v1352, %v1082
    %v1357 = vadd.f32 %v1353, %v1082
    %v1358 = vmul.f32 %v1354, 0.5
    %v1359 = vmul.f32 %v1355, 0.5
    %v1360 = vmul.f32 %v1356, 0.5
    %v1361 = vmul.f32 %v1357, 0.5
    %v1362 = vmul.f32 %v1354, 0.044715
    %v1363 = vmul.f32 %v1355, 0.044715
    %v1364 = vmul.f32 %v1356, 0.044715
    %v1365 = vmul.f32 %v1357, 0.044715
    %v1366 = vmul.f32 %v1362, %v1354
    %v1367 = vmul.f32 %v1363, %v1355
    %v1368 = vmul.f32 %v1364, %v1356
    %v1369 = vmul.f32 %v1365, %v1357
    %v1370 = vmul.f32 %v1366, %v1354
    %v1371 = vmul.f32 %v1367, %v1355
    %v1372 = vmul.f32 %v1368, %v1356
    %v1373 = vmul.f32 %v1369, %v1357
    %v1374 = vadd.f32 %v1354, %v1370
    %v1375 = vadd.f32 %v1355, %v1371
    %v1376 = vadd.f32 %v1356, %v1372
    %v1377 = vadd.f32 %v1357, %v1373
    %v1378 = vmul.f32 %v1374, 0.7978846
    %v1379 = vmul.f32 %v1375, 0.7978846
    %v1380 = vmul.f32 %v1376, 0.7978846
    %v1381 = vmul.f32 %v1377, 0.7978846
    %v1382 = vtanh.pop %v1378
    %v1383 = vtanh.pop %v1379
    %v1384 = vtanh.pop %v1380
    %v1385 = vtanh.pop %v1381
    %v1386 = vadd.f32 %v1382, 1.0
    %v1387 = vadd.f32 %v1383, 1.0
    %v1388 = vadd.f32 %v1384, 1.0
    %v1389 = vadd.f32 %v1385, 1.0
    %v1390 = vmul.f32 %v1358, %v1386
    %v1391 = vmul.f32 %v1359, %v1387
    %v1392 = vmul.f32 %v1360, %v1388
    %v1393 = vmul.f32 %v1361, %v1389
    %s1394 = scalar_lea.vmem %s3, 67
    %v1395 = vld [vmem:[%s1394] ss:$8 sm:$0xf]
    %v1397 = vperm.slane %v1395, 0
    %v1398 = vperm.slane %v1395, 1
    %v1399 = vperm.slane %v1395, 2
    %v1400 = vperm.slane %v1395, 3
    %v1405 = vmul.f32 %v1390, %v1397
    %v1406 = vmul.f32 %v1391, %v1398
    %v1407 = vmul.f32 %v1392, %v1399
    %v1408 = vmul.f32 %v1393, %v1400
    %v1409 = vld [vmem:[%s1 + $0x30] sm:$0xff]
    %s1410 = scalar_lea.vmem %s3, 33
    %v1411 = vld [vmem:[%s1410] ss:$8 sm:$0xf]
    %1412 = vrot.lane.b32.xlu0 %v1405, 16
    %v1413 = vpop.permute.xlu0 %1412
    %1414 = vrot.lane.b32.xlu0 %v1406, 16
    %v1415 = vpop.permute.xlu0 %1414
    %1416 = vrot.lane.b32.xlu0 %v1407, 16
    %v1417 = vpop.permute.xlu0 %1416
    %1418 = vrot.lane.b32.xlu0 %v1408, 16
    %v1419 = vpop.permute.xlu0 %1418
    %v1420 = vsel %vm67, %v1417, %v1419
    %v1421 = vsel %vm67, %v1415, %v1417
    %v1422 = vsel %vm67, %v1413, %v1415
    %v1423 = vsel %vm67, %v1419, %v1413
    %v1425 = vperm.slane %v1411, 0
    %v1426 = vperm.slane %v1411, 1
    %v1427 = vperm.slane %v1411, 2
    %v1428 = vperm.slane %v1411, 3
    %v1433 = vmul.f32 %v1425, %v1421
    %v1434 = vmul.f32 %v1426, %v1420
    %v1435 = vmul.f32 %v1427, %v1423
    %v1436 = vmul.f32 %v1428, %v1422
    %1438 = vset.pattern.permute.xlu0 0
    %1439 = vperm.xlu0 %1438, %v1409
    %v1440 = vpop.permute.xlu0 %1439
    %v1442 = vmul.f32 %v1440, %v1433
    %v1443 = vmul.f32 %v1440, %v1434
    %v1444 = vmul.f32 %v1440, %v1435
    %v1445 = vmul.f32 %v1440, %v1436
    %s1446 = scalar_lea.vmem %s3, 34
    %v1447 = vld [vmem:[%s1446] ss:$8 sm:$0xf]
    %v1449 = vperm.slane %v1447, 0
    %v1450 = vperm.slane %v1447, 1
    %v1451 = vperm.slane %v1447, 2
    %v1452 = vperm.slane %v1447, 3
    %v1457 = vmul.f32 %v1449, %v1407
    %v1458 = vmul.f32 %v1450, %v1408
    %v1459 = vmul.f32 %v1451, %v1405
    %v1460 = vmul.f32 %v1452, %v1406
    %1461 = vset.pattern.permute.xlu0 1
    %1462 = vperm.xlu0 %1461, %v1409
    %v1463 = vpop.permute.xlu0 %1462
    %v1465 = vmul.f32 %v1463, %v1457
    %v1466 = vmul.f32 %v1463, %v1458
    %v1467 = vmul.f32 %v1463, %v1459
    %v1468 = vmul.f32 %v1463, %v1460
    %v1469 = vadd.f32 %v1442, %v1465
    %v1470 = vadd.f32 %v1443, %v1466
    %v1471 = vadd.f32 %v1444, %v1467
    %v1472 = vadd.f32 %v1445, %v1468
    %s1473 = scalar_lea.vmem %s3, 35
    %v1474 = vld [vmem:[%s1473] ss:$8 sm:$0xf]
    %1475 = vrot.lane.b32.xlu0 %v1405, 112
    %v1476 = vpop.permute.xlu0 %1475
    %1477 = vrot.lane.b32.xlu0 %v1406, 112
    %v1478 = vpop.permute.xlu0 %1477
    %1479 = vrot.lane.b32.xlu0 %v1407, 112
    %v1480 = vpop.permute.xlu0 %1479
    %1481 = vrot.lane.b32.xlu0 %v1408, 112
    %v1482 = vpop.permute.xlu0 %1481
    %v1483 = vsel %vm222, %v1480, %v1482
    %v1484 = vsel %vm222, %v1478, %v1480
    %v1485 = vsel %vm222, %v1476, %v1478
    %v1486 = vsel %vm222, %v1482, %v1476
    %v1488 = vperm.slane %v1474, 0
    %v1489 = vperm.slane %v1474, 1
    %v1490 = vperm.slane %v1474, 2
    %v1491 = vperm.slane %v1474, 3
    %v1496 = vmul.f32 %v1488, %v1483
    %v1497 = vmul.f32 %v1489, %v1486
    %v1498 = vmul.f32 %v1490, %v1485
    %v1499 = vmul.f32 %v1491, %v1484
    %1500 = vset.pattern.permute.xlu0 2
    %1501 = vperm.xlu0 %1500, %v1409
    %v1502 = vpop.permute.xlu0 %1501
    %v1504 = vmul.f32 %v1502, %v1496
    %v1505 = vmul.f32 %v1502, %v1497
    %v1506 = vmul.f32 %v1502, %v1498
    %v1507 = vmul.f32 %v1502, %v1499
    %v1508 = vadd.f32 %v1469, %v1504
    %v1509 = vadd.f32 %v1470, %v1505
    %v1510 = vadd.f32 %v1471, %v1506
    %v1511 = vadd.f32 %v1472, %v1507
    %s1512 = scalar_lea.vmem %s3, 36
    %v1513 = vld [vmem:[%s1512] ss:$8 sm:$0xf]
    %v1515 = vperm.slane %v1513, 0
    %v1516 = vperm.slane %v1513, 1
    %v1517 = vperm.slane %v1513, 2
    %v1518 = vperm.slane %v1513, 3
    %v1523 = vmul.f32 %v1515, %v1423
    %v1524 = vmul.f32 %v1516, %v1422
    %v1525 = vmul.f32 %v1517, %v1421
    %v1526 = vmul.f32 %v1518, %v1420
    %1527 = vset.pattern.permute.xlu0 3
    %1528 = vperm.xlu0 %1527, %v1409
    %v1529 = vpop.permute.xlu0 %1528
    %v1531 = vmul.f32 %v1529, %v1523
    %v1532 = vmul.f32 %v1529, %v1524
    %v1533 = vmul.f32 %v1529, %v1525
    %v1534 = vmul.f32 %v1529, %v1526
    %v1535 = vadd.f32 %v1508, %v1531
    %v1536 = vadd.f32 %v1509, %v1532
    %v1537 = vadd.f32 %v1510, %v1533
    %v1538 = vadd.f32 %v1511, %v1534
    %s1539 = scalar_lea.vmem %s3, 37
    %v1540 = vld [vmem:[%s1539] ss:$8 sm:$0xf]
    %v1542 = vperm.slane %v1540, 0
    %v1543 = vperm.slane %v1540, 1
    %v1544 = vperm.slane %v1540, 2
    %v1545 = vperm.slane %v1540, 3
    %v1550 = vmul.f32 %v1542, %v1405
    %v1551 = vmul.f32 %v1543, %v1406
    %v1552 = vmul.f32 %v1544, %v1407
    %v1553 = vmul.f32 %v1545, %v1408
    %1554 = vset.pattern.permute.xlu0 4
    %1555 = vperm.xlu0 %1554, %v1409
    %v1556 = vpop.permute.xlu0 %1555
    %v1558 = vmul.f32 %v1556, %v1550
    %v1559 = vmul.f32 %v1556, %v1551
    %v1560 = vmul.f32 %v1556, %v1552
    %v1561 = vmul.f32 %v1556, %v1553
    %v1562 = vadd.f32 %v1535, %v1558
    %v1563 = vadd.f32 %v1536, %v1559
    %v1564 = vadd.f32 %v1537, %v1560
    %v1565 = vadd.f32 %v1538, %v1561
    %s1566 = scalar_lea.vmem %s3, 38
    %v1567 = vld [vmem:[%s1566] ss:$8 sm:$0xf]
    %v1569 = vperm.slane %v1567, 0
    %v1570 = vperm.slane %v1567, 1
    %v1571 = vperm.slane %v1567, 2
    %v1572 = vperm.slane %v1567, 3
    %v1577 = vmul.f32 %v1569, %v1485
    %v1578 = vmul.f32 %v1570, %v1484
    %v1579 = vmul.f32 %v1571, %v1483
    %v1580 = vmul.f32 %v1572, %v1486
    %1581 = vset.pattern.permute.xlu0 5
    %1582 = vperm.xlu0 %1581, %v1409
    %v1583 = vpop.permute.xlu0 %1582
    %v1585 = vmul.f32 %v1583, %v1577
    %v1586 = vmul.f32 %v1583, %v1578
    %v1587 = vmul.f32 %v1583, %v1579
    %v1588 = vmul.f32 %v1583, %v1580
    %v1589 = vadd.f32 %v1562, %v1585
    %v1590 = vadd.f32 %v1563, %v1586
    %v1591 = vadd.f32 %v1564, %v1587
    %v1592 = vadd.f32 %v1565, %v1588
    %s1593 = scalar_lea.vmem %s3, 39
    %v1594 = vld [vmem:[%s1593] ss:$8 sm:$0xf]
    %v1596 = vperm.slane %v1594, 0
    %v1597 = vperm.slane %v1594, 1
    %v1598 = vperm.slane %v1594, 2
    %v1599 = vperm.slane %v1594, 3
    %v1604 = vmul.f32 %v1596, %v1421
    %v1605 = vmul.f32 %v1597, %v1420
    %v1606 = vmul.f32 %v1598, %v1423
    %v1607 = vmul.f32 %v1599, %v1422
    %1608 = vset.pattern.permute.xlu0 6
    %1609 = vperm.xlu0 %1608, %v1409
    %v1610 = vpop.permute.xlu0 %1609
    %v1612 = vmul.f32 %v1610, %v1604
    %v1613 = vmul.f32 %v1610, %v1605
    %v1614 = vmul.f32 %v1610, %v1606
    %v1615 = vmul.f32 %v1610, %v1607
    %v1616 = vadd.f32 %v1589, %v1612
    %v1617 = vadd.f32 %v1590, %v1613
    %v1618 = vadd.f32 %v1591, %v1614
    %v1619 = vadd.f32 %v1592, %v1615
    %s1620 = scalar_lea.vmem %s3, 64
    %v1621 = vld [vmem:[%s1620] ss:$8 sm:$0xf]
    %v1623 = vperm.slane %v1621, 0
    %v1624 = vperm.slane %v1621, 1
    %v1625 = vperm.slane %v1621, 2
    %v1626 = vperm.slane %v1621, 3
    %v1631 = vmul.f32 %v1623, %v1407
    %v1632 = vmul.f32 %v1624, %v1408
    %v1633 = vmul.f32 %v1625, %v1405
    %v1634 = vmul.f32 %v1626, %v1406
    %1635 = vset.pattern.permute.xlu0 7
    %1636 = vperm.xlu0 %1635, %v1409
    %v1637 = vpop.permute.xlu0 %1636
    %v1639 = vmul.f32 %v1637, %v1631
    %v1640 = vmul.f32 %v1637, %v1632
    %v1641 = vmul.f32 %v1637, %v1633
    %v1642 = vmul.f32 %v1637, %v1634
    %v1643 = vadd.f32 %v1616, %v1639
    %v1644 = vadd.f32 %v1617, %v1640
    %v1645 = vadd.f32 %v1618, %v1641
    %v1646 = vadd.f32 %v1619, %v1642
    %s1647 = scalar_lea.vmem %s3, 65
    %v1648 = vld [vmem:[%s1647] ss:$8 sm:$0xf]
    %v1650 = vperm.slane %v1648, 0
    %v1651 = vperm.slane %v1648, 1
    %v1652 = vperm.slane %v1648, 2
    %v1653 = vperm.slane %v1648, 3
    %v1658 = vmul.f32 %v1650, %v1483
    %v1659 = vmul.f32 %v1651, %v1486
    %v1660 = vmul.f32 %v1652, %v1485
    %v1661 = vmul.f32 %v1653, %v1484
    %1662 = vset.pattern.permute.xlu0 8
    %1663 = vperm.xlu0 %1662, %v1409
    %v1664 = vpop.permute.xlu0 %1663
    %v1666 = vmul.f32 %v1664, %v1658
    %v1667 = vmul.f32 %v1664, %v1659
    %v1668 = vmul.f32 %v1664, %v1660
    %v1669 = vmul.f32 %v1664, %v1661
    %v1670 = vadd.f32 %v1643, %v1666
    %v1671 = vadd.f32 %v1644, %v1667
    %v1672 = vadd.f32 %v1645, %v1668
    %v1673 = vadd.f32 %v1646, %v1669
    %v1674 = vld [vmem:[%s2 + $0x30] sm:$0xff]
    %1676 = vset.pattern.permute.xlu0 0
    %1677 = vperm.xlu0 %1676, %v1674
    %v1678 = vpop.permute.xlu0 %1677
    %v1680 = vadd.f32 %v1670, %v1678
    %v1681 = vadd.f32 %v1671, %v1678
    %v1682 = vadd.f32 %v1672, %v1678
    %v1683 = vadd.f32 %v1673, %v1678
    %v1684 = vld [vmem:[%s1 + $0x38] sm:$0xff]
    %v1685 = vld [vmem:[%s2 + $0x38] sm:$0xff]
    %1687 = vset.pattern.permute.xlu0 0
    %1688 = vperm.xlu0 %1687, %v1685
    %v1689 = vpop.permute.xlu0 %1688
    %v1692 = vsel %vm409, %v1684, 0
    %1694 = vmatpush.msra.mxu0 0.0
    %1695 = vmatpush.msra.mxu0 0.0
    %1696 = vmatpush.msra.mxu0 0.0
    %1697 = vmatpush.msra.mxu0 0.0
    %1698 = vmatpush.msra.mxu0 0.0
    %1699 = vmatpush.msra.mxu0 0.0
    %1700 = vmatpush.msra.mxu0 0.0
    %1701 = vmatpush.msra.mxu0 0.0
    %1702 = vmatpush.msra.mxu0 0.0
    %1703 = vmatpush.msra.mxu0 0.0
    %1704 = vmatpush.msra.mxu0 0.0
    %1705 = vmatpush.msra.mxu0 0.0
    %1706 = vmatpush.msra.mxu0 0.0
    %1707 = vmatpush.msra.mxu0 0.0
    %1708 = vmatpush.msra.mxu0 0.0
    %1709 = vmatpush.msra.mxu0 %v1680
    %1710 = vmatmul.f32.gmra.mxu0 %v1692
    %v1711 = vpop.f32.mrf.mxu0
    %v1712 = vadd.f32 %v1689, %v1711
    %1713 = vdwg.mxu0
    %1714 = vmatpush.msra.mxu0 0.0
    %1715 = vmatpush.msra.mxu0 0.0
    %1716 = vmatpush.msra.mxu0 0.0
    %1717 = vmatpush.msra.mxu0 0.0
    %1718 = vmatpush.msra.mxu0 0.0
    %1719 = vmatpush.msra.mxu0 0.0
    %1720 = vmatpush.msra.mxu0 0.0
    %1721 = vmatpush.msra.mxu0 0.0
    %1722 = vmatpush.msra.mxu0 0.0
    %1723 = vmatpush.msra.mxu0 0.0
    %1724 = vmatpush.msra.mxu0 0.0
    %1725 = vmatpush.msra.mxu0 0.0
    %1726 = vmatpush.msra.mxu0 0.0
    %1727 = vmatpush.msra.mxu0 0.0
    %1728 = vmatpush.msra.mxu0 0.0
    %1729 = vmatpush.msra.mxu0 %v1681
    %1730 = vmatmul.f32.gmra.mxu0 %v1692
    %v1731 = vpop.f32.mrf.mxu0
    %v1732 = vadd.f32 %v1689, %v1731
    %1733 = vdwg.mxu0
    %1734 = vmatpush.msra.mxu0 0.0
    %1735 = vmatpush.msra.mxu0 0.0
    %1736 = vmatpush.msra.mxu0 0.0
    %1737 = vmatpush.msra.mxu0 0.0
    %1738 = vmatpush.msra.mxu0 0.0
    %1739 = vmatpush.msra.mxu0 0.0
    %1740 = vmatpush.msra.mxu0 0.0
    %1741 = vmatpush.msra.mxu0 0.0
    %1742 = vmatpush.msra.mxu0 0.0
    %1743 = vmatpush.msra.mxu0 0.0
    %1744 = vmatpush.msra.mxu0 0.0
    %1745 = vmatpush.msra.mxu0 0.0
    %1746 = vmatpush.msra.mxu0 0.0
    %1747 = vmatpush.msra.mxu0 0.0
    %1748 = vmatpush.msra.mxu0 0.0
    %1749 = vmatpush.msra.mxu0 %v1682
    %1750 = vmatmul.f32.gmra.mxu0 %v1692
    %v1751 = vpop.f32.mrf.mxu0
    %v1752 = vadd.f32 %v1689, %v1751
    %1753 = vdwg.mxu0
    %1754 = vmatpush.msra.mxu0 0.0
    %1755 = vmatpush.msra.mxu0 0.0
    %1756 = vmatpush.msra.mxu0 0.0
    %1757 = vmatpush.msra.mxu0 0.0
    %1758 = vmatpush.msra.mxu0 0.0
    %1759 = vmatpush.msra.mxu0 0.0
    %1760 = vmatpush.msra.mxu0 0.0
    %1761 = vmatpush.msra.mxu0 0.0
    %1762 = vmatpush.msra.mxu0 0.0
    %1763 = vmatpush.msra.mxu0 0.0
    %1764 = vmatpush.msra.mxu0 0.0
    %1765 = vmatpush.msra.mxu0 0.0
    %1766 = vmatpush.msra.mxu0 0.0
    %1767 = vmatpush.msra.mxu0 0.0
    %1768 = vmatpush.msra.mxu0 0.0
    %1769 = vmatpush.msra.mxu0 %v1683
    %1770 = vmatmul.f32.gmra.mxu0 %v1692
    %v1771 = vpop.f32.mrf.mxu0
    %v1772 = vadd.f32 %v1689, %v1771
    %1773 = vdwg.mxu0
    %v1774 = vld [vmem:[%s4] sm:$0xff]
    %v1775 = vld [vmem:[%s4 + $0x8] sm:$0xff]
    %v1776 = vld [vmem:[%s4 + $0x10] sm:$0xff]
    %v1777 = vld [vmem:[%s4 + $0x18] sm:$0xff]
    %v1778 = vld [vmem:[%s4 + $0x20] sm:$0xff]
    %v1779 = vld [vmem:[%s4 + $0x28] sm:$0xff]
    %v1780 = vld [vmem:[%s4 + $0x30] sm:$0xff]
    %v1781 = vld [vmem:[%s4 + $0x38] sm:$0xff]
    %v1782 = vld [vmem:[%s4 + $0x40] sm:$0xff]
    %v1783 = vld [vmem:[%s4 + $0x48] sm:$0xff]
    %v1784 = vld [vmem:[%s4 + $0x50] sm:$0xff]
    %v1785 = vld [vmem:[%s4 + $0x58] sm:$0xff]
    %v1786 = vld [vmem:[%s4 + $0x60] sm:$0xff]
    %v1787 = vld [vmem:[%s4 + $0x68] sm:$0xff]
    %v1788 = vld [vmem:[%s4 + $0x70] sm:$0xff]
    %v1789 = vld [vmem:[%s4 + $0x78] sm:$0xff]
    %v1790 = vld [vmem:[%s4 + $0x80] sm:$0xff]
    %v1791 = vld [vmem:[%s4 + $0x88] sm:$0xff]
    %v1792 = vld [vmem:[%s4 + $0x90] sm:$0xff]
    %v1793 = vld [vmem:[%s4 + $0x98] sm:$0xff]
    %v1794 = vld [vmem:[%s4 + $0xa0] sm:$0xff]
    %v1795 = vld [vmem:[%s4 + $0xa8] sm:$0xff]
    %v1796 = vld [vmem:[%s4 + $0xb0] sm:$0xff]
    %v1797 = vld [vmem:[%s4 + $0xb8] sm:$0xff]
    %v1798 = vld [vmem:[%s4 + $0xc0] sm:$0xff]
    %v1799 = vld [vmem:[%s4 + $0xc8] sm:$0xff]
    %v1800 = vld [vmem:[%s4 + $0xd0] sm:$0xff]
    %v1801 = vld [vmem:[%s4 + $0xd8] sm:$0xff]
    %v1802 = vld [vmem:[%s4 + $0xe0] sm:$0xff]
    %v1803 = vld [vmem:[%s4 + $0xe8] sm:$0xff]
    %v1804 = vld [vmem:[%s4 + $0xf0] sm:$0xff]
    %v1805 = vld [vmem:[%s4 + $0xf8] sm:$0xff]
    %v1806 = vld [vmem:[%s4 + $0x100] sm:$0xff]
    %v1807 = vld [vmem:[%s4 + $0x108] sm:$0xff]
    %v1808 = vld [vmem:[%s4 + $0x110] sm:$0xff]
    %v1809 = vld [vmem:[%s4 + $0x118] sm:$0xff]
    %v1810 = vld [vmem:[%s4 + $0x120] sm:$0xff]
    %v1811 = vld [vmem:[%s4 + $0x128] sm:$0xff]
    %v1812 = vld [vmem:[%s4 + $0x130] sm:$0xff]
    %v1813 = vld [vmem:[%s4 + $0x138] sm:$0xff]
    %v1814 = vld [vmem:[%s4 + $0x140] sm:$0xff]
    %v1815 = vld [vmem:[%s4 + $0x148] sm:$0xff]
    %v1816 = vld [vmem:[%s4 + $0x150] sm:$0xff]
    %v1817 = vld [vmem:[%s4 + $0x158] sm:$0xff]
    %v1818 = vld [vmem:[%s4 + $0x160] sm:$0xff]
    %v1819 = vld [vmem:[%s4 + $0x168] sm:$0xff]
    %v1820 = vld [vmem:[%s4 + $0x170] sm:$0xff]
    %v1821 = vld [vmem:[%s4 + $0x178] sm:$0xff]
    %v1822 = vld [vmem:[%s4 + $0x180] sm:$0xff]
    %v1823 = vld [vmem:[%s4 + $0x188] sm:$0xff]
    %v1824 = vld [vmem:[%s4 + $0x190] sm:$0xff]
    %v1825 = vld [vmem:[%s4 + $0x198] sm:$0xff]
    %v1826 = vld [vmem:[%s4 + $0x1a0] sm:$0xff]
    %v1827 = vld [vmem:[%s4 + $0x1a8] sm:$0xff]
    %v1828 = vld [vmem:[%s4 + $0x1b0] sm:$0xff]
    %v1829 = vld [vmem:[%s4 + $0x1b8] sm:$0xff]
    %v1830 = vld [vmem:[%s4 + $0x1c0] sm:$0xff]
    %v1831 = vld [vmem:[%s4 + $0x1c8] sm:$0xff]
    %v1832 = vld [vmem:[%s4 + $0x1d0] sm:$0xff]
    %v1833 = vld [vmem:[%s4 + $0x1d8] sm:$0xff]
    %v1834 = vld [vmem:[%s4 + $0x1e0] sm:$0xff]
    %v1835 = vld [vmem:[%s4 + $0x1e8] sm:$0xff]
    %v1836 = vld [vmem:[%s4 + $0x1f0] sm:$0xff]
    %v1837 = vld [vmem:[%s4 + $0x1f8] sm:$0xff]
    %1902 = vrot.lane.b32.xlu0 %v1774, 126
    %v1903 = vpop.permute.xlu0 %1902
    %1904 = vrot.lane.b32.xlu0 %v1775, 126
    %v1905 = vpop.permute.xlu0 %1904
    %1906 = vrot.lane.b32.xlu0 %v1776, 126
    %v1907 = vpop.permute.xlu0 %1906
    %1908 = vrot.lane.b32.xlu0 %v1777, 126
    %v1909 = vpop.permute.xlu0 %1908
    %1910 = vrot.lane.b32.xlu0 %v1778, 126
    %v1911 = vpop.permute.xlu0 %1910
    %1912 = vrot.lane.b32.xlu0 %v1779, 126
    %v1913 = vpop.permute.xlu0 %1912
    %1914 = vrot.lane.b32.xlu0 %v1780, 126
    %v1915 = vpop.permute.xlu0 %1914
    %1916 = vrot.lane.b32.xlu0 %v1781, 126
    %v1917 = vpop.permute.xlu0 %1916
    %1918 = vrot.lane.b32.xlu0 %v1782, 126
    %v1919 = vpop.permute.xlu0 %1918
    %1920 = vrot.lane.b32.xlu0 %v1783, 126
    %v1921 = vpop.permute.xlu0 %1920
    %1922 = vrot.lane.b32.xlu0 %v1784, 126
    %v1923 = vpop.permute.xlu0 %1922
    %1924 = vrot.lane.b32.xlu0 %v1785, 126
    %v1925 = vpop.permute.xlu0 %1924
    %1926 = vrot.lane.b32.xlu0 %v1786, 126
    %v1927 = vpop.permute.xlu0 %1926
    %1928 = vrot.lane.b32.xlu0 %v1787, 126
    %v1929 = vpop.permute.xlu0 %1928
    %1930 = vrot.lane.b32.xlu0 %v1788, 126
    %v1931 = vpop.permute.xlu0 %1930
    %1932 = vrot.lane.b32.xlu0 %v1789, 126
    %v1933 = vpop.permute.xlu0 %1932
    %1934 = vrot.lane.b32.xlu0 %v1790, 126
    %v1935 = vpop.permute.xlu0 %1934
    %1936 = vrot.lane.b32.xlu0 %v1791, 126
    %v1937 = vpop.permute.xlu0 %1936
    %1938 = vrot.lane.b32.xlu0 %v1792, 126
    %v1939 = vpop.permute.xlu0 %1938
    %1940 = vrot.lane.b32.xlu0 %v1793, 126
    %v1941 = vpop.permute.xlu0 %1940
    %1942 = vrot.lane.b32.xlu0 %v1794, 126
    %v1943 = vpop.permute.xlu0 %1942
    %1944 = vrot.lane.b32.xlu0 %v1795, 126
    %v1945 = vpop.permute.xlu0 %1944
    %1946 = vrot.lane.b32.xlu0 %v1796, 126
    %v1947 = vpop.permute.xlu0 %1946
    %1948 = vrot.lane.b32.xlu0 %v1797, 126
    %v1949 = vpop.permute.xlu0 %1948
    %1950 = vrot.lane.b32.xlu0 %v1798, 126
    %v1951 = vpop.permute.xlu0 %1950
    %1952 = vrot.lane.b32.xlu0 %v1799, 126
    %v1953 = vpop.permute.xlu0 %1952
    %1954 = vrot.lane.b32.xlu0 %v1800, 126
    %v1955 = vpop.permute.xlu0 %1954
    %1956 = vrot.lane.b32.xlu0 %v1801, 126
    %v1957 = vpop.permute.xlu0 %1956
    %1958 = vrot.lane.b32.xlu0 %v1802, 126
    %v1959 = vpop.permute.xlu0 %1958
    %1960 = vrot.lane.b32.xlu0 %v1803, 126
    %v1961 = vpop.permute.xlu0 %1960
    %1962 = vrot.lane.b32.xlu0 %v1804, 126
    %v1963 = vpop.permute.xlu0 %1962
    %1964 = vrot.lane.b32.xlu0 %v1805, 126
    %v1965 = vpop.permute.xlu0 %1964
    %1966 = vrot.lane.b32.xlu0 %v1806, 126
    %v1967 = vpop.permute.xlu0 %1966
    %1968 = vrot.lane.b32.xlu0 %v1807, 126
    %v1969 = vpop.permute.xlu0 %1968
    %1970 = vrot.lane.b32.xlu0 %v1808, 126
    %v1971 = vpop.permute.xlu0 %1970
    %1972 = vrot.lane.b32.xlu0 %v1809, 126
    %v1973 = vpop.permute.xlu0 %1972
    %1974 = vrot.lane.b32.xlu0 %v1810, 126
    %v1975 = vpop.permute.xlu0 %1974
    %1976 = vrot.lane.b32.xlu0 %v1811, 126
    %v1977 = vpop.permute.xlu0 %1976
    %1978 = vrot.lane.b32.xlu0 %v1812, 126
    %v1979 = vpop.permute.xlu0 %1978
    %1980 = vrot.lane.b32.xlu0 %v1813, 126
    %v1981 = vpop.permute.xlu0 %1980
    %1982 = vrot.lane.b32.xlu0 %v1814, 126
    %v1983 = vpop.permute.xlu0 %1982
    %1984 = vrot.lane.b32.xlu0 %v1815, 126
    %v1985 = vpop.permute.xlu0 %1984
    %1986 = vrot.lane.b32.xlu0 %v1816, 126
    %v1987 = vpop.permute.xlu0 %1986
    %1988 = vrot.lane.b32.xlu0 %v1817, 126
    %v1989 = vpop.permute.xlu0 %1988
    %1990 = vrot.lane.b32.xlu0 %v1818, 126
    %v1991 = vpop.permute.xlu0 %1990
    %1992 = vrot.lane.b32.xlu0 %v1819, 126
    %v1993 = vpop.permute.xlu0 %1992
    %1994 = vrot.lane.b32.xlu0 %v1820, 126
    %v1995 = vpop.permute.xlu0 %1994
    %1996 = vrot.lane.b32.xlu0 %v1821, 126
    %v1997 = vpop.permute.xlu0 %1996
    %1998 = vrot.lane.b32.xlu0 %v1822, 126
    %v1999 = vpop.permute.xlu0 %1998
    %2000 = vrot.lane.b32.xlu0 %v1823, 126
    %v2001 = vpop.permute.xlu0 %2000
    %2002 = vrot.lane.b32.xlu0 %v1824, 126
    %v2003 = vpop.permute.xlu0 %2002
    %2004 = vrot.lane.b32.xlu0 %v1825, 126
    %v2005 = vpop.permute.xlu0 %2004
    %2006 = vrot.lane.b32.xlu0 %v1826, 126
    %v2007 = vpop.permute.xlu0 %2006
    %2008 = vrot.lane.b32.xlu0 %v1827, 126
    %v2009 = vpop.permute.xlu0 %2008
    %2010 = vrot.lane.b32.xlu0 %v1828, 126
    %v2011 = vpop.permute.xlu0 %2010
    %2012 = vrot.lane.b32.xlu0 %v1829, 126
    %v2013 = vpop.permute.xlu0 %2012
    %2014 = vrot.lane.b32.xlu0 %v1830, 126
    %v2015 = vpop.permute.xlu0 %2014
    %2016 = vrot.lane.b32.xlu0 %v1831, 126
    %v2017 = vpop.permute.xlu0 %2016
    %2018 = vrot.lane.b32.xlu0 %v1832, 126
    %v2019 = vpop.permute.xlu0 %2018
    %2020 = vrot.lane.b32.xlu0 %v1833, 126
    %v2021 = vpop.permute.xlu0 %2020
    %2022 = vrot.lane.b32.xlu0 %v1834, 126
    %v2023 = vpop.permute.xlu0 %2022
    %2024 = vrot.lane.b32.xlu0 %v1835, 126
    %v2025 = vpop.permute.xlu0 %2024
    %2026 = vrot.lane.b32.xlu0 %v1836, 126
    %v2027 = vpop.permute.xlu0 %2026
    %2028 = vrot.lane.b32.xlu0 %v1837, 126
    %v2029 = vpop.permute.xlu0 %2028
    %2094 = vmatpush.msra.mxu0 %v1933
    %2095 = vmatpush.msra.mxu0 %v1931
    %2096 = vmatpush.msra.mxu0 %v1929
    %2097 = vmatpush.msra.mxu0 %v1927
    %2098 = vmatpush.msra.mxu0 %v1925
    %2099 = vmatpush.msra.mxu0 %v1923
    %2100 = vmatpush.msra.mxu0 %v1921
    %2101 = vmatpush.msra.mxu0 %v1919
    %2102 = vmatpush.msra.mxu0 %v1917
    %2103 = vmatpush.msra.mxu0 %v1915
    %2104 = vmatpush.msra.mxu0 %v1913
    %2105 = vmatpush.msra.mxu0 %v1911
    %2106 = vmatpush.msra.mxu0 %v1909
    %2107 = vmatpush.msra.mxu0 %v1907
    %2108 = vmatpush.msra.mxu0 %v1905
    %2109 = vmatpush.msra.mxu0 %v1903
    %2110 = vmatmul.f32.gmra.mxu0 %v1712
    %v2111 = vpop.f32.mrf.mxu0
    %v2112 = vadd.f32 0.0, %v2111
    %2113 = vdwg.mxu0
    %2114 = vmatpush.msra.mxu0 %v1965
    %2115 = vmatpush.msra.mxu0 %v1963
    %2116 = vmatpush.msra.mxu0 %v1961
    %2117 = vmatpush.msra.mxu0 %v1959
    %2118 = vmatpush.msra.mxu0 %v1957
    %2119 = vmatpush.msra.mxu0 %v1955
    %2120 = vmatpush.msra.mxu0 %v1953
    %2121 = vmatpush.msra.mxu0 %v1951
    %2122 = vmatpush.msra.mxu0 %v1949
    %2123 = vmatpush.msra.mxu0 %v1947
    %2124 = vmatpush.msra.mxu0 %v1945
    %2125 = vmatpush.msra.mxu0 %v1943
    %2126 = vmatpush.msra.mxu0 %v1941
    %2127 = vmatpush.msra.mxu0 %v1939
    %2128 = vmatpush.msra.mxu0 %v1937
    %2129 = vmatpush.msra.mxu0 %v1935
    %2130 = vmatmul.f32.gmra.mxu0 %v1732
    %v2131 = vpop.f32.mrf.mxu0
    %v2132 = vadd.f32 %v2112, %v2131
    %2133 = vdwg.mxu0
    %2134 = vmatpush.msra.mxu0 %v1997
    %2135 = vmatpush.msra.mxu0 %v1995
    %2136 = vmatpush.msra.mxu0 %v1993
    %2137 = vmatpush.msra.mxu0 %v1991
    %2138 = vmatpush.msra.mxu0 %v1989
    %2139 = vmatpush.msra.mxu0 %v1987
    %2140 = vmatpush.msra.mxu0 %v1985
    %2141 = vmatpush.msra.mxu0 %v1983
    %2142 = vmatpush.msra.mxu0 %v1981
    %2143 = vmatpush.msra.mxu0 %v1979
    %2144 = vmatpush.msra.mxu0 %v1977
    %2145 = vmatpush.msra.mxu0 %v1975
    %2146 = vmatpush.msra.mxu0 %v1973
    %2147 = vmatpush.msra.mxu0 %v1971
    %2148 = vmatpush.msra.mxu0 %v1969
    %2149 = vmatpush.msra.mxu0 %v1967
    %2150 = vmatmul.f32.gmra.mxu0 %v1752
    %v2151 = vpop.f32.mrf.mxu0
    %v2152 = vadd.f32 %v2132, %v2151
    %2153 = vdwg.mxu0
    %2154 = vmatpush.msra.mxu0 %v2029
    %2155 = vmatpush.msra.mxu0 %v2027
    %2156 = vmatpush.msra.mxu0 %v2025
    %2157 = vmatpush.msra.mxu0 %v2023
    %2158 = vmatpush.msra.mxu0 %v2021
    %2159 = vmatpush.msra.mxu0 %v2019
    %2160 = vmatpush.msra.mxu0 %v2017
    %2161 = vmatpush.msra.mxu0 %v2015
    %2162 = vmatpush.msra.mxu0 %v2013
    %2163 = vmatpush.msra.mxu0 %v2011
    %2164 = vmatpush.msra.mxu0 %v2009
    %2165 = vmatpush.msra.mxu0 %v2007
    %2166 = vmatpush.msra.mxu0 %v2005
    %2167 = vmatpush.msra.mxu0 %v2003
    %2168 = vmatpush.msra.mxu0 %v2001
    %2169 = vmatpush.msra.mxu0 %v1999
    %2170 = vmatmul.f32.gmra.mxu0 %v1772
    %v2171 = vpop.f32.mrf.mxu0
    %v2172 = vadd.f32 %v2152, %v2171
    %2173 = vdwg.mxu0
    %v2174 = vld [vmem:[%s5 + $0x20] sm:$0x3]
    %v2175 = vld [vmem:[%s5 + $0x28] sm:$0x3]
    %v2176 = vld [vmem:[%s5 + $0x30] sm:$0x3]
    %v2177 = vld [vmem:[%s5 + $0x38] sm:$0x3]
    %vm2178 = vcmask 15360
    %v2180 = vsel %vm2178, %v2172, 0
    %vm2182 = vcmask 1041408
    %v2184 = vsel %vm2182, %v2174, 0
    %v2187 = vsel %vm2182, %v2175, 0
    %v2190 = vsel %vm2182, %v2176, 0
    %v2193 = vsel %vm2182, %v2177, 0
    %2195 = vmatpush.msra.mxu0 0.0
    %2196 = vmatpush.msra.mxu0 0.0
    %2197 = vmatpush.msra.mxu0 0.0
    %2198 = vmatpush.msra.mxu0 0.0
    %2199 = vmatpush.msra.mxu0 0.0
    %2200 = vmatpush.msra.mxu0 0.0
    %2201 = vmatpush.msra.mxu0 0.0
    %2202 = vmatpush.msra.mxu0 0.0
    %2203 = vmatpush.msra.mxu0 0.0
    %2204 = vmatpush.msra.mxu0 0.0
    %2205 = vmatpush.msra.mxu0 0.0
    %2206 = vmatpush.msra.mxu0 0.0
    %2207 = vmatpush.msra.mxu0 0.0
    %2208 = vmatpush.msra.mxu0 0.0
    %2209 = vmatpush.msra.mxu0 0.0
    %2210 = vmatpush.msra.mxu0 %v2184
    %2211 = vmatmul.f32.gmra.mxu0 %v2180
    %v2212 = vpop.f32.mrf.mxu0
    %v2213 = vadd.f32 0.0, %v2212
    %2214 = vdwg.mxu0
    %2215 = vmatpush.msra.mxu0 0.0
    %2216 = vmatpush.msra.mxu0 0.0
    %2217 = vmatpush.msra.mxu0 0.0
    %2218 = vmatpush.msra.mxu0 0.0
    %2219 = vmatpush.msra.mxu0 0.0
    %2220 = vmatpush.msra.mxu0 0.0
    %2221 = vmatpush.msra.mxu0 0.0
    %2222 = vmatpush.msra.mxu0 0.0
    %2223 = vmatpush.msra.mxu0 0.0
    %2224 = vmatpush.msra.mxu0 0.0
    %2225 = vmatpush.msra.mxu0 0.0
    %2226 = vmatpush.msra.mxu0 0.0
    %2227 = vmatpush.msra.mxu0 0.0
    %2228 = vmatpush.msra.mxu0 0.0
    %2229 = vmatpush.msra.mxu0 0.0
    %2230 = vmatpush.msra.mxu0 %v2187
    %2231 = vmatmul.f32.gmra.mxu0 %v2180
    %v2232 = vpop.f32.mrf.mxu0
    %v2233 = vadd.f32 0.0, %v2232
    %2234 = vdwg.mxu0
    %2235 = vmatpush.msra.mxu0 0.0
    %2236 = vmatpush.msra.mxu0 0.0
    %2237 = vmatpush.msra.mxu0 0.0
    %2238 = vmatpush.msra.mxu0 0.0
    %2239 = vmatpush.msra.mxu0 0.0
    %2240 = vmatpush.msra.mxu0 0.0
    %2241 = vmatpush.msra.mxu0 0.0
    %2242 = vmatpush.msra.mxu0 0.0
    %2243 = vmatpush.msra.mxu0 0.0
    %2244 = vmatpush.msra.mxu0 0.0
    %2245 = vmatpush.msra.mxu0 0.0
    %2246 = vmatpush.msra.mxu0 0.0
    %2247 = vmatpush.msra.mxu0 0.0
    %2248 = vmatpush.msra.mxu0 0.0
    %2249 = vmatpush.msra.mxu0 0.0
    %2250 = vmatpush.msra.mxu0 %v2190
    %2251 = vmatmul.f32.gmra.mxu0 %v2180
    %v2252 = vpop.f32.mrf.mxu0
    %v2253 = vadd.f32 0.0, %v2252
    %2254 = vdwg.mxu0
    %2255 = vmatpush.msra.mxu0 0.0
    %2256 = vmatpush.msra.mxu0 0.0
    %2257 = vmatpush.msra.mxu0 0.0
    %2258 = vmatpush.msra.mxu0 0.0
    %2259 = vmatpush.msra.mxu0 0.0
    %2260 = vmatpush.msra.mxu0 0.0
    %2261 = vmatpush.msra.mxu0 0.0
    %2262 = vmatpush.msra.mxu0 0.0
    %2263 = vmatpush.msra.mxu0 0.0
    %2264 = vmatpush.msra.mxu0 0.0
    %2265 = vmatpush.msra.mxu0 0.0
    %2266 = vmatpush.msra.mxu0 0.0
    %2267 = vmatpush.msra.mxu0 0.0
    %2268 = vmatpush.msra.mxu0 0.0
    %2269 = vmatpush.msra.mxu0 0.0
    %2270 = vmatpush.msra.mxu0 %v2193
    %2271 = vmatmul.f32.gmra.mxu0 %v2180
    %v2272 = vpop.f32.mrf.mxu0
    %v2273 = vadd.f32 0.0, %v2272
    %2274 = vdwg.mxu0
    %v2275 = vadd.f32 %v437, %v2213
    %v2276 = vadd.f32 %v460, %v2233
    %v2277 = vadd.f32 %v483, %v2253
    %v2278 = vadd.f32 %v506, %v2273
    %2279 = vmatpush.msra.mxu0 %v1789
    %2280 = vmatpush.msra.mxu0 %v1788
    %2281 = vmatpush.msra.mxu0 %v1787
    %2282 = vmatpush.msra.mxu0 %v1786
    %2283 = vmatpush.msra.mxu0 %v1785
    %2284 = vmatpush.msra.mxu0 %v1784
    %2285 = vmatpush.msra.mxu0 %v1783
    %2286 = vmatpush.msra.mxu0 %v1782
    %2287 = vmatpush.msra.mxu0 %v1781
    %2288 = vmatpush.msra.mxu0 %v1780
    %2289 = vmatpush.msra.mxu0 %v1779
    %2290 = vmatpush.msra.mxu0 %v1778
    %2291 = vmatpush.msra.mxu0 %v1777
    %2292 = vmatpush.msra.mxu0 %v1776
    %2293 = vmatpush.msra.mxu0 %v1775
    %2294 = vmatpush.msra.mxu0 %v1774
    %2295 = vmatmul.f32.gmra.mxu0 %v692
    %v2296 = vpop.f32.mrf.mxu0
    %v2297 = vadd.f32 0.0, %v2296
    %2298 = vdwg.mxu0
    %2299 = vmatpush.msra.mxu0 %v1805
    %2300 = vmatpush.msra.mxu0 %v1804
    %2301 = vmatpush.msra.mxu0 %v1803
    %2302 = vmatpush.msra.mxu0 %v1802
    %2303 = vmatpush.msra.mxu0 %v1801
    %2304 = vmatpush.msra.mxu0 %v1800
    %2305 = vmatpush.msra.mxu0 %v1799
    %2306 = vmatpush.msra.mxu0 %v1798
    %2307 = vmatpush.msra.mxu0 %v1797
    %2308 = vmatpush.msra.mxu0 %v1796
    %2309 = vmatpush.msra.mxu0 %v1795
    %2310 = vmatpush.msra.mxu0 %v1794
    %2311 = vmatpush.msra.mxu0 %v1793
    %2312 = vmatpush.msra.mxu0 %v1792
    %2313 = vmatpush.msra.mxu0 %v1791
    %2314 = vmatpush.msra.mxu0 %v1790
    %2315 = vmatmul.f32.gmra.mxu0 %v693
    %v2316 = vpop.f32.mrf.mxu0
    %v2317 = vadd.f32 %v2297, %v2316
    %2318 = vdwg.mxu0
    %2319 = vmatpush.msra.mxu0 %v1821
    %2320 = vmatpush.msra.mxu0 %v1820
    %2321 = vmatpush.msra.mxu0 %v1819
    %2322 = vmatpush.msra.mxu0 %v1818
    %2323 = vmatpush.msra.mxu0 %v1817
    %2324 = vmatpush.msra.mxu0 %v1816
    %2325 = vmatpush.msra.mxu0 %v1815
    %2326 = vmatpush.msra.mxu0 %v1814
    %2327 = vmatpush.msra.mxu0 %v1813
    %2328 = vmatpush.msra.mxu0 %v1812
    %2329 = vmatpush.msra.mxu0 %v1811
    %2330 = vmatpush.msra.mxu0 %v1810
    %2331 = vmatpush.msra.mxu0 %v1809
    %2332 = vmatpush.msra.mxu0 %v1808
    %2333 = vmatpush.msra.mxu0 %v1807
    %2334 = vmatpush.msra.mxu0 %v1806
    %2335 = vmatmul.f32.gmra.mxu0 %v694
    %v2336 = vpop.f32.mrf.mxu0
    %v2337 = vadd.f32 %v2317, %v2336
    %2338 = vdwg.mxu0
    %2339 = vmatpush.msra.mxu0 %v1837
    %2340 = vmatpush.msra.mxu0 %v1836
    %2341 = vmatpush.msra.mxu0 %v1835
    %2342 = vmatpush.msra.mxu0 %v1834
    %2343 = vmatpush.msra.mxu0 %v1833
    %2344 = vmatpush.msra.mxu0 %v1832
    %2345 = vmatpush.msra.mxu0 %v1831
    %2346 = vmatpush.msra.mxu0 %v1830
    %2347 = vmatpush.msra.mxu0 %v1829
    %2348 = vmatpush.msra.mxu0 %v1828
    %2349 = vmatpush.msra.mxu0 %v1827
    %2350 = vmatpush.msra.mxu0 %v1826
    %2351 = vmatpush.msra.mxu0 %v1825
    %2352 = vmatpush.msra.mxu0 %v1824
    %2353 = vmatpush.msra.mxu0 %v1823
    %2354 = vmatpush.msra.mxu0 %v1822
    %2355 = vmatmul.f32.gmra.mxu0 %v695
    %v2356 = vpop.f32.mrf.mxu0
    %v2357 = vadd.f32 %v2337, %v2356
    %2358 = vdwg.mxu0
    %v2359 = vld [vmem:[%s1 + $0x40] sm:$0x7]
    %v2361 = vsel %vm409, %v2359, 0
    %2363 = vmatpush.msra.mxu0 0.0
    %2364 = vmatpush.msra.mxu0 0.0
    %2365 = vmatpush.msra.mxu0 0.0
    %2366 = vmatpush.msra.mxu0 0.0
    %2367 = vmatpush.msra.mxu0 0.0
    %2368 = vmatpush.msra.mxu0 0.0
    %2369 = vmatpush.msra.mxu0 0.0
    %2370 = vmatpush.msra.mxu0 0.0
    %2371 = vmatpush.msra.mxu0 0.0
    %2372 = vmatpush.msra.mxu0 0.0
    %2373 = vmatpush.msra.mxu0 0.0
    %2374 = vmatpush.msra.mxu0 0.0
    %2375 = vmatpush.msra.mxu0 0.0
    %2376 = vmatpush.msra.mxu0 0.0
    %2377 = vmatpush.msra.mxu0 0.0
    %2378 = vmatpush.msra.mxu0 %v2357
    %2379 = vmatmul.f32.gmra.mxu0 %v2361
    %v2380 = vpop.f32.mrf.mxu0
    %v2381 = vadd.f32 0.0, %v2380
    %2382 = vdwg.mxu0
    %vm2383 = vcmask 10240
    %v2384 = vsel %vm2383, %v2381, -inf
    %v2385 = vrot.slane %v2384, 4
    %v2386 = vmax.f32 %v2384, %v2385
    %v2387 = vrot.slane %v2386, 2
    %v2388 = vmax.f32 %v2386, %v2387
    %v2389 = vrot.slane %v2388, 1
    %v2390 = vmax.f32 %v2388, %v2389
    %v2391 = vsub.f32 %v2381, %v2390
    %v2392 = vmul.f32 %v2391, 1.442695
    %v2393 = vpow.pop %v2392
    %v2394 = vsel %vm2383, %v2393, 0.0
    %v2395 = vrot.slane %v2394, 4
    %v2396 = vadd.f32 %v2394, %v2395
    %v2397 = vrot.slane %v2396, 2
    %v2398 = vadd.f32 %v2396, %v2397
    %v2399 = vrot.slane %v2398, 1
    %v2400 = vadd.f32 %v2398, %v2399
    %v2401 = vrcp.pop %v2400
    %v2402 = vmul.f32 %v2400, %v2401
    %v2403 = vsub.f32 1.0, %v2402
    %v2404 = vmul.f32 %v2401, %v2403
    %v2405 = vadd.f32 %v2401, %v2404
    %vm2406 = vweird.f32 %v2400
    %vm2407 = vweird.f32 %v2401
    %vm2408 = vmor %vm2406, %vm2407
    %v2409 = vsel %vm2408, %v2401, %v2405
    %v2410 = vand.u32 2147483647, %v2400
    %vm2411 = vcmp.eq.f32.partialorder %v2410, 8.507059e+37
    %v2412 = vand.u32 %v2400, 2147483648
    %v2413 = vor.u32 1.1754944e-38, %v2412
    %v2414 = vsel %vm2411, %v2413, %v2409
    %v2415 = vmul.f32 %v2393, %v2414
    %v2416 = vsel %vm2383, %v2415, -inf
    %v2417 = vrot.slane %v2416, 4
    %v2418 = vmax.f32 %v2416, %v2417
    %v2419 = vrot.slane %v2418, 2
    %v2420 = vmax.f32 %v2418, %v2419
    %v2421 = vrot.slane %v2420, 1
    %v2422 = vmax.f32 %v2420, %v2421
    %vm2423 = vcmp.ge.f32.partialorder %v2415, %v2422
    %v2424 = vsel %vm2423, %v2415, 0.0
    %v2425 = vld [vmem:[%s1 + $0x80] sm:$0xff]
    %v2426 = vld [vmem:[%s1 + $0x88] sm:$0xff]
    %v2427 = vld [vmem:[%s1 + $0x90] sm:$0xff]
    %v2428 = vld [vmem:[%s1 + $0x98] sm:$0xff]
    %vm2429 = vcmask 23552
    %v2431 = vsel %vm2429, %v2425, 0
    %v2434 = vsel %vm2429, %v2426, 0
    %v2437 = vsel %vm2429, %v2427, 0
    %v2440 = vsel %vm2429, %v2428, 0
    %vm2442 = vcmask 1042432
    %v2444 = vsel %vm2442, %v2424, 0
    %2446 = vmatpush.msra.mxu0 0.0
    %2447 = vmatpush.msra.mxu0 0.0
    %2448 = vmatpush.msra.mxu0 0.0
    %2449 = vmatpush.msra.mxu0 0.0
    %2450 = vmatpush.msra.mxu0 0.0
    %2451 = vmatpush.msra.mxu0 0.0
    %2452 = vmatpush.msra.mxu0 0.0
    %2453 = vmatpush.msra.mxu0 0.0
    %2454 = vmatpush.msra.mxu0 0.0
    %2455 = vmatpush.msra.mxu0 0.0
    %2456 = vmatpush.msra.mxu0 0.0
    %2457 = vmatpush.msra.mxu0 0.0
    %2458 = vmatpush.msra.mxu0 0.0
    %2459 = vmatpush.msra.mxu0 0.0
    %2460 = vmatpush.msra.mxu0 0.0
    %2461 = vmatpush.msra.mxu0 %v2444
    %2462 = vmatmul.f32.gmra.mxu0 %v2431
    %v2463 = vpop.f32.mrf.mxu0
    %v2464 = vadd.f32 0.0, %v2463
    %2465 = vmatmul.f32.gmra.mxu0 %v2434
    %v2466 = vpop.f32.mrf.mxu0
    %v2467 = vadd.f32 0.0, %v2466
    %2468 = vmatmul.f32.gmra.mxu0 %v2437
    %v2469 = vpop.f32.mrf.mxu0
    %v2470 = vadd.f32 0.0, %v2469
    %2471 = vmatmul.f32.gmra.mxu0 %v2440
    %v2472 = vpop.f32.mrf.mxu0
    %v2473 = vadd.f32 0.0, %v2472
    %2474 = vdwg.mxu0
    %v2475 = vld [vmem:[%s5] sm:$0x3]
    %v2476 = vld [vmem:[%s5 + $0x8] sm:$0x3]
    %v2477 = vld [vmem:[%s5 + $0x10] sm:$0x3]
    %v2478 = vld [vmem:[%s5 + $0x18] sm:$0x3]
    %v2480 = vsel %vm2178, %v2464, 0
    %v2483 = vsel %vm2178, %v2467, 0
    %v2486 = vsel %vm2178, %v2470, 0
    %v2489 = vsel %vm2178, %v2473, 0
    %v2492 = vsel %vm2182, %v2475, 0
    %v2495 = vsel %vm2182, %v2476, 0
    %v2498 = vsel %vm2182, %v2477, 0
    %v2501 = vsel %vm2182, %v2478, 0
    %2503 = vmatpush.msra.mxu0 0.0
    %2504 = vmatpush.msra.mxu0 0.0
    %2505 = vmatpush.msra.mxu0 0.0
    %2506 = vmatpush.msra.mxu0 0.0
    %2507 = vmatpush.msra.mxu0 0.0
    %2508 = vmatpush.msra.mxu0 0.0
    %2509 = vmatpush.msra.mxu0 0.0
    %2510 = vmatpush.msra.mxu0 0.0
    %2511 = vmatpush.msra.mxu0 0.0
    %2512 = vmatpush.msra.mxu0 0.0
    %2513 = vmatpush.msra.mxu0 0.0
    %2514 = vmatpush.msra.mxu0 0.0
    %2515 = vmatpush.msra.mxu0 0.0
    %2516 = vmatpush.msra.mxu0 0.0
    %2517 = vmatpush.msra.mxu0 0.0
    %2518 = vmatpush.msra.mxu0 %v2492
    %2519 = vmatmul.f32.gmra.mxu0 %v2480
    %v2520 = vpop.f32.mrf.mxu0
    %v2521 = vadd.f32 0.0, %v2520
    %2522 = vmatmul.f32.gmra.mxu0 %v2483
    %v2523 = vpop.f32.mrf.mxu0
    %v2524 = vadd.f32 0.0, %v2523
    %2525 = vmatmul.f32.gmra.mxu0 %v2486
    %v2526 = vpop.f32.mrf.mxu0
    %v2527 = vadd.f32 0.0, %v2526
    %2528 = vmatmul.f32.gmra.mxu0 %v2489
    %v2529 = vpop.f32.mrf.mxu0
    %v2530 = vadd.f32 0.0, %v2529
    %2531 = vdwg.mxu0
    %2532 = vmatpush.msra.mxu0 0.0
    %2533 = vmatpush.msra.mxu0 0.0
    %2534 = vmatpush.msra.mxu0 0.0
    %2535 = vmatpush.msra.mxu0 0.0
    %2536 = vmatpush.msra.mxu0 0.0
    %2537 = vmatpush.msra.mxu0 0.0
    %2538 = vmatpush.msra.mxu0 0.0
    %2539 = vmatpush.msra.mxu0 0.0
    %2540 = vmatpush.msra.mxu0 0.0
    %2541 = vmatpush.msra.mxu0 0.0
    %2542 = vmatpush.msra.mxu0 0.0
    %2543 = vmatpush.msra.mxu0 0.0
    %2544 = vmatpush.msra.mxu0 0.0
    %2545 = vmatpush.msra.mxu0 0.0
    %2546 = vmatpush.msra.mxu0 0.0
    %2547 = vmatpush.msra.mxu0 %v2495
    %2548 = vmatmul.f32.gmra.mxu0 %v2480
    %v2549 = vpop.f32.mrf.mxu0
    %v2550 = vadd.f32 0.0, %v2549
    %2551 = vmatmul.f32.gmra.mxu0 %v2483
    %v2552 = vpop.f32.mrf.mxu0
    %v2553 = vadd.f32 0.0, %v2552
    %2554 = vmatmul.f32.gmra.mxu0 %v2486
    %v2555 = vpop.f32.mrf.mxu0
    %v2556 = vadd.f32 0.0, %v2555
    %2557 = vmatmul.f32.gmra.mxu0 %v2489
    %v2558 = vpop.f32.mrf.mxu0
    %v2559 = vadd.f32 0.0, %v2558
    %2560 = vdwg.mxu0
    %2561 = vmatpush.msra.mxu0 0.0
    %2562 = vmatpush.msra.mxu0 0.0
    %2563 = vmatpush.msra.mxu0 0.0
    %2564 = vmatpush.msra.mxu0 0.0
    %2565 = vmatpush.msra.mxu0 0.0
    %2566 = vmatpush.msra.mxu0 0.0
    %2567 = vmatpush.msra.mxu0 0.0
    %2568 = vmatpush.msra.mxu0 0.0
    %2569 = vmatpush.msra.mxu0 0.0
    %2570 = vmatpush.msra.mxu0 0.0
    %2571 = vmatpush.msra.mxu0 0.0
    %2572 = vmatpush.msra.mxu0 0.0
    %2573 = vmatpush.msra.mxu0 0.0
    %2574 = vmatpush.msra.mxu0 0.0
    %2575 = vmatpush.msra.mxu0 0.0
    %2576 = vmatpush.msra.mxu0 %v2498
    %2577 = vmatmul.f32.gmra.mxu0 %v2480
    %v2578 = vpop.f32.mrf.mxu0
    %v2579 = vadd.f32 0.0, %v2578
    %2580 = vmatmul.f32.gmra.mxu0 %v2483
    %v2581 = vpop.f32.mrf.mxu0
    %v2582 = vadd.f32 0.0, %v2581
    %2583 = vmatmul.f32.gmra.mxu0 %v2486
    %v2584 = vpop.f32.mrf.mxu0
    %v2585 = vadd.f32 0.0, %v2584
    %2586 = vmatmul.f32.gmra.mxu0 %v2489
    %v2587 = vpop.f32.mrf.mxu0
    %v2588 = vadd.f32 0.0, %v2587
    %2589 = vdwg.mxu0
    %2590 = vmatpush.msra.mxu0 0.0
    %2591 = vmatpush.msra.mxu0 0.0
    %2592 = vmatpush.msra.mxu0 0.0
    %2593 = vmatpush.msra.mxu0 0.0
    %2594 = vmatpush.msra.mxu0 0.0
    %2595 = vmatpush.msra.mxu0 0.0
    %2596 = vmatpush.msra.mxu0 0.0
    %2597 = vmatpush.msra.mxu0 0.0
    %2598 = vmatpush.msra.mxu0 0.0
    %2599 = vmatpush.msra.mxu0 0.0
    %2600 = vmatpush.msra.mxu0 0.0
    %2601 = vmatpush.msra.mxu0 0.0
    %2602 = vmatpush.msra.mxu0 0.0
    %2603 = vmatpush.msra.mxu0 0.0
    %2604 = vmatpush.msra.mxu0 0.0
    %2605 = vmatpush.msra.mxu0 %v2501
    %2606 = vmatmul.f32.gmra.mxu0 %v2480
    %v2607 = vpop.f32.mrf.mxu0
    %v2608 = vadd.f32 0.0, %v2607
    %2609 = vmatmul.f32.gmra.mxu0 %v2483
    %v2610 = vpop.f32.mrf.mxu0
    %v2611 = vadd.f32 0.0, %v2610
    %2612 = vmatmul.f32.gmra.mxu0 %v2486
    %v2613 = vpop.f32.mrf.mxu0
    %v2614 = vadd.f32 0.0, %v2613
    %2615 = vmatmul.f32.gmra.mxu0 %v2489
    %v2616 = vpop.f32.mrf.mxu0
    %v2617 = vadd.f32 0.0, %v2616
    %2618 = vdwg.mxu0
    %v2619 = vld [vmem:[%s1 + $0x48] sm:$0xff]
    %v2620 = vld [vmem:[%s1 + $0x50] sm:$0xff]
    %v2621 = vld [vmem:[%s1 + $0x58] sm:$0xff]
    %v2622 = vld [vmem:[%s1 + $0x60] sm:$0xff]
    %v2623 = vld [vmem:[%s1 + $0x68] sm:$0xff]
    %v2624 = vld [vmem:[%s1 + $0x70] sm:$0xff]
    %v2625 = vld [vmem:[%s2 + $0x40] sm:$0xff]
    %v2626 = vld [vmem:[%s2 + $0x48] sm:$0xff]
    %v2627 = vld [vmem:[%s2 + $0x50] sm:$0xff]
    %v2628 = vld [vmem:[%s2 + $0x58] sm:$0xff]
    %v2629 = vld [vmem:[%s2 + $0x60] sm:$0xff]
    %v2630 = vld [vmem:[%s2 + $0x68] sm:$0xff]
    %2632 = vset.pattern.permute.xlu0 0
    %2633 = vperm.xlu0 %2632, %v2625
    %v2634 = vpop.permute.xlu0 %2633
    %2637 = vset.pattern.permute.xlu0 0
    %2638 = vperm.xlu0 %2637, %v2626
    %v2639 = vpop.permute.xlu0 %2638
    %2642 = vset.pattern.permute.xlu0 0
    %2643 = vperm.xlu0 %2642, %v2627
    %v2644 = vpop.permute.xlu0 %2643
    %2647 = vset.pattern.permute.xlu0 0
    %2648 = vperm.xlu0 %2647, %v2628
    %v2649 = vpop.permute.xlu0 %2648
    %2652 = vset.pattern.permute.xlu0 0
    %2653 = vperm.xlu0 %2652, %v2629
    %v2654 = vpop.permute.xlu0 %2653
    %2657 = vset.pattern.permute.xlu0 0
    %2658 = vperm.xlu0 %2657, %v2630
    %v2659 = vpop.permute.xlu0 %2658
    %vm2661 = vcmask 130048
    %v2663 = vsel %vm2661, %v2619, 0
    %v2666 = vsel %vm2661, %v2620, 0
    %v2669 = vsel %vm2661, %v2621, 0
    %v2672 = vsel %vm2661, %v2622, 0
    %v2675 = vsel %vm2661, %v2623, 0
    %v2678 = vsel %vm2661, %v2624, 0
    %2680 = vmatpush.msra.mxu0 0.0
    %2681 = vmatpush.msra.mxu0 0.0
    %2682 = vmatpush.msra.mxu0 0.0
    %2683 = vmatpush.msra.mxu0 0.0
    %2684 = vmatpush.msra.mxu0 0.0
    %2685 = vmatpush.msra.mxu0 0.0
    %2686 = vmatpush.msra.mxu0 0.0
    %2687 = vmatpush.msra.mxu0 0.0
    %2688 = vmatpush.msra.mxu0 0.0
    %2689 = vmatpush.msra.mxu0 0.0
    %2690 = vmatpush.msra.mxu0 0.0
    %2691 = vmatpush.msra.mxu0 0.0
    %2692 = vmatpush.msra.mxu0 0.0
    %2693 = vmatpush.msra.mxu0 0.0
    %2694 = vmatpush.msra.mxu0 %v2275
    %2695 = vmatpush.msra.mxu0 %v692
    %2696 = vmatmul.f32.gmra.mxu0 %v2663
    %v2697 = vpop.f32.mrf.mxu0
    %v2698 = vadd.f32 %v2634, %v2697
    %2699 = vmatmul.f32.gmra.mxu0 %v2666
    %v2700 = vpop.f32.mrf.mxu0
    %v2701 = vadd.f32 %v2639, %v2700
    %2702 = vmatmul.f32.gmra.mxu0 %v2669
    %v2703 = vpop.f32.mrf.mxu0
    %v2704 = vadd.f32 %v2644, %v2703
    %2705 = vmatmul.f32.gmra.mxu0 %v2672
    %v2706 = vpop.f32.mrf.mxu0
    %v2707 = vadd.f32 %v2649, %v2706
    %2708 = vmatmul.f32.gmra.mxu0 %v2675
    %v2709 = vpop.f32.mrf.mxu0
    %v2710 = vadd.f32 %v2654, %v2709
    %2711 = vmatmul.f32.gmra.mxu0 %v2678
    %v2712 = vpop.f32.mrf.mxu0
    %v2713 = vadd.f32 %v2659, %v2712
    %2714 = vdwg.mxu0
    %2715 = vmatpush.msra.mxu0 0.0
    %2716 = vmatpush.msra.mxu0 0.0
    %2717 = vmatpush.msra.mxu0 0.0
    %2718 = vmatpush.msra.mxu0 0.0
    %2719 = vmatpush.msra.mxu0 0.0
    %2720 = vmatpush.msra.mxu0 0.0
    %2721 = vmatpush.msra.mxu0 0.0
    %2722 = vmatpush.msra.mxu0 0.0
    %2723 = vmatpush.msra.mxu0 0.0
    %2724 = vmatpush.msra.mxu0 0.0
    %2725 = vmatpush.msra.mxu0 0.0
    %2726 = vmatpush.msra.mxu0 0.0
    %2727 = vmatpush.msra.mxu0 0.0
    %2728 = vmatpush.msra.mxu0 0.0
    %2729 = vmatpush.msra.mxu0 %v2276
    %2730 = vmatpush.msra.mxu0 %v693
    %2731 = vmatmul.f32.gmra.mxu0 %v2663
    %v2732 = vpop.f32.mrf.mxu0
    %v2733 = vadd.f32 %v2634, %v2732
    %2734 = vmatmul.f32.gmra.mxu0 %v2666
    %v2735 = vpop.f32.mrf.mxu0
    %v2736 = vadd.f32 %v2639, %v2735
    %2737 = vmatmul.f32.gmra.mxu0 %v2669
    %v2738 = vpop.f32.mrf.mxu0
    %v2739 = vadd.f32 %v2644, %v2738
    %2740 = vmatmul.f32.gmra.mxu0 %v2672
    %v2741 = vpop.f32.mrf.mxu0
    %v2742 = vadd.f32 %v2649, %v2741
    %2743 = vmatmul.f32.gmra.mxu0 %v2675
    %v2744 = vpop.f32.mrf.mxu0
    %v2745 = vadd.f32 %v2654, %v2744
    %2746 = vmatmul.f32.gmra.mxu0 %v2678
    %v2747 = vpop.f32.mrf.mxu0
    %v2748 = vadd.f32 %v2659, %v2747
    %2749 = vdwg.mxu0
    %2750 = vmatpush.msra.mxu0 0.0
    %2751 = vmatpush.msra.mxu0 0.0
    %2752 = vmatpush.msra.mxu0 0.0
    %2753 = vmatpush.msra.mxu0 0.0
    %2754 = vmatpush.msra.mxu0 0.0
    %2755 = vmatpush.msra.mxu0 0.0
    %2756 = vmatpush.msra.mxu0 0.0
    %2757 = vmatpush.msra.mxu0 0.0
    %2758 = vmatpush.msra.mxu0 0.0
    %2759 = vmatpush.msra.mxu0 0.0
    %2760 = vmatpush.msra.mxu0 0.0
    %2761 = vmatpush.msra.mxu0 0.0
    %2762 = vmatpush.msra.mxu0 0.0
    %2763 = vmatpush.msra.mxu0 0.0
    %2764 = vmatpush.msra.mxu0 %v2277
    %2765 = vmatpush.msra.mxu0 %v694
    %2766 = vmatmul.f32.gmra.mxu0 %v2663
    %v2767 = vpop.f32.mrf.mxu0
    %v2768 = vadd.f32 %v2634, %v2767
    %2769 = vmatmul.f32.gmra.mxu0 %v2666
    %v2770 = vpop.f32.mrf.mxu0
    %v2771 = vadd.f32 %v2639, %v2770
    %2772 = vmatmul.f32.gmra.mxu0 %v2669
    %v2773 = vpop.f32.mrf.mxu0
    %v2774 = vadd.f32 %v2644, %v2773
    %2775 = vmatmul.f32.gmra.mxu0 %v2672
    %v2776 = vpop.f32.mrf.mxu0
    %v2777 = vadd.f32 %v2649, %v2776
    %2778 = vmatmul.f32.gmra.mxu0 %v2675
    %v2779 = vpop.f32.mrf.mxu0
    %v2780 = vadd.f32 %v2654, %v2779
    %2781 = vmatmul.f32.gmra.mxu0 %v2678
    %v2782 = vpop.f32.mrf.mxu0
    %v2783 = vadd.f32 %v2659, %v2782
    %2784 = vdwg.mxu0
    %2785 = vmatpush.msra.mxu0 0.0
    %2786 = vmatpush.msra.mxu0 0.0
    %2787 = vmatpush.msra.mxu0 0.0
    %2788 = vmatpush.msra.mxu0 0.0
    %2789 = vmatpush.msra.mxu0 0.0
    %2790 = vmatpush.msra.mxu0 0.0
    %2791 = vmatpush.msra.mxu0 0.0
    %2792 = vmatpush.msra.mxu0 0.0
    %2793 = vmatpush.msra.mxu0 0.0
    %2794 = vmatpush.msra.mxu0 0.0
    %2795 = vmatpush.msra.mxu0 0.0
    %2796 = vmatpush.msra.mxu0 0.0
    %2797 = vmatpush.msra.mxu0 0.0
    %2798 = vmatpush.msra.mxu0 0.0
    %2799 = vmatpush.msra.mxu0 %v2278
    %2800 = vmatpush.msra.mxu0 %v695
    %2801 = vmatmul.f32.gmra.mxu0 %v2663
    %v2802 = vpop.f32.mrf.mxu0
    %v2803 = vadd.f32 %v2634, %v2802
    %2804 = vmatmul.f32.gmra.mxu0 %v2666
    %v2805 = vpop.f32.mrf.mxu0
    %v2806 = vadd.f32 %v2639, %v2805
    %2807 = vmatmul.f32.gmra.mxu0 %v2669
    %v2808 = vpop.f32.mrf.mxu0
    %v2809 = vadd.f32 %v2644, %v2808
    %2810 = vmatmul.f32.gmra.mxu0 %v2672
    %v2811 = vpop.f32.mrf.mxu0
    %v2812 = vadd.f32 %v2649, %v2811
    %2813 = vmatmul.f32.gmra.mxu0 %v2675
    %v2814 = vpop.f32.mrf.mxu0
    %v2815 = vadd.f32 %v2654, %v2814
    %2816 = vmatmul.f32.gmra.mxu0 %v2678
    %v2817 = vpop.f32.mrf.mxu0
    %v2818 = vadd.f32 %v2659, %v2817
    %2819 = vdwg.mxu0
    %v2820 = vmul.f32 %v2698, %v2707
    %v2821 = vmul.f32 %v2733, %v2742
    %v2822 = vmul.f32 %v2768, %v2777
    %v2823 = vmul.f32 %v2803, %v2812
    %v2824 = vmul.f32 %v2701, %v2710
    %v2825 = vmul.f32 %v2736, %v2745
    %v2826 = vmul.f32 %v2771, %v2780
    %v2827 = vmul.f32 %v2806, %v2815
    %v2828 = vmul.f32 %v2704, %v2713
    %v2829 = vmul.f32 %v2739, %v2748
    %v2830 = vmul.f32 %v2774, %v2783
    %v2831 = vmul.f32 %v2809, %v2818
    %v2832 = vmul.f32 %v2820, %v2521
    %v2833 = vmul.f32 %v2821, %v2550
    %v2834 = vmul.f32 %v2822, %v2579
    %v2835 = vmul.f32 %v2823, %v2608
    %v2836 = vmul.f32 %v2824, %v2524
    %v2837 = vmul.f32 %v2825, %v2553
    %v2838 = vmul.f32 %v2826, %v2582
    %v2839 = vmul.f32 %v2827, %v2611
    %v2840 = vmul.f32 %v2828, %v2527
    %v2841 = vmul.f32 %v2829, %v2556
    %v2842 = vmul.f32 %v2830, %v2585
    %v2843 = vmul.f32 %v2831, %v2614
    %v2844 = vld [vmem:[%s1 + $0x78] sm:$0xff]
    %vm2845 = vcmask 261120
    %v2847 = vsel %vm2845, %v2844, 0
    %2849 = vmatpush.msra.mxu0 0.0
    %2850 = vmatpush.msra.mxu0 0.0
    %2851 = vmatpush.msra.mxu0 0.0
    %2852 = vmatpush.msra.mxu0 0.0
    %2853 = vmatpush.msra.mxu0 0.0
    %2854 = vmatpush.msra.mxu0 0.0
    %2855 = vmatpush.msra.mxu0 0.0
    %2856 = vmatpush.msra.mxu0 0.0
    %2857 = vmatpush.msra.mxu0 0.0
    %2858 = vmatpush.msra.mxu0 0.0
    %2859 = vmatpush.msra.mxu0 0.0
    %2860 = vmatpush.msra.mxu0 0.0
    %2861 = vmatpush.msra.mxu0 %v2530
    %2862 = vmatpush.msra.mxu0 %v2840
    %2863 = vmatpush.msra.mxu0 %v2836
    %2864 = vmatpush.msra.mxu0 %v2832
    %2865 = vmatmul.f32.gmra.mxu0 %v2847
    %v2866 = vpop.f32.mrf.mxu0
    %v2867 = vadd.f32 0.0, %v2866
    %2868 = vdwg.mxu0
    %2869 = vmatpush.msra.mxu0 0.0
    %2870 = vmatpush.msra.mxu0 0.0
    %2871 = vmatpush.msra.mxu0 0.0
    %2872 = vmatpush.msra.mxu0 0.0
    %2873 = vmatpush.msra.mxu0 0.0
    %2874 = vmatpush.msra.mxu0 0.0
    %2875 = vmatpush.msra.mxu0 0.0
    %2876 = vmatpush.msra.mxu0 0.0
    %2877 = vmatpush.msra.mxu0 0.0
    %2878 = vmatpush.msra.mxu0 0.0
    %2879 = vmatpush.msra.mxu0 0.0
    %2880 = vmatpush.msra.mxu0 0.0
    %2881 = vmatpush.msra.mxu0 %v2559
    %2882 = vmatpush.msra.mxu0 %v2841
    %2883 = vmatpush.msra.mxu0 %v2837
    %2884 = vmatpush.msra.mxu0 %v2833
    %2885 = vmatmul.f32.gmra.mxu0 %v2847
    %v2886 = vpop.f32.mrf.mxu0
    %v2887 = vadd.f32 0.0, %v2886
    %2888 = vdwg.mxu0
    %2889 = vmatpush.msra.mxu0 0.0
    %2890 = vmatpush.msra.mxu0 0.0
    %2891 = vmatpush.msra.mxu0 0.0
    %2892 = vmatpush.msra.mxu0 0.0
    %2893 = vmatpush.msra.mxu0 0.0
    %2894 = vmatpush.msra.mxu0 0.0
    %2895 = vmatpush.msra.mxu0 0.0
    %2896 = vmatpush.msra.mxu0 0.0
    %2897 = vmatpush.msra.mxu0 0.0
    %2898 = vmatpush.msra.mxu0 0.0
    %2899 = vmatpush.msra.mxu0 0.0
    %2900 = vmatpush.msra.mxu0 0.0
    %2901 = vmatpush.msra.mxu0 %v2588
    %2902 = vmatpush.msra.mxu0 %v2842
    %2903 = vmatpush.msra.mxu0 %v2838
    %2904 = vmatpush.msra.mxu0 %v2834
    %2905 = vmatmul.f32.gmra.mxu0 %v2847
    %v2906 = vpop.f32.mrf.mxu0
    %v2907 = vadd.f32 0.0, %v2906
    %2908 = vdwg.mxu0
    %2909 = vmatpush.msra.mxu0 0.0
    %2910 = vmatpush.msra.mxu0 0.0
    %2911 = vmatpush.msra.mxu0 0.0
    %2912 = vmatpush.msra.mxu0 0.0
    %2913 = vmatpush.msra.mxu0 0.0
    %2914 = vmatpush.msra.mxu0 0.0
    %2915 = vmatpush.msra.mxu0 0.0
    %2916 = vmatpush.msra.mxu0 0.0
    %2917 = vmatpush.msra.mxu0 0.0
    %2918 = vmatpush.msra.mxu0 0.0
    %2919 = vmatpush.msra.mxu0 0.0
    %2920 = vmatpush.msra.mxu0 0.0
    %2921 = vmatpush.msra.mxu0 %v2617
    %2922 = vmatpush.msra.mxu0 %v2843
    %2923 = vmatpush.msra.mxu0 %v2839
    %2924 = vmatpush.msra.mxu0 %v2835
    %2925 = vmatmul.f32.gmra.mxu0 %v2847
    %v2926 = vpop.f32.mrf.mxu0
    %v2927 = vadd.f32 0.0, %v2926
    %2928 = vdwg.mxu0
    %v2929 = vadd.f32 %v692, %v2867
    %v2930 = vadd.f32 %v693, %v2887
    %v2931 = vadd.f32 %v694, %v2907
    %v2932 = vadd.f32 %v695, %v2927
    %v2933 = vld [vmem:[%s1 + $0xa0] sm:$0xff]
    %v2934 = vld [vmem:[%s2 + $0x70] sm:$0xff]
    %2936 = vset.pattern.permute.xlu0 0
    %2937 = vperm.xlu0 %2936, %v2934
    %v2938 = vpop.permute.xlu0 %2937
    %v2941 = vsel %vm409, %v2933, 0
    %2943 = vmatpush.msra.mxu0 0.0
    %2944 = vmatpush.msra.mxu0 0.0
    %2945 = vmatpush.msra.mxu0 0.0
    %2946 = vmatpush.msra.mxu0 0.0
    %2947 = vmatpush.msra.mxu0 0.0
    %2948 = vmatpush.msra.mxu0 0.0
    %2949 = vmatpush.msra.mxu0 0.0
    %2950 = vmatpush.msra.mxu0 0.0
    %2951 = vmatpush.msra.mxu0 0.0
    %2952 = vmatpush.msra.mxu0 0.0
    %2953 = vmatpush.msra.mxu0 0.0
    %2954 = vmatpush.msra.mxu0 0.0
    %2955 = vmatpush.msra.mxu0 0.0
    %2956 = vmatpush.msra.mxu0 0.0
    %2957 = vmatpush.msra.mxu0 0.0
    %2958 = vmatpush.msra.mxu0 %v2929
    %2959 = vmatmul.f32.gmra.mxu0 %v2941
    %v2960 = vpop.f32.mrf.mxu0
    %v2961 = vadd.f32 %v2938, %v2960
    %2962 = vdwg.mxu0
    %2963 = vmatpush.msra.mxu0 0.0
    %2964 = vmatpush.msra.mxu0 0.0
    %2965 = vmatpush.msra.mxu0 0.0
    %2966 = vmatpush.msra.mxu0 0.0
    %2967 = vmatpush.msra.mxu0 0.0
    %2968 = vmatpush.msra.mxu0 0.0
    %2969 = vmatpush.msra.mxu0 0.0
    %2970 = vmatpush.msra.mxu0 0.0
    %2971 = vmatpush.msra.mxu0 0.0
    %2972 = vmatpush.msra.mxu0 0.0
    %2973 = vmatpush.msra.mxu0 0.0
    %2974 = vmatpush.msra.mxu0 0.0
    %2975 = vmatpush.msra.mxu0 0.0
    %2976 = vmatpush.msra.mxu0 0.0
    %2977 = vmatpush.msra.mxu0 0.0
    %2978 = vmatpush.msra.mxu0 %v2930
    %2979 = vmatmul.f32.gmra.mxu0 %v2941
    %v2980 = vpop.f32.mrf.mxu0
    %v2981 = vadd.f32 %v2938, %v2980
    %2982 = vdwg.mxu0
    %2983 = vmatpush.msra.mxu0 0.0
    %2984 = vmatpush.msra.mxu0 0.0
    %2985 = vmatpush.msra.mxu0 0.0
    %2986 = vmatpush.msra.mxu0 0.0
    %2987 = vmatpush.msra.mxu0 0.0
    %2988 = vmatpush.msra.mxu0 0.0
    %2989 = vmatpush.msra.mxu0 0.0
    %2990 = vmatpush.msra.mxu0 0.0
    %2991 = vmatpush.msra.mxu0 0.0
    %2992 = vmatpush.msra.mxu0 0.0
    %2993 = vmatpush.msra.mxu0 0.0
    %2994 = vmatpush.msra.mxu0 0.0
    %2995 = vmatpush.msra.mxu0 0.0
    %2996 = vmatpush.msra.mxu0 0.0
    %2997 = vmatpush.msra.mxu0 0.0
    %2998 = vmatpush.msra.mxu0 %v2931
    %2999 = vmatmul.f32.gmra.mxu0 %v2941
    %v3000 = vpop.f32.mrf.mxu0
    %v3001 = vadd.f32 %v2938, %v3000
    %3002 = vdwg.mxu0
    %3003 = vmatpush.msra.mxu0 0.0
    %3004 = vmatpush.msra.mxu0 0.0
    %3005 = vmatpush.msra.mxu0 0.0
    %3006 = vmatpush.msra.mxu0 0.0
    %3007 = vmatpush.msra.mxu0 0.0
    %3008 = vmatpush.msra.mxu0 0.0
    %3009 = vmatpush.msra.mxu0 0.0
    %3010 = vmatpush.msra.mxu0 0.0
    %3011 = vmatpush.msra.mxu0 0.0
    %3012 = vmatpush.msra.mxu0 0.0
    %3013 = vmatpush.msra.mxu0 0.0
    %3014 = vmatpush.msra.mxu0 0.0
    %3015 = vmatpush.msra.mxu0 0.0
    %3016 = vmatpush.msra.mxu0 0.0
    %3017 = vmatpush.msra.mxu0 0.0
    %3018 = vmatpush.msra.mxu0 %v2932
    %3019 = vmatmul.f32.gmra.mxu0 %v2941
    %v3020 = vpop.f32.mrf.mxu0
    %v3021 = vadd.f32 %v2938, %v3020
    %3022 = vdwg.mxu0
    %3023 = vst [vmem:[#allocation2] sm:$0xff] %v2961
    %3024 = vst [vmem:[#allocation2 + $0x8] sm:$0xff] %v2981
    %3025 = vst [vmem:[#allocation2 + $0x10] sm:$0xff] %v3001
    %3026 = vst [vmem:[#allocation2 + $0x18] sm:$0xff] %v3021
    // Predicated region
    $region26: #{tpu_custom_call.1} parent=1 // pred_check
      _
    $region27: #{tpu_custom_call.1} parent=1 // pred_check_branch
      %3028 = sbr.rel (0) target = $region29
    $region28: #{tpu_custom_call.1} parent=1 // pred_region
      %3030 = vsyncadd [#allocation3], 0
      %s3032 = sshll.u32 [#allocation2], 4
      %s3033 = int_to_ptr.vmem [resolvable:$true] %s3032
      %s3034 = sshll.u32 %s6, 4
      %s3035 = int_to_ptr.hbm [resolvable:$true] %s3034
      %3037 = dma.vmem_to_hbm [thread:$0]  %s3033, 512, %s3035, [#allocation3]
    $region29: #{tpu_custom_call.1} parent=1 // pred_fallthru
      _
    // Predicated region
    $region30: #{tpu_custom_call.1} parent=1 // pred_check
      _
    $region31: #{tpu_custom_call.1} parent=1 // pred_check_branch
      %3039 = sbr.rel (0) target = $region33
    $region32: #{tpu_custom_call.1} parent=1 // pred_region
      %3041 = dma.done [#allocation3], 512
    $region33: #{tpu_custom_call.1} parent=1 // pred_fallthru
      _
    %3042 = vsyncpa [#allocation3], 1

</llo_original>
